<compile_context>
chip_gen: v7x
topology: tpu7x:2x2x1
jax: 0.10.0
libtpu: 0.0.40
codegen_flags: <defaults>
</compile_context>

<pallas_src>
import functools

import jax
import jax.numpy as jnp
from jax.experimental import pallas as pl
from jax.experimental.pallas import tpu as pltpu


def _decoder_kernel(L, B, T, K, H, *refs):
    # inputs: tf_use(SMEM, (T,)), xtf(T,B,4H), h0(L,B,H), c0(L,B,H),
    #         w0b(K,4H)   [emb + b0 folded, i/f/o cols pre-scaled by 0.5],
    #         whh0(H,4H)  [scaled],
    #         per layer l=1..L-1: wcat_l(2H,4H), b_l(1,4H)   [scaled],
    #         fcw(H,K), fcb(1,K)
    # output: out (B, T*K) lane-dense
    tf_ref, xtf_ref, h0_ref, c0_ref, w0b_ref, whh0_ref = refs[:6]
    idx = 6
    wcat, bias = [], []
    for _ in range(1, L):
        wcat.append(refs[idx][...])
        bias.append(refs[idx + 1][...])
        idx += 2
    fcw = refs[idx][...]                                    # (H, K)
    fcb = refs[idx + 1][...]                                # (1, K)
    out_ref = refs[idx + 2]                                 # (B, T*K)

    w0b = w0b_ref[...]                                      # (K, 4H) — pred branch only
    whh0 = whh0_ref[...]                                    # (H, 4H)

    # Hoisted broadcasts (JAX does not CSE broadcast_in_dim across the unroll).
    bias_b = [jnp.broadcast_to(b, (B, 4 * H)) for b in bias]
    fcb_b = jnp.broadcast_to(fcb, (B, K))

    # Recurrent state carried as vreg-resident values across the unrolled loop.
    h = [h0_ref[l] for l in range(L)]                       # each (B, H)
    c = [c0_ref[l] for l in range(L)]

    col = jax.lax.broadcasted_iota(jnp.int32, (B, K), 1)

    def lstm_cell(gates, c_prev):
        # i/f/o columns were pre-scaled by 0.5 in the wrapper, so ONE tanh over the
        # full (B, 4H) vreg gives tanh(z/2) for i/f/o and tanh(z) for g;
        # sigmoid(z) = 0.5 * (tanh(z/2) + 1) is a cheap whole-vreg fma.
        t = jnp.tanh(gates)
        u = 0.5 * (t + 1.0)
        i_g = u[:, 0:H]
        f_g = u[:, H:2 * H]
        g_g = t[:, 2 * H:3 * H]
        o_g = u[:, 3 * H:4 * H]
        c_new = f_g * c_prev + i_g * g_g
        h_new = o_g * jnp.tanh(c_new)
        return h_new, c_new

    # Layer-0 input contribution for step 0: always target[:, 0] (precomputed).
    xin = xtf_ref[0]                                        # (B, 4H)

    # Fully-unrolled time loop (T is small and static).
    for s in range(T):
        # Layer 0: embedding, input weight and bias already folded into xin.
        gates = xin + jnp.dot(h[0], whh0, preferred_element_type=jnp.float32)
        h[0], c[0] = lstm_cell(gates, c[0])
        x = h[0]

        # Remaining layers: fused [x, h] @ [wih; whh] — one MXU push per layer.
        for l in range(1, L):
            xh = jnp.concatenate([x, h[l]], axis=1)          # (B, 2H) lane concat
            gates = jnp.dot(xh, wcat[l - 1],
                            preferred_element_type=jnp.float32) + bias_b[l - 1]
            h[l], c[l] = lstm_cell(gates, c[l])
            x = h[l]

        # Output head -> lane slice [s*K, (s+1)*K) of the lane-dense output buffer.
        logits = jnp.dot(x, fcw, preferred_element_type=jnp.float32) + fcb_b
        out_ref[:, s * K:(s + 1) * K] = logits

        # Next step's layer-0 input contribution.  Only compute the argmax /
        # one-hot / pred @ W0 chain when the next step is NOT teacher-forced.
        if s < T - 1:
            xtf_next = xtf_ref[s + 1]

            def _pred_xin(logits=logits):
                # First-max argmax (matches jnp/torch.argmax) as a one-hot.
                m = jnp.max(logits, axis=1, keepdims=True)
                cand = jnp.where(logits == m, col, K)
                amax = jnp.min(cand, axis=1, keepdims=True)
                pred_oh = (col == amax).astype(jnp.float32)
                return jnp.dot(pred_oh, w0b, preferred_element_type=jnp.float32)

            xin = jax.lax.cond(tf_ref[s + 1] != 0,
                               lambda t=xtf_next: t,
                               _pred_xin)


def lstm_decoder_forward(target, h0, c0, tf_use, params):
    """target: (B, T+1) int32; h0, c0: (L, B, H) f32; tf_use: (T,) int32.
    Returns outputs: (B, K, T) f32 (matching torch.stack(outputs, dim=2))."""
    emb, layers, fcw, fcb = params["emb"], params["layers"], params["fcw"], params["fcb"]
    K, _E = emb.shape
    L, B, H = h0.shape
    T = target.shape[1] - 1

    # Layout this kernel is tuned for: gates fill exactly one (8,128) vreg and the
    # output is exactly one lane-dense 128-wide slab.
    assert 4 * H == 128 and T * K == 128, (H, T, K)

    hp = jax.lax.Precision.HIGHEST

    def scale_ifo(w):
        # Pre-scale i/f/o gate columns (PyTorch gate order i,f,g,o) by 0.5 so the
        # kernel needs a single tanh per cell.
        s = jnp.concatenate([jnp.full((2 * H,), 0.5, jnp.float32),
                             jnp.ones((H,), jnp.float32),
                             jnp.full((H,), 0.5, jnp.float32)]).astype(w.dtype)
        return w * s[None, :]

    wih0, whh0, b0 = layers[0]
    # Fold embedding into layer 0's input weight; fold b0 via the one-hot trick
    # (rows of a one-hot sum to 1, so onehot @ (W0 + b0_row) == onehot @ W0 + b0).
    w0b = scale_ifo(jnp.dot(emb, wih0, precision=hp) + b0[None, :])      # (K, 4H)
    whh0_s = scale_ifo(whh0)                                             # (H, 4H)

    layer_params = []
    for l in range(1, L):
        wih, whh, b = layers[l]
        layer_params += [scale_ifo(jnp.concatenate([wih, whh], axis=0)),  # (2H, 4H)
                         scale_ifo(b.reshape(1, -1))]                     # (1, 4H)

    # Teacher-forced layer-0 input contributions, computed off the serial chain.
    tgt_oh = jax.nn.one_hot(target[:, :T].T, K, dtype=jnp.float32)        # (T, B, K)
    xtf = jnp.einsum("tbk,kg->tbg", tgt_oh, w0b, precision=hp)            # (T, B, 4H)

    inputs = [tf_use, xtf, h0, c0, w0b, whh0_s, *layer_params,
              fcw, fcb.reshape(1, -1)]

    # No grid, no pipelining: everything (< 0.2 MiB) is whole-array VMEM resident;
    # tf_use lives in SMEM for cheap scalar reads.
    in_specs = ([pl.BlockSpec(memory_space=pltpu.MemorySpace.SMEM)]
                + [pl.BlockSpec(memory_space=pltpu.MemorySpace.VMEM)] * (len(inputs) - 1))

    out = pl.pallas_call(
        functools.partial(_decoder_kernel, L, B, T, K, H),
        out_shape=jax.ShapeDtypeStruct((B, T * K), jnp.float32),
        in_specs=in_specs,
        out_specs=pl.BlockSpec(memory_space=pltpu.MemorySpace.VMEM),
    )(*inputs)

    out = out.reshape(B, T, K)            # [b, s, k]
    return jnp.transpose(out, (0, 2, 1))  # (B, K, T)


def reference_forward(target, h0, c0, tf_use, params):
    """Plain-JAX reference mirroring the PyTorch forward (no folding/scaling)."""
    emb, layers, fcw, fcb = params["emb"], params["layers"], params["fcw"], params["fcb"]
    L, B, H = h0.shape
    T = target.shape[1] - 1
    h, c = h0, c0
    pred = target[:, 0]
    outs = []
    for s in range(T):
        inp = target[:, 0] if s == 0 else jnp.where(tf_use[s] != 0, target[:, s], pred)
        x = emb[inp]
        new_h, new_c = [], []
        for l, (wih, whh, b) in enumerate(layers):
            gates = x @ wih + h[l] @ whh + b
            i_g = jax.nn.sigmoid(gates[:, 0:H])
            f_g = jax.nn.sigmoid(gates[:, H:2 * H])
            g_g = jnp.tanh(gates[:, 2 * H:3 * H])
            o_g = jax.nn.sigmoid(gates[:, 3 * H:4 * H])
            cn = f_g * c[l] + i_g * g_g
            hn = o_g * jnp.tanh(cn)
            new_h.append(hn)
            new_c.append(cn)
            x = hn
        h, c = jnp.stack(new_h), jnp.stack(new_c)
        logits = x @ fcw + fcb
        outs.append(logits)
        pred = jnp.argmax(logits, axis=1)
    return jnp.stack(outs, axis=2)  # (B, K, T)


if __name__ == "__main__":
    key = jax.random.PRNGKey(0)
    B, T, K, E, H, L = 8, 8, 16, 32, 32, 2     # batch, steps, vocab, embed, hidden, layers
    teacher_forcing_ratio = 0.5

    def xavier(k, shape):
        fan_out, fan_in = shape
        bound = (6.0 / (fan_in + fan_out)) ** 0.5
        return jax.random.uniform(k, shape, jnp.float32, -bound, bound)

    keys = jax.random.split(key, 12)
    emb = xavier(keys[0], (K, E))
    layers = []
    for l in range(L):
        in_dim = E if l == 0 else H
        wih = xavier(keys[1 + 2 * l], (4 * H, in_dim)).T        # stored (in, 4H)
        whh = xavier(keys[2 + 2 * l], (4 * H, H)).T             # stored (H, 4H)
        b = jnp.zeros((4 * H,), jnp.float32)                    # b_ih + b_hh (both 0)
        layers.append((wih, whh, b))
    fcw = xavier(keys[5], (K, H)).T                             # stored (H, K)
    fcb = jnp.zeros((K,), jnp.float32)
    params = dict(emb=emb, layers=layers, fcw=fcw, fcb=fcb)

    target = jax.random.randint(keys[6], (B, T + 1), 0, K, jnp.int32)
    h0 = jax.random.normal(keys[7], (L, B, H), jnp.float32)
    c0 = jax.random.normal(keys[8], (L, B, H), jnp.float32)

    # Deterministic replacement for `random.random() < teacher_forcing_ratio`.
    draws = jax.random.uniform(keys[9], (T,))
    tf_use = (draws < teacher_forcing_ratio).astype(jnp.int32)
    tf_use = tf_use.at[0].set(1)   # step 0 always uses target[:, 0] (kernel enforces too)

    out = lstm_decoder_forward(target, h0, c0, tf_use, params)
    out = jax.block_until_ready(out)

    ref = reference_forward(target, h0, c0, tf_use, params)
    assert out.shape == (B, K, T), out.shape
    assert jnp.allclose(out, ref, atol=1e-3, rtol=1e-3), float(jnp.max(jnp.abs(out - ref)))
    print("KERNEL_OK")
</pallas_src>

<mosaic_0001>
module attributes {stable_mosaic.version = 11 : i64} {
  func.func @_decoder_kernel(%arg0: memref<8xi32, #tpu.memory_space<smem>>, %arg1: memref<8x8x128xf32, #tpu.memory_space<vmem>>, %arg2: memref<2x8x32xf32, #tpu.memory_space<vmem>>, %arg3: memref<2x8x32xf32, #tpu.memory_space<vmem>>, %arg4: memref<16x128xf32, #tpu.memory_space<vmem>>, %arg5: memref<32x128xf32, #tpu.memory_space<vmem>>, %arg6: memref<64x128xf32, #tpu.memory_space<vmem>>, %arg7: memref<1x128xf32, #tpu.memory_space<vmem>>, %arg8: memref<32x16xf32, #tpu.memory_space<vmem>>, %arg9: memref<1x16xf32, #tpu.memory_space<vmem>>, %arg10: memref<8x128xf32, #tpu.memory_space<vmem>>) attributes {dimension_semantics = [], scalar_prefetch = 0 : i64, scratch_operands = 0 : i64, tpu.core_type = #tpu.core_type<tc>} {
    %c0 = arith.constant 0 : index
    %c0_0 = arith.constant 0 : index
    %0 = vector.load %arg6[%c0, %c0_0] : memref<64x128xf32, #tpu.memory_space<vmem>>, vector<64x128xf32>
    %c0_1 = arith.constant 0 : index
    %c0_2 = arith.constant 0 : index
    %1 = vector.load %arg7[%c0_1, %c0_2] : memref<1x128xf32, #tpu.memory_space<vmem>>, vector<1x128xf32>
    %c0_3 = arith.constant 0 : index
    %c0_4 = arith.constant 0 : index
    %2 = vector.load %arg8[%c0_3, %c0_4] : memref<32x16xf32, #tpu.memory_space<vmem>>, vector<32x16xf32>
    %c0_5 = arith.constant 0 : index
    %c0_6 = arith.constant 0 : index
    %3 = vector.load %arg9[%c0_5, %c0_6] : memref<1x16xf32, #tpu.memory_space<vmem>>, vector<1x16xf32>
    %c0_7 = arith.constant 0 : index
    %c0_8 = arith.constant 0 : index
    %4 = vector.load %arg4[%c0_7, %c0_8] : memref<16x128xf32, #tpu.memory_space<vmem>>, vector<16x128xf32>
    %c0_9 = arith.constant 0 : index
    %c0_10 = arith.constant 0 : index
    %5 = vector.load %arg5[%c0_9, %c0_10] : memref<32x128xf32, #tpu.memory_space<vmem>>, vector<32x128xf32>
    %6 = vector.shape_cast %1 : vector<1x128xf32> to vector<1x128xf32>
    %7 = vector.broadcast %6 : vector<1x128xf32> to vector<8x128xf32>
    %8 = vector.shape_cast %3 : vector<1x16xf32> to vector<1x16xf32>
    %9 = vector.broadcast %8 : vector<1x16xf32> to vector<8x16xf32>
    %c0_11 = arith.constant 0 : index
    %c0_12 = arith.constant 0 : index
    %c0_13 = arith.constant 0 : index
    %10 = vector.load %arg2[%c0_11, %c0_12, %c0_13] : memref<2x8x32xf32, #tpu.memory_space<vmem>>, vector<1x8x32xf32>
    %11 = vector.shape_cast %10 : vector<1x8x32xf32> to vector<8x32xf32>
    %c1 = arith.constant 1 : index
    %c0_14 = arith.constant 0 : index
    %c0_15 = arith.constant 0 : index
    %12 = vector.load %arg2[%c1, %c0_14, %c0_15] : memref<2x8x32xf32, #tpu.memory_space<vmem>>, vector<1x8x32xf32>
    %13 = vector.shape_cast %12 : vector<1x8x32xf32> to vector<8x32xf32>
    %c0_16 = arith.constant 0 : index
    %c0_17 = arith.constant 0 : index
    %c0_18 = arith.constant 0 : index
    %14 = vector.load %arg3[%c0_16, %c0_17, %c0_18] : memref<2x8x32xf32, #tpu.memory_space<vmem>>, vector<1x8x32xf32>
    %15 = vector.shape_cast %14 : vector<1x8x32xf32> to vector<8x32xf32>
    %c1_19 = arith.constant 1 : index
    %c0_20 = arith.constant 0 : index
    %c0_21 = arith.constant 0 : index
    %16 = vector.load %arg3[%c1_19, %c0_20, %c0_21] : memref<2x8x32xf32, #tpu.memory_space<vmem>>, vector<1x8x32xf32>
    %17 = vector.shape_cast %16 : vector<1x8x32xf32> to vector<8x32xf32>
    %18 = tpu.iota {dimensions = array<i32: 1>} : vector<8x16xi32>
    %c0_22 = arith.constant 0 : index
    %c0_23 = arith.constant 0 : index
    %c0_24 = arith.constant 0 : index
    %19 = vector.load %arg1[%c0_22, %c0_23, %c0_24] : memref<8x8x128xf32, #tpu.memory_space<vmem>>, vector<1x8x128xf32>
    %20 = vector.shape_cast %19 : vector<1x8x128xf32> to vector<8x128xf32>
    %cst = arith.constant dense<0.000000e+00> : vector<8x128xf32>
    %21 = tpu.matmul %11, %5, %cst {dimension_numbers = #tpu.dot_dimension_numbers<[1], [0], [0], [1], [0, 0, 1, 1], [], []>} : vector<8x32xf32>, vector<32x128xf32>, vector<8x128xf32> -> vector<8x128xf32>
    %22 = arith.addf %20, %21 : vector<8x128xf32>
    %23 = math.tanh %22 : vector<8x128xf32>
    %cst_25 = arith.constant 1.000000e+00 : f32
    %24 = vector.broadcast %cst_25 : f32 to vector<8x128xf32>
    %25 = arith.addf %23, %24 : vector<8x128xf32>
    %cst_26 = arith.constant 5.000000e-01 : f32
    %26 = vector.broadcast %cst_26 : f32 to vector<8x128xf32>
    %27 = arith.mulf %26, %25 : vector<8x128xf32>
    %28 = vector.extract_strided_slice %27 {offsets = [0, 0], sizes = [8, 32], strides = [1, 1]} : vector<8x128xf32> to vector<8x32xf32>
    %29 = vector.extract_strided_slice %27 {offsets = [0, 32], sizes = [8, 32], strides = [1, 1]} : vector<8x128xf32> to vector<8x32xf32>
    %30 = vector.extract_strided_slice %23 {offsets = [0, 64], sizes = [8, 32], strides = [1, 1]} : vector<8x128xf32> to vector<8x32xf32>
    %31 = vector.extract_strided_slice %27 {offsets = [0, 96], sizes = [8, 32], strides = [1, 1]} : vector<8x128xf32> to vector<8x32xf32>
    %32 = arith.mulf %29, %15 : vector<8x32xf32>
    %33 = arith.mulf %28, %30 : vector<8x32xf32>
    %34 = arith.addf %32, %33 : vector<8x32xf32>
    %35 = math.tanh %34 : vector<8x32xf32>
    %36 = arith.mulf %31, %35 : vector<8x32xf32>
    %37 = tpu.concatenate %36, %13 in 1 : vector<8x32xf32>, vector<8x32xf32> -> vector<8x64xf32>
    %cst_27 = arith.constant dense<0.000000e+00> : vector<8x128xf32>
    %38 = tpu.matmul %37, %0, %cst_27 {dimension_numbers = #tpu.dot_dimension_numbers<[1], [0], [0], [1], [0, 0, 1, 1], [], []>} : vector<8x64xf32>, vector<64x128xf32>, vector<8x128xf32> -> vector<8x128xf32>
    %39 = arith.addf %38, %7 : vector<8x128xf32>
    %40 = math.tanh %39 : vector<8x128xf32>
    %cst_28 = arith.constant 1.000000e+00 : f32
    %41 = vector.broadcast %cst_28 : f32 to vector<8x128xf32>
    %42 = arith.addf %40, %41 : vector<8x128xf32>
    %cst_29 = arith.constant 5.000000e-01 : f32
    %43 = vector.broadcast %cst_29 : f32 to vector<8x128xf32>
    %44 = arith.mulf %43, %42 : vector<8x128xf32>
    %45 = vector.extract_strided_slice %44 {offsets = [0, 0], sizes = [8, 32], strides = [1, 1]} : vector<8x128xf32> to vector<8x32xf32>
    %46 = vector.extract_strided_slice %44 {offsets = [0, 32], sizes = [8, 32], strides = [1, 1]} : vector<8x128xf32> to vector<8x32xf32>
    %47 = vector.extract_strided_slice %40 {offsets = [0, 64], sizes = [8, 32], strides = [1, 1]} : vector<8x128xf32> to vector<8x32xf32>
    %48 = vector.extract_strided_slice %44 {offsets = [0, 96], sizes = [8, 32], strides = [1, 1]} : vector<8x128xf32> to vector<8x32xf32>
    %49 = arith.mulf %46, %17 : vector<8x32xf32>
    %50 = arith.mulf %45, %47 : vector<8x32xf32>
    %51 = arith.addf %49, %50 : vector<8x32xf32>
    %52 = math.tanh %51 : vector<8x32xf32>
    %53 = arith.mulf %48, %52 : vector<8x32xf32>
    %cst_30 = arith.constant dense<0.000000e+00> : vector<8x16xf32>
    %54 = tpu.matmul %53, %2, %cst_30 {dimension_numbers = #tpu.dot_dimension_numbers<[1], [0], [0], [1], [0, 0, 1, 1], [], []>} : vector<8x32xf32>, vector<32x16xf32>, vector<8x16xf32> -> vector<8x16xf32>
    %55 = arith.addf %54, %9 : vector<8x16xf32>
    %c0_31 = arith.constant 0 : index
    %c0_32 = arith.constant 0 : index
    %56 = vector.load %arg10[%c0_31, %c0_32] : memref<8x128xf32, #tpu.memory_space<vmem>>, vector<8x16xf32>
    tpu.vector_store %arg10[%c0_31, %c0_32], %55 {strides = array<i32>} : memref<8x128xf32, #tpu.memory_space<vmem>>, vector<8x16xf32>,
    %c1_33 = arith.constant 1 : index
    %c0_34 = arith.constant 0 : index
    %c0_35 = arith.constant 0 : index
    %57 = vector.load %arg1[%c1_33, %c0_34, %c0_35] : memref<8x8x128xf32, #tpu.memory_space<vmem>>, vector<1x8x128xf32>
    %58 = vector.shape_cast %57 : vector<1x8x128xf32> to vector<8x128xf32>
    %c1_36 = arith.constant 1 : index
    %59 = memref.load %arg0[%c1_36] : memref<8xi32, #tpu.memory_space<smem>>
    %c0_i32 = arith.constant 0 : i32
    %60 = arith.cmpi ne, %59, %c0_i32 : i32
    %61 = arith.extui %60 : i1 to i32
    %c0_i32_37 = arith.constant 0 : i32
    %62 = arith.cmpi ne, %61, %c0_i32_37 : i32
    %63 = scf.if %62 -> (vector<8x128xf32>) {
      scf.yield %58 : vector<8x128xf32>
    } else {
      %cst_124 = arith.constant dense<0xFF800000> : vector<8xf32>
      %358 = vector.multi_reduction <maximumf>, %55, %cst_124 [1] : vector<8x16xf32> to vector<8xf32>
      %359 = vector.shape_cast %358 : vector<8xf32> to vector<8x1xf32>
      %360 = vector.broadcast %359 : vector<8x1xf32> to vector<8x16xf32>
      %361 = arith.cmpf oeq, %55, %360 : vector<8x16xf32>
      %c16_i32 = arith.constant 16 : i32
      %362 = vector.broadcast %c16_i32 : i32 to vector<8x16xi32>
      %363 = arith.select %361, %18, %362 : vector<8x16xi1>, vector<8x16xi32>
      %cst_125 = arith.constant dense<2147483647> : vector<8xi32>
      %364 = vector.multi_reduction <minsi>, %363, %cst_125 [1] : vector<8x16xi32> to vector<8xi32>
      %365 = vector.shape_cast %364 : vector<8xi32> to vector<8x1xi32>
      %366 = vector.broadcast %365 : vector<8x1xi32> to vector<8x16xi32>
      %367 = arith.cmpi eq, %18, %366 : vector<8x16xi32>
      %368 = arith.extui %367 : vector<8x16xi1> to vector<8x16xi32>
      %369 = arith.sitofp %368 : vector<8x16xi32> to vector<8x16xf32>
      %cst_126 = arith.constant dense<0.000000e+00> : vector<8x128xf32>
      %370 = tpu.matmul %369, %4, %cst_126 {dimension_numbers = #tpu.dot_dimension_numbers<[1], [0], [0], [1], [0, 0, 1, 1], [], []>} : vector<8x16xf32>, vector<16x128xf32>, vector<8x128xf32> -> vector<8x128xf32>
      scf.yield %370 : vector<8x128xf32>
    }
    %cst_38 = arith.constant dense<0.000000e+00> : vector<8x128xf32>
    %64 = tpu.matmul %36, %5, %cst_38 {dimension_numbers = #tpu.dot_dimension_numbers<[1], [0], [0], [1], [0, 0, 1, 1], [], []>} : vector<8x32xf32>, vector<32x128xf32>, vector<8x128xf32> -> vector<8x128xf32>
    %65 = arith.addf %63, %64 : vector<8x128xf32>
    %66 = math.tanh %65 : vector<8x128xf32>
    %cst_39 = arith.constant 1.000000e+00 : f32
    %67 = vector.broadcast %cst_39 : f32 to vector<8x128xf32>
    %68 = arith.addf %66, %67 : vector<8x128xf32>
    %cst_40 = arith.constant 5.000000e-01 : f32
    %69 = vector.broadcast %cst_40 : f32 to vector<8x128xf32>
    %70 = arith.mulf %69, %68 : vector<8x128xf32>
    %71 = vector.extract_strided_slice %70 {offsets = [0, 0], sizes = [8, 32], strides = [1, 1]} : vector<8x128xf32> to vector<8x32xf32>
    %72 = vector.extract_strided_slice %70 {offsets = [0, 32], sizes = [8, 32], strides = [1, 1]} : vector<8x128xf32> to vector<8x32xf32>
    %73 = vector.extract_strided_slice %66 {offsets = [0, 64], sizes = [8, 32], strides = [1, 1]} : vector<8x128xf32> to vector<8x32xf32>
    %74 = vector.extract_strided_slice %70 {offsets = [0, 96], sizes = [8, 32], strides = [1, 1]} : vector<8x128xf32> to vector<8x32xf32>
    %75 = arith.mulf %72, %34 : vector<8x32xf32>
    %76 = arith.mulf %71, %73 : vector<8x32xf32>
    %77 = arith.addf %75, %76 : vector<8x32xf32>
    %78 = math.tanh %77 : vector<8x32xf32>
    %79 = arith.mulf %74, %78 : vector<8x32xf32>
    %80 = tpu.concatenate %79, %53 in 1 : vector<8x32xf32>, vector<8x32xf32> -> vector<8x64xf32>
    %cst_41 = arith.constant dense<0.000000e+00> : vector<8x128xf32>
    %81 = tpu.matmul %80, %0, %cst_41 {dimension_numbers = #tpu.dot_dimension_numbers<[1], [0], [0], [1], [0, 0, 1, 1], [], []>} : vector<8x64xf32>, vector<64x128xf32>, vector<8x128xf32> -> vector<8x128xf32>
    %82 = arith.addf %81, %7 : vector<8x128xf32>
    %83 = math.tanh %82 : vector<8x128xf32>
    %cst_42 = arith.constant 1.000000e+00 : f32
    %84 = vector.broadcast %cst_42 : f32 to vector<8x128xf32>
    %85 = arith.addf %83, %84 : vector<8x128xf32>
    %cst_43 = arith.constant 5.000000e-01 : f32
    %86 = vector.broadcast %cst_43 : f32 to vector<8x128xf32>
    %87 = arith.mulf %86, %85 : vector<8x128xf32>
    %88 = vector.extract_strided_slice %87 {offsets = [0, 0], sizes = [8, 32], strides = [1, 1]} : vector<8x128xf32> to vector<8x32xf32>
    %89 = vector.extract_strided_slice %87 {offsets = [0, 32], sizes = [8, 32], strides = [1, 1]} : vector<8x128xf32> to vector<8x32xf32>
    %90 = vector.extract_strided_slice %83 {offsets = [0, 64], sizes = [8, 32], strides = [1, 1]} : vector<8x128xf32> to vector<8x32xf32>
    %91 = vector.extract_strided_slice %87 {offsets = [0, 96], sizes = [8, 32], strides = [1, 1]} : vector<8x128xf32> to vector<8x32xf32>
    %92 = arith.mulf %89, %51 : vector<8x32xf32>
    %93 = arith.mulf %88, %90 : vector<8x32xf32>
    %94 = arith.addf %92, %93 : vector<8x32xf32>
    %95 = math.tanh %94 : vector<8x32xf32>
    %96 = arith.mulf %91, %95 : vector<8x32xf32>
    %cst_44 = arith.constant dense<0.000000e+00> : vector<8x16xf32>
    %97 = tpu.matmul %96, %2, %cst_44 {dimension_numbers = #tpu.dot_dimension_numbers<[1], [0], [0], [1], [0, 0, 1, 1], [], []>} : vector<8x32xf32>, vector<32x16xf32>, vector<8x16xf32> -> vector<8x16xf32>
    %98 = arith.addf %97, %9 : vector<8x16xf32>
    %c0_45 = arith.constant 0 : index
    %c16 = arith.constant 16 : index
    %99 = vector.load %arg10[%c0_45, %c16] : memref<8x128xf32, #tpu.memory_space<vmem>>, vector<8x16xf32>
    tpu.vector_store %arg10[%c0_45, %c16], %98 {strides = array<i32>} : memref<8x128xf32, #tpu.memory_space<vmem>>, vector<8x16xf32>,
    %c2 = arith.constant 2 : index
    %c0_46 = arith.constant 0 : index
    %c0_47 = arith.constant 0 : index
    %100 = vector.load %arg1[%c2, %c0_46, %c0_47] : memref<8x8x128xf32, #tpu.memory_space<vmem>>, vector<1x8x128xf32>
    %101 = vector.shape_cast %100 : vector<1x8x128xf32> to vector<8x128xf32>
    %c2_48 = arith.constant 2 : index
    %102 = memref.load %arg0[%c2_48] : memref<8xi32, #tpu.memory_space<smem>>
    %c0_i32_49 = arith.constant 0 : i32
    %103 = arith.cmpi ne, %102, %c0_i32_49 : i32
    %104 = arith.extui %103 : i1 to i32
    %c0_i32_50 = arith.constant 0 : i32
    %105 = arith.cmpi ne, %104, %c0_i32_50 : i32
    %106 = scf.if %105 -> (vector<8x128xf32>) {
      scf.yield %101 : vector<8x128xf32>
    } else {
      %cst_124 = arith.constant dense<0xFF800000> : vector<8xf32>
      %358 = vector.multi_reduction <maximumf>, %98, %cst_124 [1] : vector<8x16xf32> to vector<8xf32>
      %359 = vector.shape_cast %358 : vector<8xf32> to vector<8x1xf32>
      %360 = vector.broadcast %359 : vector<8x1xf32> to vector<8x16xf32>
      %361 = arith.cmpf oeq, %98, %360 : vector<8x16xf32>
      %c16_i32 = arith.constant 16 : i32
      %362 = vector.broadcast %c16_i32 : i32 to vector<8x16xi32>
      %363 = arith.select %361, %18, %362 : vector<8x16xi1>, vector<8x16xi32>
      %cst_125 = arith.constant dense<2147483647> : vector<8xi32>
      %364 = vector.multi_reduction <minsi>, %363, %cst_125 [1] : vector<8x16xi32> to vector<8xi32>
      %365 = vector.shape_cast %364 : vector<8xi32> to vector<8x1xi32>
      %366 = vector.broadcast %365 : vector<8x1xi32> to vector<8x16xi32>
      %367 = arith.cmpi eq, %18, %366 : vector<8x16xi32>
      %368 = arith.extui %367 : vector<8x16xi1> to vector<8x16xi32>
      %369 = arith.sitofp %368 : vector<8x16xi32> to vector<8x16xf32>
      %cst_126 = arith.constant dense<0.000000e+00> : vector<8x128xf32>
      %370 = tpu.matmul %369, %4, %cst_126 {dimension_numbers = #tpu.dot_dimension_numbers<[1], [0], [0], [1], [0, 0, 1, 1], [], []>} : vector<8x16xf32>, vector<16x128xf32>, vector<8x128xf32> -> vector<8x128xf32>
      scf.yield %370 : vector<8x128xf32>
    }
    %cst_51 = arith.constant dense<0.000000e+00> : vector<8x128xf32>
    %107 = tpu.matmul %79, %5, %cst_51 {dimension_numbers = #tpu.dot_dimension_numbers<[1], [0], [0], [1], [0, 0, 1, 1], [], []>} : vector<8x32xf32>, vector<32x128xf32>, vector<8x128xf32> -> vector<8x128xf32>
    %108 = arith.addf %106, %107 : vector<8x128xf32>
    %109 = math.tanh %108 : vector<8x128xf32>
    %cst_52 = arith.constant 1.000000e+00 : f32
    %110 = vector.broadcast %cst_52 : f32 to vector<8x128xf32>
    %111 = arith.addf %109, %110 : vector<8x128xf32>
    %cst_53 = arith.constant 5.000000e-01 : f32
    %112 = vector.broadcast %cst_53 : f32 to vector<8x128xf32>
    %113 = arith.mulf %112, %111 : vector<8x128xf32>
    %114 = vector.extract_strided_slice %113 {offsets = [0, 0], sizes = [8, 32], strides = [1, 1]} : vector<8x128xf32> to vector<8x32xf32>
    %115 = vector.extract_strided_slice %113 {offsets = [0, 32], sizes = [8, 32], strides = [1, 1]} : vector<8x128xf32> to vector<8x32xf32>
    %116 = vector.extract_strided_slice %109 {offsets = [0, 64], sizes = [8, 32], strides = [1, 1]} : vector<8x128xf32> to vector<8x32xf32>
    %117 = vector.extract_strided_slice %113 {offsets = [0, 96], sizes = [8, 32], strides = [1, 1]} : vector<8x128xf32> to vector<8x32xf32>
    %118 = arith.mulf %115, %77 : vector<8x32xf32>
    %119 = arith.mulf %114, %116 : vector<8x32xf32>
    %120 = arith.addf %118, %119 : vector<8x32xf32>
    %121 = math.tanh %120 : vector<8x32xf32>
    %122 = arith.mulf %117, %121 : vector<8x32xf32>
    %123 = tpu.concatenate %122, %96 in 1 : vector<8x32xf32>, vector<8x32xf32> -> vector<8x64xf32>
    %cst_54 = arith.constant dense<0.000000e+00> : vector<8x128xf32>
    %124 = tpu.matmul %123, %0, %cst_54 {dimension_numbers = #tpu.dot_dimension_numbers<[1], [0], [0], [1], [0, 0, 1, 1], [], []>} : vector<8x64xf32>, vector<64x128xf32>, vector<8x128xf32> -> vector<8x128xf32>
    %125 = arith.addf %124, %7 : vector<8x128xf32>
    %126 = math.tanh %125 : vector<8x128xf32>
    %cst_55 = arith.constant 1.000000e+00 : f32
    %127 = vector.broadcast %cst_55 : f32 to vector<8x128xf32>
    %128 = arith.addf %126, %127 : vector<8x128xf32>
    %cst_56 = arith.constant 5.000000e-01 : f32
    %129 = vector.broadcast %cst_56 : f32 to vector<8x128xf32>
    %130 = arith.mulf %129, %128 : vector<8x128xf32>
    %131 = vector.extract_strided_slice %130 {offsets = [0, 0], sizes = [8, 32], strides = [1, 1]} : vector<8x128xf32> to vector<8x32xf32>
    %132 = vector.extract_strided_slice %130 {offsets = [0, 32], sizes = [8, 32], strides = [1, 1]} : vector<8x128xf32> to vector<8x32xf32>
    %133 = vector.extract_strided_slice %126 {offsets = [0, 64], sizes = [8, 32], strides = [1, 1]} : vector<8x128xf32> to vector<8x32xf32>
    %134 = vector.extract_strided_slice %130 {offsets = [0, 96], sizes = [8, 32], strides = [1, 1]} : vector<8x128xf32> to vector<8x32xf32>
    %135 = arith.mulf %132, %94 : vector<8x32xf32>
    %136 = arith.mulf %131, %133 : vector<8x32xf32>
    %137 = arith.addf %135, %136 : vector<8x32xf32>
    %138 = math.tanh %137 : vector<8x32xf32>
    %139 = arith.mulf %134, %138 : vector<8x32xf32>
    %cst_57 = arith.constant dense<0.000000e+00> : vector<8x16xf32>
    %140 = tpu.matmul %139, %2, %cst_57 {dimension_numbers = #tpu.dot_dimension_numbers<[1], [0], [0], [1], [0, 0, 1, 1], [], []>} : vector<8x32xf32>, vector<32x16xf32>, vector<8x16xf32> -> vector<8x16xf32>
    %141 = arith.addf %140, %9 : vector<8x16xf32>
    %c0_58 = arith.constant 0 : index
    %c32 = arith.constant 32 : index
    %142 = vector.load %arg10[%c0_58, %c32] : memref<8x128xf32, #tpu.memory_space<vmem>>, vector<8x16xf32>
    tpu.vector_store %arg10[%c0_58, %c32], %141 {strides = array<i32>} : memref<8x128xf32, #tpu.memory_space<vmem>>, vector<8x16xf32>,
    %c3 = arith.constant 3 : index
    %c0_59 = arith.constant 0 : index
    %c0_60 = arith.constant 0 : index
    %143 = vector.load %arg1[%c3, %c0_59, %c0_60] : memref<8x8x128xf32, #tpu.memory_space<vmem>>, vector<1x8x128xf32>
    %144 = vector.shape_cast %143 : vector<1x8x128xf32> to vector<8x128xf32>
    %c3_61 = arith.constant 3 : index
    %145 = memref.load %arg0[%c3_61] : memref<8xi32, #tpu.memory_space<smem>>
    %c0_i32_62 = arith.constant 0 : i32
    %146 = arith.cmpi ne, %145, %c0_i32_62 : i32
    %147 = arith.extui %146 : i1 to i32
    %c0_i32_63 = arith.constant 0 : i32
    %148 = arith.cmpi ne, %147, %c0_i32_63 : i32
    %149 = scf.if %148 -> (vector<8x128xf32>) {
      scf.yield %144 : vector<8x128xf32>
    } else {
      %cst_124 = arith.constant dense<0xFF800000> : vector<8xf32>
      %358 = vector.multi_reduction <maximumf>, %141, %cst_124 [1] : vector<8x16xf32> to vector<8xf32>
      %359 = vector.shape_cast %358 : vector<8xf32> to vector<8x1xf32>
      %360 = vector.broadcast %359 : vector<8x1xf32> to vector<8x16xf32>
      %361 = arith.cmpf oeq, %141, %360 : vector<8x16xf32>
      %c16_i32 = arith.constant 16 : i32
      %362 = vector.broadcast %c16_i32 : i32 to vector<8x16xi32>
      %363 = arith.select %361, %18, %362 : vector<8x16xi1>, vector<8x16xi32>
      %cst_125 = arith.constant dense<2147483647> : vector<8xi32>
      %364 = vector.multi_reduction <minsi>, %363, %cst_125 [1] : vector<8x16xi32> to vector<8xi32>
      %365 = vector.shape_cast %364 : vector<8xi32> to vector<8x1xi32>
      %366 = vector.broadcast %365 : vector<8x1xi32> to vector<8x16xi32>
      %367 = arith.cmpi eq, %18, %366 : vector<8x16xi32>
      %368 = arith.extui %367 : vector<8x16xi1> to vector<8x16xi32>
      %369 = arith.sitofp %368 : vector<8x16xi32> to vector<8x16xf32>
      %cst_126 = arith.constant dense<0.000000e+00> : vector<8x128xf32>
      %370 = tpu.matmul %369, %4, %cst_126 {dimension_numbers = #tpu.dot_dimension_numbers<[1], [0], [0], [1], [0, 0, 1, 1], [], []>} : vector<8x16xf32>, vector<16x128xf32>, vector<8x128xf32> -> vector<8x128xf32>
      scf.yield %370 : vector<8x128xf32>
    }
    %cst_64 = arith.constant dense<0.000000e+00> : vector<8x128xf32>
    %150 = tpu.matmul %122, %5, %cst_64 {dimension_numbers = #tpu.dot_dimension_numbers<[1], [0], [0], [1], [0, 0, 1, 1], [], []>} : vector<8x32xf32>, vector<32x128xf32>, vector<8x128xf32> -> vector<8x128xf32>
    %151 = arith.addf %149, %150 : vector<8x128xf32>
    %152 = math.tanh %151 : vector<8x128xf32>
    %cst_65 = arith.constant 1.000000e+00 : f32
    %153 = vector.broadcast %cst_65 : f32 to vector<8x128xf32>
    %154 = arith.addf %152, %153 : vector<8x128xf32>
    %cst_66 = arith.constant 5.000000e-01 : f32
    %155 = vector.broadcast %cst_66 : f32 to vector<8x128xf32>
    %156 = arith.mulf %155, %154 : vector<8x128xf32>
    %157 = vector.extract_strided_slice %156 {offsets = [0, 0], sizes = [8, 32], strides = [1, 1]} : vector<8x128xf32> to vector<8x32xf32>
    %158 = vector.extract_strided_slice %156 {offsets = [0, 32], sizes = [8, 32], strides = [1, 1]} : vector<8x128xf32> to vector<8x32xf32>
    %159 = vector.extract_strided_slice %152 {offsets = [0, 64], sizes = [8, 32], strides = [1, 1]} : vector<8x128xf32> to vector<8x32xf32>
    %160 = vector.extract_strided_slice %156 {offsets = [0, 96], sizes = [8, 32], strides = [1, 1]} : vector<8x128xf32> to vector<8x32xf32>
    %161 = arith.mulf %158, %120 : vector<8x32xf32>
    %162 = arith.mulf %157, %159 : vector<8x32xf32>
    %163 = arith.addf %161, %162 : vector<8x32xf32>
    %164 = math.tanh %163 : vector<8x32xf32>
    %165 = arith.mulf %160, %164 : vector<8x32xf32>
    %166 = tpu.concatenate %165, %139 in 1 : vector<8x32xf32>, vector<8x32xf32> -> vector<8x64xf32>
    %cst_67 = arith.constant dense<0.000000e+00> : vector<8x128xf32>
    %167 = tpu.matmul %166, %0, %cst_67 {dimension_numbers = #tpu.dot_dimension_numbers<[1], [0], [0], [1], [0, 0, 1, 1], [], []>} : vector<8x64xf32>, vector<64x128xf32>, vector<8x128xf32> -> vector<8x128xf32>
    %168 = arith.addf %167, %7 : vector<8x128xf32>
    %169 = math.tanh %168 : vector<8x128xf32>
    %cst_68 = arith.constant 1.000000e+00 : f32
    %170 = vector.broadcast %cst_68 : f32 to vector<8x128xf32>
    %171 = arith.addf %169, %170 : vector<8x128xf32>
    %cst_69 = arith.constant 5.000000e-01 : f32
    %172 = vector.broadcast %cst_69 : f32 to vector<8x128xf32>
    %173 = arith.mulf %172, %171 : vector<8x128xf32>
    %174 = vector.extract_strided_slice %173 {offsets = [0, 0], sizes = [8, 32], strides = [1, 1]} : vector<8x128xf32> to vector<8x32xf32>
    %175 = vector.extract_strided_slice %173 {offsets = [0, 32], sizes = [8, 32], strides = [1, 1]} : vector<8x128xf32> to vector<8x32xf32>
    %176 = vector.extract_strided_slice %169 {offsets = [0, 64], sizes = [8, 32], strides = [1, 1]} : vector<8x128xf32> to vector<8x32xf32>
    %177 = vector.extract_strided_slice %173 {offsets = [0, 96], sizes = [8, 32], strides = [1, 1]} : vector<8x128xf32> to vector<8x32xf32>
    %178 = arith.mulf %175, %137 : vector<8x32xf32>
    %179 = arith.mulf %174, %176 : vector<8x32xf32>
    %180 = arith.addf %178, %179 : vector<8x32xf32>
    %181 = math.tanh %180 : vector<8x32xf32>
    %182 = arith.mulf %177, %181 : vector<8x32xf32>
    %cst_70 = arith.constant dense<0.000000e+00> : vector<8x16xf32>
    %183 = tpu.matmul %182, %2, %cst_70 {dimension_numbers = #tpu.dot_dimension_numbers<[1], [0], [0], [1], [0, 0, 1, 1], [], []>} : vector<8x32xf32>, vector<32x16xf32>, vector<8x16xf32> -> vector<8x16xf32>
    %184 = arith.addf %183, %9 : vector<8x16xf32>
    %c0_71 = arith.constant 0 : index
    %c48 = arith.constant 48 : index
    %185 = vector.load %arg10[%c0_71, %c48] : memref<8x128xf32, #tpu.memory_space<vmem>>, vector<8x16xf32>
    tpu.vector_store %arg10[%c0_71, %c48], %184 {strides = array<i32>} : memref<8x128xf32, #tpu.memory_space<vmem>>, vector<8x16xf32>,
    %c4 = arith.constant 4 : index
    %c0_72 = arith.constant 0 : index
    %c0_73 = arith.constant 0 : index
    %186 = vector.load %arg1[%c4, %c0_72, %c0_73] : memref<8x8x128xf32, #tpu.memory_space<vmem>>, vector<1x8x128xf32>
    %187 = vector.shape_cast %186 : vector<1x8x128xf32> to vector<8x128xf32>
    %c4_74 = arith.constant 4 : index
    %188 = memref.load %arg0[%c4_74] : memref<8xi32, #tpu.memory_space<smem>>
    %c0_i32_75 = arith.constant 0 : i32
    %189 = arith.cmpi ne, %188, %c0_i32_75 : i32
    %190 = arith.extui %189 : i1 to i32
    %c0_i32_76 = arith.constant 0 : i32
    %191 = arith.cmpi ne, %190, %c0_i32_76 : i32
    %192 = scf.if %191 -> (vector<8x128xf32>) {
      scf.yield %187 : vector<8x128xf32>
    } else {
      %cst_124 = arith.constant dense<0xFF800000> : vector<8xf32>
      %358 = vector.multi_reduction <maximumf>, %184, %cst_124 [1] : vector<8x16xf32> to vector<8xf32>
      %359 = vector.shape_cast %358 : vector<8xf32> to vector<8x1xf32>
      %360 = vector.broadcast %359 : vector<8x1xf32> to vector<8x16xf32>
      %361 = arith.cmpf oeq, %184, %360 : vector<8x16xf32>
      %c16_i32 = arith.constant 16 : i32
      %362 = vector.broadcast %c16_i32 : i32 to vector<8x16xi32>
      %363 = arith.select %361, %18, %362 : vector<8x16xi1>, vector<8x16xi32>
      %cst_125 = arith.constant dense<2147483647> : vector<8xi32>
      %364 = vector.multi_reduction <minsi>, %363, %cst_125 [1] : vector<8x16xi32> to vector<8xi32>
      %365 = vector.shape_cast %364 : vector<8xi32> to vector<8x1xi32>
      %366 = vector.broadcast %365 : vector<8x1xi32> to vector<8x16xi32>
      %367 = arith.cmpi eq, %18, %366 : vector<8x16xi32>
      %368 = arith.extui %367 : vector<8x16xi1> to vector<8x16xi32>
      %369 = arith.sitofp %368 : vector<8x16xi32> to vector<8x16xf32>
      %cst_126 = arith.constant dense<0.000000e+00> : vector<8x128xf32>
      %370 = tpu.matmul %369, %4, %cst_126 {dimension_numbers = #tpu.dot_dimension_numbers<[1], [0], [0], [1], [0, 0, 1, 1], [], []>} : vector<8x16xf32>, vector<16x128xf32>, vector<8x128xf32> -> vector<8x128xf32>
      scf.yield %370 : vector<8x128xf32>
    }
    %cst_77 = arith.constant dense<0.000000e+00> : vector<8x128xf32>
    %193 = tpu.matmul %165, %5, %cst_77 {dimension_numbers = #tpu.dot_dimension_numbers<[1], [0], [0], [1], [0, 0, 1, 1], [], []>} : vector<8x32xf32>, vector<32x128xf32>, vector<8x128xf32> -> vector<8x128xf32>
    %194 = arith.addf %192, %193 : vector<8x128xf32>
    %195 = math.tanh %194 : vector<8x128xf32>
    %cst_78 = arith.constant 1.000000e+00 : f32
    %196 = vector.broadcast %cst_78 : f32 to vector<8x128xf32>
    %197 = arith.addf %195, %196 : vector<8x128xf32>
    %cst_79 = arith.constant 5.000000e-01 : f32
    %198 = vector.broadcast %cst_79 : f32 to vector<8x128xf32>
    %199 = arith.mulf %198, %197 : vector<8x128xf32>
    %200 = vector.extract_strided_slice %199 {offsets = [0, 0], sizes = [8, 32], strides = [1, 1]} : vector<8x128xf32> to vector<8x32xf32>
    %201 = vector.extract_strided_slice %199 {offsets = [0, 32], sizes = [8, 32], strides = [1, 1]} : vector<8x128xf32> to vector<8x32xf32>
    %202 = vector.extract_strided_slice %195 {offsets = [0, 64], sizes = [8, 32], strides = [1, 1]} : vector<8x128xf32> to vector<8x32xf32>
    %203 = vector.extract_strided_slice %199 {offsets = [0, 96], sizes = [8, 32], strides = [1, 1]} : vector<8x128xf32> to vector<8x32xf32>
    %204 = arith.mulf %201, %163 : vector<8x32xf32>
    %205 = arith.mulf %200, %202 : vector<8x32xf32>
    %206 = arith.addf %204, %205 : vector<8x32xf32>
    %207 = math.tanh %206 : vector<8x32xf32>
    %208 = arith.mulf %203, %207 : vector<8x32xf32>
    %209 = tpu.concatenate %208, %182 in 1 : vector<8x32xf32>, vector<8x32xf32> -> vector<8x64xf32>
    %cst_80 = arith.constant dense<0.000000e+00> : vector<8x128xf32>
    %210 = tpu.matmul %209, %0, %cst_80 {dimension_numbers = #tpu.dot_dimension_numbers<[1], [0], [0], [1], [0, 0, 1, 1], [], []>} : vector<8x64xf32>, vector<64x128xf32>, vector<8x128xf32> -> vector<8x128xf32>
    %211 = arith.addf %210, %7 : vector<8x128xf32>
    %212 = math.tanh %211 : vector<8x128xf32>
    %cst_81 = arith.constant 1.000000e+00 : f32
    %213 = vector.broadcast %cst_81 : f32 to vector<8x128xf32>
    %214 = arith.addf %212, %213 : vector<8x128xf32>
    %cst_82 = arith.constant 5.000000e-01 : f32
    %215 = vector.broadcast %cst_82 : f32 to vector<8x128xf32>
    %216 = arith.mulf %215, %214 : vector<8x128xf32>
    %217 = vector.extract_strided_slice %216 {offsets = [0, 0], sizes = [8, 32], strides = [1, 1]} : vector<8x128xf32> to vector<8x32xf32>
    %218 = vector.extract_strided_slice %216 {offsets = [0, 32], sizes = [8, 32], strides = [1, 1]} : vector<8x128xf32> to vector<8x32xf32>
    %219 = vector.extract_strided_slice %212 {offsets = [0, 64], sizes = [8, 32], strides = [1, 1]} : vector<8x128xf32> to vector<8x32xf32>
    %220 = vector.extract_strided_slice %216 {offsets = [0, 96], sizes = [8, 32], strides = [1, 1]} : vector<8x128xf32> to vector<8x32xf32>
    %221 = arith.mulf %218, %180 : vector<8x32xf32>
    %222 = arith.mulf %217, %219 : vector<8x32xf32>
    %223 = arith.addf %221, %222 : vector<8x32xf32>
    %224 = math.tanh %223 : vector<8x32xf32>
    %225 = arith.mulf %220, %224 : vector<8x32xf32>
    %cst_83 = arith.constant dense<0.000000e+00> : vector<8x16xf32>
    %226 = tpu.matmul %225, %2, %cst_83 {dimension_numbers = #tpu.dot_dimension_numbers<[1], [0], [0], [1], [0, 0, 1, 1], [], []>} : vector<8x32xf32>, vector<32x16xf32>, vector<8x16xf32> -> vector<8x16xf32>
    %227 = arith.addf %226, %9 : vector<8x16xf32>
    %c0_84 = arith.constant 0 : index
    %c64 = arith.constant 64 : index
    %228 = vector.load %arg10[%c0_84, %c64] : memref<8x128xf32, #tpu.memory_space<vmem>>, vector<8x16xf32>
    tpu.vector_store %arg10[%c0_84, %c64], %227 {strides = array<i32>} : memref<8x128xf32, #tpu.memory_space<vmem>>, vector<8x16xf32>,
    %c5 = arith.constant 5 : index
    %c0_85 = arith.constant 0 : index
    %c0_86 = arith.constant 0 : index
    %229 = vector.load %arg1[%c5, %c0_85, %c0_86] : memref<8x8x128xf32, #tpu.memory_space<vmem>>, vector<1x8x128xf32>
    %230 = vector.shape_cast %229 : vector<1x8x128xf32> to vector<8x128xf32>
    %c5_87 = arith.constant 5 : index
    %231 = memref.load %arg0[%c5_87] : memref<8xi32, #tpu.memory_space<smem>>
    %c0_i32_88 = arith.constant 0 : i32
    %232 = arith.cmpi ne, %231, %c0_i32_88 : i32
    %233 = arith.extui %232 : i1 to i32
    %c0_i32_89 = arith.constant 0 : i32
    %234 = arith.cmpi ne, %233, %c0_i32_89 : i32
    %235 = scf.if %234 -> (vector<8x128xf32>) {
      scf.yield %230 : vector<8x128xf32>
    } else {
      %cst_124 = arith.constant dense<0xFF800000> : vector<8xf32>
      %358 = vector.multi_reduction <maximumf>, %227, %cst_124 [1] : vector<8x16xf32> to vector<8xf32>
      %359 = vector.shape_cast %358 : vector<8xf32> to vector<8x1xf32>
      %360 = vector.broadcast %359 : vector<8x1xf32> to vector<8x16xf32>
      %361 = arith.cmpf oeq, %227, %360 : vector<8x16xf32>
      %c16_i32 = arith.constant 16 : i32
      %362 = vector.broadcast %c16_i32 : i32 to vector<8x16xi32>
      %363 = arith.select %361, %18, %362 : vector<8x16xi1>, vector<8x16xi32>
      %cst_125 = arith.constant dense<2147483647> : vector<8xi32>
      %364 = vector.multi_reduction <minsi>, %363, %cst_125 [1] : vector<8x16xi32> to vector<8xi32>
      %365 = vector.shape_cast %364 : vector<8xi32> to vector<8x1xi32>
      %366 = vector.broadcast %365 : vector<8x1xi32> to vector<8x16xi32>
      %367 = arith.cmpi eq, %18, %366 : vector<8x16xi32>
      %368 = arith.extui %367 : vector<8x16xi1> to vector<8x16xi32>
      %369 = arith.sitofp %368 : vector<8x16xi32> to vector<8x16xf32>
      %cst_126 = arith.constant dense<0.000000e+00> : vector<8x128xf32>
      %370 = tpu.matmul %369, %4, %cst_126 {dimension_numbers = #tpu.dot_dimension_numbers<[1], [0], [0], [1], [0, 0, 1, 1], [], []>} : vector<8x16xf32>, vector<16x128xf32>, vector<8x128xf32> -> vector<8x128xf32>
      scf.yield %370 : vector<8x128xf32>
    }
    %cst_90 = arith.constant dense<0.000000e+00> : vector<8x128xf32>
    %236 = tpu.matmul %208, %5, %cst_90 {dimension_numbers = #tpu.dot_dimension_numbers<[1], [0], [0], [1], [0, 0, 1, 1], [], []>} : vector<8x32xf32>, vector<32x128xf32>, vector<8x128xf32> -> vector<8x128xf32>
    %237 = arith.addf %235, %236 : vector<8x128xf32>
    %238 = math.tanh %237 : vector<8x128xf32>
    %cst_91 = arith.constant 1.000000e+00 : f32
    %239 = vector.broadcast %cst_91 : f32 to vector<8x128xf32>
    %240 = arith.addf %238, %239 : vector<8x128xf32>
    %cst_92 = arith.constant 5.000000e-01 : f32
    %241 = vector.broadcast %cst_92 : f32 to vector<8x128xf32>
    %242 = arith.mulf %241, %240 : vector<8x128xf32>
    %243 = vector.extract_strided_slice %242 {offsets = [0, 0], sizes = [8, 32], strides = [1, 1]} : vector<8x128xf32> to vector<8x32xf32>
    %244 = vector.extract_strided_slice %242 {offsets = [0, 32], sizes = [8, 32], strides = [1, 1]} : vector<8x128xf32> to vector<8x32xf32>
    %245 = vector.extract_strided_slice %238 {offsets = [0, 64], sizes = [8, 32], strides = [1, 1]} : vector<8x128xf32> to vector<8x32xf32>
    %246 = vector.extract_strided_slice %242 {offsets = [0, 96], sizes = [8, 32], strides = [1, 1]} : vector<8x128xf32> to vector<8x32xf32>
    %247 = arith.mulf %244, %206 : vector<8x32xf32>
    %248 = arith.mulf %243, %245 : vector<8x32xf32>
    %249 = arith.addf %247, %248 : vector<8x32xf32>
    %250 = math.tanh %249 : vector<8x32xf32>
    %251 = arith.mulf %246, %250 : vector<8x32xf32>
    %252 = tpu.concatenate %251, %225 in 1 : vector<8x32xf32>, vector<8x32xf32> -> vector<8x64xf32>
    %cst_93 = arith.constant dense<0.000000e+00> : vector<8x128xf32>
    %253 = tpu.matmul %252, %0, %cst_93 {dimension_numbers = #tpu.dot_dimension_numbers<[1], [0], [0], [1], [0, 0, 1, 1], [], []>} : vector<8x64xf32>, vector<64x128xf32>, vector<8x128xf32> -> vector<8x128xf32>
    %254 = arith.addf %253, %7 : vector<8x128xf32>
    %255 = math.tanh %254 : vector<8x128xf32>
    %cst_94 = arith.constant 1.000000e+00 : f32
    %256 = vector.broadcast %cst_94 : f32 to vector<8x128xf32>
    %257 = arith.addf %255, %256 : vector<8x128xf32>
    %cst_95 = arith.constant 5.000000e-01 : f32
    %258 = vector.broadcast %cst_95 : f32 to vector<8x128xf32>
    %259 = arith.mulf %258, %257 : vector<8x128xf32>
    %260 = vector.extract_strided_slice %259 {offsets = [0, 0], sizes = [8, 32], strides = [1, 1]} : vector<8x128xf32> to vector<8x32xf32>
    %261 = vector.extract_strided_slice %259 {offsets = [0, 32], sizes = [8, 32], strides = [1, 1]} : vector<8x128xf32> to vector<8x32xf32>
    %262 = vector.extract_strided_slice %255 {offsets = [0, 64], sizes = [8, 32], strides = [1, 1]} : vector<8x128xf32> to vector<8x32xf32>
    %263 = vector.extract_strided_slice %259 {offsets = [0, 96], sizes = [8, 32], strides = [1, 1]} : vector<8x128xf32> to vector<8x32xf32>
    %264 = arith.mulf %261, %223 : vector<8x32xf32>
    %265 = arith.mulf %260, %262 : vector<8x32xf32>
    %266 = arith.addf %264, %265 : vector<8x32xf32>
    %267 = math.tanh %266 : vector<8x32xf32>
    %268 = arith.mulf %263, %267 : vector<8x32xf32>
    %cst_96 = arith.constant dense<0.000000e+00> : vector<8x16xf32>
    %269 = tpu.matmul %268, %2, %cst_96 {dimension_numbers = #tpu.dot_dimension_numbers<[1], [0], [0], [1], [0, 0, 1, 1], [], []>} : vector<8x32xf32>, vector<32x16xf32>, vector<8x16xf32> -> vector<8x16xf32>
    %270 = arith.addf %269, %9 : vector<8x16xf32>
    %c0_97 = arith.constant 0 : index
    %c80 = arith.constant 80 : index
    %271 = vector.load %arg10[%c0_97, %c80] : memref<8x128xf32, #tpu.memory_space<vmem>>, vector<8x16xf32>
    tpu.vector_store %arg10[%c0_97, %c80], %270 {strides = array<i32>} : memref<8x128xf32, #tpu.memory_space<vmem>>, vector<8x16xf32>,
    %c6 = arith.constant 6 : index
    %c0_98 = arith.constant 0 : index
    %c0_99 = arith.constant 0 : index
    %272 = vector.load %arg1[%c6, %c0_98, %c0_99] : memref<8x8x128xf32, #tpu.memory_space<vmem>>, vector<1x8x128xf32>
    %273 = vector.shape_cast %272 : vector<1x8x128xf32> to vector<8x128xf32>
    %c6_100 = arith.constant 6 : index
    %274 = memref.load %arg0[%c6_100] : memref<8xi32, #tpu.memory_space<smem>>
    %c0_i32_101 = arith.constant 0 : i32
    %275 = arith.cmpi ne, %274, %c0_i32_101 : i32
    %276 = arith.extui %275 : i1 to i32
    %c0_i32_102 = arith.constant 0 : i32
    %277 = arith.cmpi ne, %276, %c0_i32_102 : i32
    %278 = scf.if %277 -> (vector<8x128xf32>) {
      scf.yield %273 : vector<8x128xf32>
    } else {
      %cst_124 = arith.constant dense<0xFF800000> : vector<8xf32>
      %358 = vector.multi_reduction <maximumf>, %270, %cst_124 [1] : vector<8x16xf32> to vector<8xf32>
      %359 = vector.shape_cast %358 : vector<8xf32> to vector<8x1xf32>
      %360 = vector.broadcast %359 : vector<8x1xf32> to vector<8x16xf32>
      %361 = arith.cmpf oeq, %270, %360 : vector<8x16xf32>
      %c16_i32 = arith.constant 16 : i32
      %362 = vector.broadcast %c16_i32 : i32 to vector<8x16xi32>
      %363 = arith.select %361, %18, %362 : vector<8x16xi1>, vector<8x16xi32>
      %cst_125 = arith.constant dense<2147483647> : vector<8xi32>
      %364 = vector.multi_reduction <minsi>, %363, %cst_125 [1] : vector<8x16xi32> to vector<8xi32>
      %365 = vector.shape_cast %364 : vector<8xi32> to vector<8x1xi32>
      %366 = vector.broadcast %365 : vector<8x1xi32> to vector<8x16xi32>
      %367 = arith.cmpi eq, %18, %366 : vector<8x16xi32>
      %368 = arith.extui %367 : vector<8x16xi1> to vector<8x16xi32>
      %369 = arith.sitofp %368 : vector<8x16xi32> to vector<8x16xf32>
      %cst_126 = arith.constant dense<0.000000e+00> : vector<8x128xf32>
      %370 = tpu.matmul %369, %4, %cst_126 {dimension_numbers = #tpu.dot_dimension_numbers<[1], [0], [0], [1], [0, 0, 1, 1], [], []>} : vector<8x16xf32>, vector<16x128xf32>, vector<8x128xf32> -> vector<8x128xf32>
      scf.yield %370 : vector<8x128xf32>
    }
    %cst_103 = arith.constant dense<0.000000e+00> : vector<8x128xf32>
    %279 = tpu.matmul %251, %5, %cst_103 {dimension_numbers = #tpu.dot_dimension_numbers<[1], [0], [0], [1], [0, 0, 1, 1], [], []>} : vector<8x32xf32>, vector<32x128xf32>, vector<8x128xf32> -> vector<8x128xf32>
    %280 = arith.addf %278, %279 : vector<8x128xf32>
    %281 = math.tanh %280 : vector<8x128xf32>
    %cst_104 = arith.constant 1.000000e+00 : f32
    %282 = vector.broadcast %cst_104 : f32 to vector<8x128xf32>
    %283 = arith.addf %281, %282 : vector<8x128xf32>
    %cst_105 = arith.constant 5.000000e-01 : f32
    %284 = vector.broadcast %cst_105 : f32 to vector<8x128xf32>
    %285 = arith.mulf %284, %283 : vector<8x128xf32>
    %286 = vector.extract_strided_slice %285 {offsets = [0, 0], sizes = [8, 32], strides = [1, 1]} : vector<8x128xf32> to vector<8x32xf32>
    %287 = vector.extract_strided_slice %285 {offsets = [0, 32], sizes = [8, 32], strides = [1, 1]} : vector<8x128xf32> to vector<8x32xf32>
    %288 = vector.extract_strided_slice %281 {offsets = [0, 64], sizes = [8, 32], strides = [1, 1]} : vector<8x128xf32> to vector<8x32xf32>
    %289 = vector.extract_strided_slice %285 {offsets = [0, 96], sizes = [8, 32], strides = [1, 1]} : vector<8x128xf32> to vector<8x32xf32>
    %290 = arith.mulf %287, %249 : vector<8x32xf32>
    %291 = arith.mulf %286, %288 : vector<8x32xf32>
    %292 = arith.addf %290, %291 : vector<8x32xf32>
    %293 = math.tanh %292 : vector<8x32xf32>
    %294 = arith.mulf %289, %293 : vector<8x32xf32>
    %295 = tpu.concatenate %294, %268 in 1 : vector<8x32xf32>, vector<8x32xf32> -> vector<8x64xf32>
    %cst_106 = arith.constant dense<0.000000e+00> : vector<8x128xf32>
    %296 = tpu.matmul %295, %0, %cst_106 {dimension_numbers = #tpu.dot_dimension_numbers<[1], [0], [0], [1], [0, 0, 1, 1], [], []>} : vector<8x64xf32>, vector<64x128xf32>, vector<8x128xf32> -> vector<8x128xf32>
    %297 = arith.addf %296, %7 : vector<8x128xf32>
    %298 = math.tanh %297 : vector<8x128xf32>
    %cst_107 = arith.constant 1.000000e+00 : f32
    %299 = vector.broadcast %cst_107 : f32 to vector<8x128xf32>
    %300 = arith.addf %298, %299 : vector<8x128xf32>
    %cst_108 = arith.constant 5.000000e-01 : f32
    %301 = vector.broadcast %cst_108 : f32 to vector<8x128xf32>
    %302 = arith.mulf %301, %300 : vector<8x128xf32>
    %303 = vector.extract_strided_slice %302 {offsets = [0, 0], sizes = [8, 32], strides = [1, 1]} : vector<8x128xf32> to vector<8x32xf32>
    %304 = vector.extract_strided_slice %302 {offsets = [0, 32], sizes = [8, 32], strides = [1, 1]} : vector<8x128xf32> to vector<8x32xf32>
    %305 = vector.extract_strided_slice %298 {offsets = [0, 64], sizes = [8, 32], strides = [1, 1]} : vector<8x128xf32> to vector<8x32xf32>
    %306 = vector.extract_strided_slice %302 {offsets = [0, 96], sizes = [8, 32], strides = [1, 1]} : vector<8x128xf32> to vector<8x32xf32>
    %307 = arith.mulf %304, %266 : vector<8x32xf32>
    %308 = arith.mulf %303, %305 : vector<8x32xf32>
    %309 = arith.addf %307, %308 : vector<8x32xf32>
    %310 = math.tanh %309 : vector<8x32xf32>
    %311 = arith.mulf %306, %310 : vector<8x32xf32>
    %cst_109 = arith.constant dense<0.000000e+00> : vector<8x16xf32>
    %312 = tpu.matmul %311, %2, %cst_109 {dimension_numbers = #tpu.dot_dimension_numbers<[1], [0], [0], [1], [0, 0, 1, 1], [], []>} : vector<8x32xf32>, vector<32x16xf32>, vector<8x16xf32> -> vector<8x16xf32>
    %313 = arith.addf %312, %9 : vector<8x16xf32>
    %c0_110 = arith.constant 0 : index
    %c96 = arith.constant 96 : index
    %314 = vector.load %arg10[%c0_110, %c96] : memref<8x128xf32, #tpu.memory_space<vmem>>, vector<8x16xf32>
    tpu.vector_store %arg10[%c0_110, %c96], %313 {strides = array<i32>} : memref<8x128xf32, #tpu.memory_space<vmem>>, vector<8x16xf32>,
    %c7 = arith.constant 7 : index
    %c0_111 = arith.constant 0 : index
    %c0_112 = arith.constant 0 : index
    %315 = vector.load %arg1[%c7, %c0_111, %c0_112] : memref<8x8x128xf32, #tpu.memory_space<vmem>>, vector<1x8x128xf32>
    %316 = vector.shape_cast %315 : vector<1x8x128xf32> to vector<8x128xf32>
    %c7_113 = arith.constant 7 : index
    %317 = memref.load %arg0[%c7_113] : memref<8xi32, #tpu.memory_space<smem>>
    %c0_i32_114 = arith.constant 0 : i32
    %318 = arith.cmpi ne, %317, %c0_i32_114 : i32
    %319 = arith.extui %318 : i1 to i32
    %c0_i32_115 = arith.constant 0 : i32
    %320 = arith.cmpi ne, %319, %c0_i32_115 : i32
    %321 = scf.if %320 -> (vector<8x128xf32>) {
      scf.yield %316 : vector<8x128xf32>
    } else {
      %cst_124 = arith.constant dense<0xFF800000> : vector<8xf32>
      %358 = vector.multi_reduction <maximumf>, %313, %cst_124 [1] : vector<8x16xf32> to vector<8xf32>
      %359 = vector.shape_cast %358 : vector<8xf32> to vector<8x1xf32>
      %360 = vector.broadcast %359 : vector<8x1xf32> to vector<8x16xf32>
      %361 = arith.cmpf oeq, %313, %360 : vector<8x16xf32>
      %c16_i32 = arith.constant 16 : i32
      %362 = vector.broadcast %c16_i32 : i32 to vector<8x16xi32>
      %363 = arith.select %361, %18, %362 : vector<8x16xi1>, vector<8x16xi32>
      %cst_125 = arith.constant dense<2147483647> : vector<8xi32>
      %364 = vector.multi_reduction <minsi>, %363, %cst_125 [1] : vector<8x16xi32> to vector<8xi32>
      %365 = vector.shape_cast %364 : vector<8xi32> to vector<8x1xi32>
      %366 = vector.broadcast %365 : vector<8x1xi32> to vector<8x16xi32>
      %367 = arith.cmpi eq, %18, %366 : vector<8x16xi32>
      %368 = arith.extui %367 : vector<8x16xi1> to vector<8x16xi32>
      %369 = arith.sitofp %368 : vector<8x16xi32> to vector<8x16xf32>
      %cst_126 = arith.constant dense<0.000000e+00> : vector<8x128xf32>
      %370 = tpu.matmul %369, %4, %cst_126 {dimension_numbers = #tpu.dot_dimension_numbers<[1], [0], [0], [1], [0, 0, 1, 1], [], []>} : vector<8x16xf32>, vector<16x128xf32>, vector<8x128xf32> -> vector<8x128xf32>
      scf.yield %370 : vector<8x128xf32>
    }
    %cst_116 = arith.constant dense<0.000000e+00> : vector<8x128xf32>
    %322 = tpu.matmul %294, %5, %cst_116 {dimension_numbers = #tpu.dot_dimension_numbers<[1], [0], [0], [1], [0, 0, 1, 1], [], []>} : vector<8x32xf32>, vector<32x128xf32>, vector<8x128xf32> -> vector<8x128xf32>
    %323 = arith.addf %321, %322 : vector<8x128xf32>
    %324 = math.tanh %323 : vector<8x128xf32>
    %cst_117 = arith.constant 1.000000e+00 : f32
    %325 = vector.broadcast %cst_117 : f32 to vector<8x128xf32>
    %326 = arith.addf %324, %325 : vector<8x128xf32>
    %cst_118 = arith.constant 5.000000e-01 : f32
    %327 = vector.broadcast %cst_118 : f32 to vector<8x128xf32>
    %328 = arith.mulf %327, %326 : vector<8x128xf32>
    %329 = vector.extract_strided_slice %328 {offsets = [0, 0], sizes = [8, 32], strides = [1, 1]} : vector<8x128xf32> to vector<8x32xf32>
    %330 = vector.extract_strided_slice %328 {offsets = [0, 32], sizes = [8, 32], strides = [1, 1]} : vector<8x128xf32> to vector<8x32xf32>
    %331 = vector.extract_strided_slice %324 {offsets = [0, 64], sizes = [8, 32], strides = [1, 1]} : vector<8x128xf32> to vector<8x32xf32>
    %332 = vector.extract_strided_slice %328 {offsets = [0, 96], sizes = [8, 32], strides = [1, 1]} : vector<8x128xf32> to vector<8x32xf32>
    %333 = arith.mulf %330, %292 : vector<8x32xf32>
    %334 = arith.mulf %329, %331 : vector<8x32xf32>
    %335 = arith.addf %333, %334 : vector<8x32xf32>
    %336 = math.tanh %335 : vector<8x32xf32>
    %337 = arith.mulf %332, %336 : vector<8x32xf32>
    %338 = tpu.concatenate %337, %311 in 1 : vector<8x32xf32>, vector<8x32xf32> -> vector<8x64xf32>
    %cst_119 = arith.constant dense<0.000000e+00> : vector<8x128xf32>
    %339 = tpu.matmul %338, %0, %cst_119 {dimension_numbers = #tpu.dot_dimension_numbers<[1], [0], [0], [1], [0, 0, 1, 1], [], []>} : vector<8x64xf32>, vector<64x128xf32>, vector<8x128xf32> -> vector<8x128xf32>
    %340 = arith.addf %339, %7 : vector<8x128xf32>
    %341 = math.tanh %340 : vector<8x128xf32>
    %cst_120 = arith.constant 1.000000e+00 : f32
    %342 = vector.broadcast %cst_120 : f32 to vector<8x128xf32>
    %343 = arith.addf %341, %342 : vector<8x128xf32>
    %cst_121 = arith.constant 5.000000e-01 : f32
    %344 = vector.broadcast %cst_121 : f32 to vector<8x128xf32>
    %345 = arith.mulf %344, %343 : vector<8x128xf32>
    %346 = vector.extract_strided_slice %345 {offsets = [0, 0], sizes = [8, 32], strides = [1, 1]} : vector<8x128xf32> to vector<8x32xf32>
    %347 = vector.extract_strided_slice %345 {offsets = [0, 32], sizes = [8, 32], strides = [1, 1]} : vector<8x128xf32> to vector<8x32xf32>
    %348 = vector.extract_strided_slice %341 {offsets = [0, 64], sizes = [8, 32], strides = [1, 1]} : vector<8x128xf32> to vector<8x32xf32>
    %349 = vector.extract_strided_slice %345 {offsets = [0, 96], sizes = [8, 32], strides = [1, 1]} : vector<8x128xf32> to vector<8x32xf32>
    %350 = arith.mulf %347, %309 : vector<8x32xf32>
    %351 = arith.mulf %346, %348 : vector<8x32xf32>
    %352 = arith.addf %350, %351 : vector<8x32xf32>
    %353 = math.tanh %352 : vector<8x32xf32>
    %354 = arith.mulf %349, %353 : vector<8x32xf32>
    %cst_122 = arith.constant dense<0.000000e+00> : vector<8x16xf32>
    %355 = tpu.matmul %354, %2, %cst_122 {dimension_numbers = #tpu.dot_dimension_numbers<[1], [0], [0], [1], [0, 0, 1, 1], [], []>} : vector<8x32xf32>, vector<32x16xf32>, vector<8x16xf32> -> vector<8x16xf32>
    %356 = arith.addf %355, %9 : vector<8x16xf32>
    %c0_123 = arith.constant 0 : index
    %c112 = arith.constant 112 : index
    %357 = vector.load %arg10[%c0_123, %c112] : memref<8x128xf32, #tpu.memory_space<vmem>>, vector<8x16xf32>
    tpu.vector_store %arg10[%c0_123, %c112], %356 {strides = array<i32>} : memref<8x128xf32, #tpu.memory_space<vmem>>, vector<8x16xf32>,
    return
  }
}

</mosaic_0001>

<llo_original>
// kernel: tpu_custom_call.1
$region0: #{tpu_custom_call.1}
  #allocation0 [shape = 'u32[]', space=smem, size = 0x4, offset = 0x4, fixed_abs, tag = 'smem constant byte address 0x4 - core index']
  #allocation1 [shape = 'u32[144,128]{1,0:T(1,128)}', space=vmem, size = 0x12000, scoped, tag = 'internal scratch']
  %s0 = inlined_call_operand.vmem [shape: s32[8], index: 0, kind: input, shape index: {}]
  %s1 = inlined_call_operand.hbm [shape: f32[8,8,128], index: 1, kind: input, shape index: {}]
  %s2 = inlined_call_operand.hbm [shape: f32[2,8,32], index: 2, kind: input, shape index: {}]
  %s3 = inlined_call_operand.hbm [shape: f32[2,8,32], index: 3, kind: input, shape index: {}]
  %s4 = inlined_call_operand.hbm [shape: f32[16,128], index: 4, kind: input, shape index: {}]
  %s5 = inlined_call_operand.hbm [shape: f32[32,128], index: 5, kind: input, shape index: {}]
  %s6 = inlined_call_operand.vmem [shape: f32[64,128], index: 6, kind: input, shape index: {}]
  %s7 = inlined_call_operand.vmem [shape: f32[1,128], index: 7, kind: input, shape index: {}]
  %s8 = inlined_call_operand.vmem [shape: f32[32,16], index: 8, kind: input, shape index: {}]
  %s9 = inlined_call_operand.vmem [shape: f32[1,16], index: 9, kind: input, shape index: {}]
  %s10 = inlined_call_operand.hbm [shape: f32[8,128], index: 10, kind: output, shape index: {}]
  %s11 = sld [smem:[#allocation0]]
  $region130: #{tpu_custom_call.1} parent=0
    _
  %s13 = ssub.s32 1, %s11
  %s14 = scalar_select 0, %s13, %s11
  $region1: #{tpu_custom_call.1} parent=0
    #allocation2 [shape = 'u8[512]{0}', space=smem, size = 0x200, scoped, tag = 'input window, operand 0, single buffered']
    #allocation3 [shape = 's32[1]{0}', space=sflag, size = 0x4, scoped, tag = 'scoped memory for tpu_custom_call.1']
    #allocation4 [shape = 's32[1]{0}', space=sflag, size = 0x4, scoped, tag = 'scoped memory for tpu_custom_call.1']
    #allocation5 [shape = 's32[1]{0}', space=sflag, size = 0x4, scoped, tag = 'scoped memory for tpu_custom_call.1']
    #allocation6 [shape = 'u8[32768]{0}', space=vmem, size = 0x8000, scoped, tag = 'input window, operand 1, single buffered']
    #allocation7 [shape = 'u8[8192]{0}', space=vmem, size = 0x2000, scoped, tag = 'input window, operand 2, single buffered']
    #allocation8 [shape = 's32[1]{0}', space=sflag, size = 0x4, scoped, tag = 'scoped memory for tpu_custom_call.1']
    #allocation9 [shape = 'u8[8192]{0}', space=vmem, size = 0x2000, scoped, tag = 'input window, operand 3, single buffered']
    #allocation10 [shape = 'u8[8192]{0}', space=vmem, size = 0x2000, scoped, tag = 'input window, operand 4, single buffered']
    #allocation11 [shape = 's32[1]{0}', space=sflag, size = 0x4, scoped, tag = 'scoped memory for tpu_custom_call.1']
    #allocation12 [shape = 'u8[16384]{0}', space=vmem, size = 0x4000, scoped, tag = 'input window, operand 5, single buffered']
    #allocation13 [shape = 'u8[4096]{0}', space=vmem, size = 0x1000, scoped, tag = 'output window, operand 0, single buffered']
    %15 = vsyncpa [#allocation5], 0
    %16 = vsyncpa [#allocation3], 0
    %17 = vsyncpa [#allocation8], 0
    %18 = vsyncpa [#allocation11], 0
    %19 = vsyncpa [#allocation4], 0
    // Predicated region
    $region2: #{tpu_custom_call.1} parent=1 // pred_check
      _
    $region3: #{tpu_custom_call.1} parent=1 // pred_check_branch
      %21 = sbr.rel (0) target = $region5
    $region4: #{tpu_custom_call.1} parent=1 // pred_region
      %s23 = ssub.s32 16, 16
      %24 = vsyncadd [#allocation5], %s23
      %s26 = sshll.u32 %s0, 4
      %s27 = int_to_ptr.vmem [resolvable:$true] %s26
      %29 = dma.vmem_to_smem %s27, 16, [#allocation2], [#allocation5]
    $region5: #{tpu_custom_call.1} parent=1 // pred_fallthru
      _
    // Predicated region
    $region6: #{tpu_custom_call.1} parent=1 // pred_check
      _
    $region7: #{tpu_custom_call.1} parent=1 // pred_check_branch
      %31 = sbr.rel (0) target = $region9
    $region8: #{tpu_custom_call.1} parent=1 // pred_region
      %s33 = ssub.s32 1024, 1024
      %34 = vsyncadd [#allocation3], %s33
      %s35 = sshll.u32 [#allocation6], 4
      %s36 = int_to_ptr.vmem [resolvable:$true] %s35
      %41 = dma.hbm_to_vmem [thread:$0]  %s1, 1024, %s36, [#allocation3], 128, 128, 8
    $region9: #{tpu_custom_call.1} parent=1 // pred_fallthru
      _
    // Predicated region
    $region10: #{tpu_custom_call.1} parent=1 // pred_check
      _
    $region11: #{tpu_custom_call.1} parent=1 // pred_check_branch
      %43 = sbr.rel (0) target = $region13
    $region12: #{tpu_custom_call.1} parent=1 // pred_region
      %s45 = ssub.s32 256, 256
      %46 = vsyncadd [#allocation8], %s45
      %s47 = sshll.u32 [#allocation7], 4
      %s48 = int_to_ptr.vmem [resolvable:$true] %s47
      %53 = dma.hbm_to_vmem [thread:$0]  %s2, 256, %s48, [#allocation8], 128, 128, 8
    $region13: #{tpu_custom_call.1} parent=1 // pred_fallthru
      _
    // Predicated region
    $region14: #{tpu_custom_call.1} parent=1 // pred_check
      _
    $region15: #{tpu_custom_call.1} parent=1 // pred_check_branch
      %55 = sbr.rel (0) target = $region17
    $region16: #{tpu_custom_call.1} parent=1 // pred_region
      %s57 = ssub.s32 256, 256
      %58 = vsyncadd [#allocation8], %s57
      %s59 = sshll.u32 [#allocation9], 4
      %s60 = int_to_ptr.vmem [resolvable:$true] %s59
      %65 = dma.hbm_to_vmem [thread:$0]  %s3, 256, %s60, [#allocation8], 128, 128, 8
    $region17: #{tpu_custom_call.1} parent=1 // pred_fallthru
      _
    // Predicated region
    $region18: #{tpu_custom_call.1} parent=1 // pred_check
      _
    $region19: #{tpu_custom_call.1} parent=1 // pred_check_branch
      %67 = sbr.rel (0) target = $region21
    $region20: #{tpu_custom_call.1} parent=1 // pred_region
      %s69 = ssub.s32 256, 256
      %70 = vsyncadd [#allocation11], %s69
      %s71 = sshll.u32 [#allocation10], 4
      %s72 = int_to_ptr.vmem [resolvable:$true] %s71
      %77 = dma.hbm_to_vmem [thread:$0]  %s4, 256, %s72, [#allocation11], 128, 128, 8
    $region21: #{tpu_custom_call.1} parent=1 // pred_fallthru
      _
    // Predicated region
    $region22: #{tpu_custom_call.1} parent=1 // pred_check
      _
    $region23: #{tpu_custom_call.1} parent=1 // pred_check_branch
      %79 = sbr.rel (0) target = $region25
    $region24: #{tpu_custom_call.1} parent=1 // pred_region
      %s81 = ssub.s32 512, 512
      %82 = vsyncadd [#allocation11], %s81
      %s83 = sshll.u32 [#allocation12], 4
      %s84 = int_to_ptr.vmem [resolvable:$true] %s83
      %89 = dma.hbm_to_vmem [thread:$0]  %s5, 512, %s84, [#allocation11], 128, 128, 8
    $region25: #{tpu_custom_call.1} parent=1 // pred_fallthru
      _
    // Predicated region
    $region26: #{tpu_custom_call.1} parent=1 // pred_check
      _
    $region27: #{tpu_custom_call.1} parent=1 // pred_check_branch
      %91 = sbr.rel (0) target = $region29
    $region28: #{tpu_custom_call.1} parent=1 // pred_region
      _
    $region29: #{tpu_custom_call.1} parent=1 // pred_fallthru
      _
    // Predicated region
    $region30: #{tpu_custom_call.1} parent=1 // pred_check
      _
    $region31: #{tpu_custom_call.1} parent=1 // pred_check_branch
      %93 = sbr.rel (0) target = $region33
    $region32: #{tpu_custom_call.1} parent=1 // pred_region
      _
    $region33: #{tpu_custom_call.1} parent=1 // pred_fallthru
      _
    // Predicated region
    $region34: #{tpu_custom_call.1} parent=1 // pred_check
      _
    $region35: #{tpu_custom_call.1} parent=1 // pred_check_branch
      %95 = sbr.rel (0) target = $region37
    $region36: #{tpu_custom_call.1} parent=1 // pred_region
      _
    $region37: #{tpu_custom_call.1} parent=1 // pred_fallthru
      _
    // Predicated region
    $region38: #{tpu_custom_call.1} parent=1 // pred_check
      _
    $region39: #{tpu_custom_call.1} parent=1 // pred_check_branch
      %97 = sbr.rel (0) target = $region41
    $region40: #{tpu_custom_call.1} parent=1 // pred_region
      _
    $region41: #{tpu_custom_call.1} parent=1 // pred_fallthru
      _
    // Predicated region
    $region42: #{tpu_custom_call.1} parent=1 // pred_check
      _
    $region43: #{tpu_custom_call.1} parent=1 // pred_check_branch
      %99 = sbr.rel (0) target = $region45
    $region44: #{tpu_custom_call.1} parent=1 // pred_region
      %100 = dma.done [#allocation5], 16
    $region45: #{tpu_custom_call.1} parent=1 // pred_fallthru
      _
    // Predicated region
    $region46: #{tpu_custom_call.1} parent=1 // pred_check
      _
    $region47: #{tpu_custom_call.1} parent=1 // pred_check_branch
      %102 = sbr.rel (0) target = $region49
    $region48: #{tpu_custom_call.1} parent=1 // pred_region
      %103 = dma.done [#allocation3], 1024
    $region49: #{tpu_custom_call.1} parent=1 // pred_fallthru
      _
    // Predicated region
    $region50: #{tpu_custom_call.1} parent=1 // pred_check
      _
    $region51: #{tpu_custom_call.1} parent=1 // pred_check_branch
      %105 = sbr.rel (0) target = $region53
    $region52: #{tpu_custom_call.1} parent=1 // pred_region
      %106 = dma.done [#allocation8], 256
    $region53: #{tpu_custom_call.1} parent=1 // pred_fallthru
      _
    // Predicated region
    $region54: #{tpu_custom_call.1} parent=1 // pred_check
      _
    $region55: #{tpu_custom_call.1} parent=1 // pred_check_branch
      %108 = sbr.rel (0) target = $region57
    $region56: #{tpu_custom_call.1} parent=1 // pred_region
      %109 = dma.done [#allocation8], 256
    $region57: #{tpu_custom_call.1} parent=1 // pred_fallthru
      _
    // Predicated region
    $region58: #{tpu_custom_call.1} parent=1 // pred_check
      _
    $region59: #{tpu_custom_call.1} parent=1 // pred_check_branch
      %111 = sbr.rel (0) target = $region61
    $region60: #{tpu_custom_call.1} parent=1 // pred_region
      %112 = dma.done [#allocation11], 256
    $region61: #{tpu_custom_call.1} parent=1 // pred_fallthru
      _
    // Predicated region
    $region62: #{tpu_custom_call.1} parent=1 // pred_check
      _
    $region63: #{tpu_custom_call.1} parent=1 // pred_check_branch
      %114 = sbr.rel (0) target = $region65
    $region64: #{tpu_custom_call.1} parent=1 // pred_region
      %115 = dma.done [#allocation11], 512
    $region65: #{tpu_custom_call.1} parent=1 // pred_fallthru
      _
    %116 = sfence
    %v117 = vld [vmem:[%s6] sm:$0xff]
    %v118 = vld [vmem:[%s6 + $0x8] sm:$0xff]
    %v119 = vld [vmem:[%s6 + $0x10] sm:$0xff]
    %v120 = vld [vmem:[%s6 + $0x18] sm:$0xff]
    %v121 = vld [vmem:[%s6 + $0x20] sm:$0xff]
    %v122 = vld [vmem:[%s6 + $0x28] sm:$0xff]
    %v123 = vld [vmem:[%s6 + $0x30] sm:$0xff]
    %v124 = vld [vmem:[%s6 + $0x38] sm:$0xff]
    %v125 = vld [vmem:[%s7] sm:$0x1]
    %v126 = vld [vmem:[%s8] sm:$0xff]
    %v127 = vld [vmem:[%s8 + $0x8] sm:$0xff]
    %v128 = vld [vmem:[%s8 + $0x10] sm:$0xff]
    %v129 = vld [vmem:[%s8 + $0x18] sm:$0xff]
    %v130 = vld [vmem:[%s9] sm:$0x1]
    %v131 = vld [vmem:[#allocation10] sm:$0xff]
    %v132 = vld [vmem:[#allocation10 + $0x8] sm:$0xff]
    %v133 = vld [vmem:[#allocation12] sm:$0xff]
    %v134 = vld [vmem:[#allocation12 + $0x8] sm:$0xff]
    %v135 = vld [vmem:[#allocation12 + $0x10] sm:$0xff]
    %v136 = vld [vmem:[#allocation12 + $0x18] sm:$0xff]
    %v138 = vlaneseq
    %v139 = vshrl.u32 %v138, 7
    %v140 = vsub.s32 0, %v139
    %v141 = vrot.slane %v125, %v140
    %v144 = vlaneseq
    %v145 = vshrl.u32 %v144, 7
    %v146 = vsub.s32 0, %v145
    %v147 = vrot.slane %v130, %v146
    %v149 = vld [vmem:[#allocation7] sm:$0xff]
    %s150 = scalar_lea.vmem [#allocation7], 8
    %v151 = vld [vmem:[%s150] sm:$0xff]
    %v152 = vld [vmem:[#allocation9] sm:$0xff]
    %s153 = scalar_lea.vmem [#allocation9], 8
    %v154 = vld [vmem:[%s153] sm:$0xff]
    %v155 = vlaneseq
    %v156 = vand.u32 %v155, 127
    %v157 = vld [vmem:[#allocation6] sm:$0xff]
    %vm158 = vcmask 261120
    %v160 = vsel %vm158, %v149, 0
    %162 = vmatprep.subr.mxu0 0.0
    %163 = vmatpush1.msra.mxu0 %v133
    %164 = vmatprep.subr.mxu0 0.0
    %165 = vmatpush1.msra.mxu0 %v134
    %166 = vmatprep.subr.mxu0 0.0
    %167 = vmatpush1.msra.mxu0 %v135
    %168 = vmatprep.subr.mxu0 0.0
    %169 = vmatpush1.msra.mxu0 %v136
    %170 = vmatprep.subr.mxu0 0.0
    %171 = vmatpush1.msra.mxu0 0.0
    %172 = vmatprep.subr.mxu0 0.0
    %173 = vmatpush1.msra.mxu0 0.0
    %174 = vmatprep.subr.mxu0 0.0
    %175 = vmatpush1.msra.mxu0 0.0
    %176 = vmatprep.subr.mxu0 0.0
    %177 = vmatpush1.msra.mxu0 0.0
    %178 = vmatprep.subr.mxu0 0.0
    %179 = vmatpush1.msra.mxu0 0.0
    %180 = vmatprep.subr.mxu0 0.0
    %181 = vmatpush1.msra.mxu0 0.0
    %182 = vmatprep.subr.mxu0 0.0
    %183 = vmatpush1.msra.mxu0 0.0
    %184 = vmatprep.subr.mxu0 0.0
    %185 = vmatpush1.msra.mxu0 0.0
    %186 = vmatprep.subr.mxu0 0.0
    %187 = vmatpush1.msra.mxu0 0.0
    %188 = vmatprep.subr.mxu0 0.0
    %189 = vmatpush1.msra.mxu0 0.0
    %190 = vmatprep.subr.mxu0 0.0
    %191 = vmatpush1.msra.mxu0 0.0
    %192 = vmatprep.subr.mxu0 0.0
    %193 = vmatpush1.msra.mxu0 0.0
    %194 = vmatprep.subr.mxu0 0.0
    %195 = vmatpush1.msra.mxu0 0.0
    %196 = vmatprep.subr.mxu0 0.0
    %197 = vmatpush1.msra.mxu0 0.0
    %198 = vmatprep.subr.mxu0 0.0
    %199 = vmatpush1.msra.mxu0 0.0
    %200 = vmatprep.subr.mxu0 0.0
    %201 = vmatpush1.msra.mxu0 0.0
    %202 = vmatprep.subr.mxu0 0.0
    %203 = vmatpush1.msra.mxu0 0.0
    %204 = vmatprep.subr.mxu0 0.0
    %205 = vmatpush1.msra.mxu0 0.0
    %206 = vmatprep.subr.mxu0 0.0
    %207 = vmatpush1.msra.mxu0 0.0
    %208 = vmatprep.subr.mxu0 0.0
    %209 = vmatpush1.msra.mxu0 0.0
    %210 = vmatprep.subr.mxu0 0.0
    %211 = vmatpush1.msra.mxu0 0.0
    %212 = vmatprep.subr.mxu0 0.0
    %213 = vmatpush1.msra.mxu0 0.0
    %214 = vmatprep.subr.mxu0 0.0
    %215 = vmatpush1.msra.mxu0 0.0
    %216 = vmatprep.subr.mxu0 0.0
    %217 = vmatpush1.msra.mxu0 0.0
    %218 = vmatprep.subr.mxu0 0.0
    %219 = vmatpush1.msra.mxu0 0.0
    %220 = vmatprep.subr.mxu0 0.0
    %221 = vmatpush1.msra.mxu0 0.0
    %222 = vmatprep.subr.mxu0 0.0
    %223 = vmatpush1.msra.mxu0 0.0
    %224 = vmatprep.subr.mxu0 0.0
    %225 = vmatpush1.msra.mxu0 0.0
    %226 = vmatprep.mubr.f32.mxu0 0.0
    %227 = vmatmul.mubr.f32.gmra.mrb[0].mxu0 %v160
    %v228 = vpop.f32.mrb[0].mxu0
    %v229 = vadd.f32 0.0, %v228
    %v230 = vpop.f32.mrb[0].mxu0
    %231 = vdwg.mxu0
    %v232 = vadd.f32 %v157, %v229
    %v233 = vtanh.pop %v232
    %v234 = vadd.f32 %v233, 1.0
    %v235 = vmul.f32 %v234, 0.5
    %237 = vrot.lane.b32.xlu0 %v152, 32
    %v238 = vpop.permute.xlu0 %237
    %v240 = vmul.f32 %v235, %v238
    %242 = vrot.lane.b32.xlu0 %v233, 64
    %v243 = vpop.permute.xlu0 %242
    %v245 = vmul.f32 %v235, %v243
    %247 = vrot.lane.b32.xlu0 %v245, 32
    %v248 = vpop.permute.xlu0 %247
    %v250 = vadd.f32 %v240, %v248
    %v251 = vtanh.pop %v250
    %253 = vrot.lane.b32.xlu0 %v251, 64
    %v254 = vpop.permute.xlu0 %253
    %v256 = vmul.f32 %v235, %v254
    %258 = vrot.lane.b32.xlu0 %v256, 32
    %v259 = vpop.permute.xlu0 %258
    %262 = vrot.lane.b32.xlu0 %v151, 32
    %v263 = vpop.permute.xlu0 %262
    %v265 = vsel %vm158, %v259, %v263
    %vm266 = vcmask 523264
    %v268 = vsel %vm266, %v265, 0
    %270 = vmatprep.subr.mxu0 0.0
    %271 = vmatpush1.msra.mxu0 %v117
    %272 = vmatprep.subr.mxu0 0.0
    %273 = vmatpush1.msra.mxu0 %v118
    %274 = vmatprep.subr.mxu0 0.0
    %275 = vmatpush1.msra.mxu0 %v119
    %276 = vmatprep.subr.mxu0 0.0
    %277 = vmatpush1.msra.mxu0 %v120
    %278 = vmatprep.subr.mxu0 0.0
    %279 = vmatpush1.msra.mxu0 %v121
    %280 = vmatprep.subr.mxu0 0.0
    %281 = vmatpush1.msra.mxu0 %v122
    %282 = vmatprep.subr.mxu0 0.0
    %283 = vmatpush1.msra.mxu0 %v123
    %284 = vmatprep.subr.mxu0 0.0
    %285 = vmatpush1.msra.mxu0 %v124
    %286 = vmatprep.subr.mxu0 0.0
    %287 = vmatpush1.msra.mxu0 0.0
    %288 = vmatprep.subr.mxu0 0.0
    %289 = vmatpush1.msra.mxu0 0.0
    %290 = vmatprep.subr.mxu0 0.0
    %291 = vmatpush1.msra.mxu0 0.0
    %292 = vmatprep.subr.mxu0 0.0
    %293 = vmatpush1.msra.mxu0 0.0
    %294 = vmatprep.subr.mxu0 0.0
    %295 = vmatpush1.msra.mxu0 0.0
    %296 = vmatprep.subr.mxu0 0.0
    %297 = vmatpush1.msra.mxu0 0.0
    %298 = vmatprep.subr.mxu0 0.0
    %299 = vmatpush1.msra.mxu0 0.0
    %300 = vmatprep.subr.mxu0 0.0
    %301 = vmatpush1.msra.mxu0 0.0
    %302 = vmatprep.subr.mxu0 0.0
    %303 = vmatpush1.msra.mxu0 0.0
    %304 = vmatprep.subr.mxu0 0.0
    %305 = vmatpush1.msra.mxu0 0.0
    %306 = vmatprep.subr.mxu0 0.0
    %307 = vmatpush1.msra.mxu0 0.0
    %308 = vmatprep.subr.mxu0 0.0
    %309 = vmatpush1.msra.mxu0 0.0
    %310 = vmatprep.subr.mxu0 0.0
    %311 = vmatpush1.msra.mxu0 0.0
    %312 = vmatprep.subr.mxu0 0.0
    %313 = vmatpush1.msra.mxu0 0.0
    %314 = vmatprep.subr.mxu0 0.0
    %315 = vmatpush1.msra.mxu0 0.0
    %316 = vmatprep.subr.mxu0 0.0
    %317 = vmatpush1.msra.mxu0 0.0
    %318 = vmatprep.subr.mxu0 0.0
    %319 = vmatpush1.msra.mxu0 0.0
    %320 = vmatprep.subr.mxu0 0.0
    %321 = vmatpush1.msra.mxu0 0.0
    %322 = vmatprep.subr.mxu0 0.0
    %323 = vmatpush1.msra.mxu0 0.0
    %324 = vmatprep.subr.mxu0 0.0
    %325 = vmatpush1.msra.mxu0 0.0
    %326 = vmatprep.subr.mxu0 0.0
    %327 = vmatpush1.msra.mxu0 0.0
    %328 = vmatprep.subr.mxu0 0.0
    %329 = vmatpush1.msra.mxu0 0.0
    %330 = vmatprep.subr.mxu0 0.0
    %331 = vmatpush1.msra.mxu0 0.0
    %332 = vmatprep.subr.mxu0 0.0
    %333 = vmatpush1.msra.mxu0 0.0
    %334 = vmatprep.mubr.f32.mxu0 0.0
    %335 = vmatmul.mubr.f32.gmra.mrb[0].mxu0 %v268
    %v336 = vpop.f32.mrb[0].mxu0
    %v337 = vadd.f32 %v141, %v336
    %v338 = vpop.f32.mrb[0].mxu0
    %339 = vdwg.mxu0
    %v340 = vtanh.pop %v337
    %v341 = vadd.f32 %v340, 1.0
    %v342 = vmul.f32 %v341, 0.5
    %344 = vrot.lane.b32.xlu0 %v154, 32
    %v345 = vpop.permute.xlu0 %344
    %v347 = vmul.f32 %v342, %v345
    %349 = vrot.lane.b32.xlu0 %v340, 64
    %v350 = vpop.permute.xlu0 %349
    %v352 = vmul.f32 %v342, %v350
    %354 = vrot.lane.b32.xlu0 %v352, 32
    %v355 = vpop.permute.xlu0 %354
    %v357 = vadd.f32 %v347, %v355
    %v358 = vtanh.pop %v357
    %360 = vrot.lane.b32.xlu0 %v358, 64
    %v361 = vpop.permute.xlu0 %360
    %v363 = vmul.f32 %v342, %v361
    %365 = vrot.lane.b32.xlu0 %v363, 32
    %v366 = vpop.permute.xlu0 %365
    %v367 = vsel %vm158, %v366, 0
    %369 = vmatprep.subr.mxu0 0.0
    %370 = vmatpush1.msra.mxu0 %v126
    %371 = vmatprep.subr.mxu0 0.0
    %372 = vmatpush1.msra.mxu0 %v127
    %373 = vmatprep.subr.mxu0 0.0
    %374 = vmatpush1.msra.mxu0 %v128
    %375 = vmatprep.subr.mxu0 0.0
    %376 = vmatpush1.msra.mxu0 %v129
    %377 = vmatprep.subr.mxu0 0.0
    %378 = vmatpush1.msra.mxu0 0.0
    %379 = vmatprep.subr.mxu0 0.0
    %380 = vmatpush1.msra.mxu0 0.0
    %381 = vmatprep.subr.mxu0 0.0
    %382 = vmatpush1.msra.mxu0 0.0
    %383 = vmatprep.subr.mxu0 0.0
    %384 = vmatpush1.msra.mxu0 0.0
    %385 = vmatprep.subr.mxu0 0.0
    %386 = vmatpush1.msra.mxu0 0.0
    %387 = vmatprep.subr.mxu0 0.0
    %388 = vmatpush1.msra.mxu0 0.0
    %389 = vmatprep.subr.mxu0 0.0
    %390 = vmatpush1.msra.mxu0 0.0
    %391 = vmatprep.subr.mxu0 0.0
    %392 = vmatpush1.msra.mxu0 0.0
    %393 = vmatprep.subr.mxu0 0.0
    %394 = vmatpush1.msra.mxu0 0.0
    %395 = vmatprep.subr.mxu0 0.0
    %396 = vmatpush1.msra.mxu0 0.0
    %397 = vmatprep.subr.mxu0 0.0
    %398 = vmatpush1.msra.mxu0 0.0
    %399 = vmatprep.subr.mxu0 0.0
    %400 = vmatpush1.msra.mxu0 0.0
    %401 = vmatprep.subr.mxu0 0.0
    %402 = vmatpush1.msra.mxu0 0.0
    %403 = vmatprep.subr.mxu0 0.0
    %404 = vmatpush1.msra.mxu0 0.0
    %405 = vmatprep.subr.mxu0 0.0
    %406 = vmatpush1.msra.mxu0 0.0
    %407 = vmatprep.subr.mxu0 0.0
    %408 = vmatpush1.msra.mxu0 0.0
    %409 = vmatprep.subr.mxu0 0.0
    %410 = vmatpush1.msra.mxu0 0.0
    %411 = vmatprep.subr.mxu0 0.0
    %412 = vmatpush1.msra.mxu0 0.0
    %413 = vmatprep.subr.mxu0 0.0
    %414 = vmatpush1.msra.mxu0 0.0
    %415 = vmatprep.subr.mxu0 0.0
    %416 = vmatpush1.msra.mxu0 0.0
    %417 = vmatprep.subr.mxu0 0.0
    %418 = vmatpush1.msra.mxu0 0.0
    %419 = vmatprep.subr.mxu0 0.0
    %420 = vmatpush1.msra.mxu0 0.0
    %421 = vmatprep.subr.mxu0 0.0
    %422 = vmatpush1.msra.mxu0 0.0
    %423 = vmatprep.subr.mxu0 0.0
    %424 = vmatpush1.msra.mxu0 0.0
    %425 = vmatprep.subr.mxu0 0.0
    %426 = vmatpush1.msra.mxu0 0.0
    %427 = vmatprep.subr.mxu0 0.0
    %428 = vmatpush1.msra.mxu0 0.0
    %429 = vmatprep.subr.mxu0 0.0
    %430 = vmatpush1.msra.mxu0 0.0
    %431 = vmatprep.subr.mxu0 0.0
    %432 = vmatpush1.msra.mxu0 0.0
    %433 = vmatprep.mubr.f32.mxu0 0.0
    %434 = vmatmul.mubr.f32.gmra.mrb[0].mxu0 %v367
    %v435 = vpop.f32.mrb[0].mxu0
    %v436 = vadd.f32 %v147, %v435
    %v437 = vpop.f32.mrb[0].mxu0
    %438 = vdwg.mxu0
    %vm439 = vcmask 130048
    %440 = vst.msk [vmem:[#allocation13] sm:$0xff] %vm439, %v436
    %s441 = scalar_lea.vmem [#allocation6], 8
    %v442 = vld [vmem:[%s441] sm:$0xff]
    %s443 = sld [smem:[#allocation2 + $0x1]]
    %p444 = scmp.ne.s32.totalorder %s443, 0
    // Predicated region
    $region66: #{tpu_custom_call.1} parent=1 // pred_check
      %p445 = pneg %p444
    $region67: #{tpu_custom_call.1} parent=1 // pred_check_branch
      %447 = sbr.rel (%p445) target = $region69
    $region68: #{tpu_custom_call.1} parent=1 // pred_region
      _
    $region69: #{tpu_custom_call.1} parent=1 // pred_fallthru
      _
    %p448 = pneg %p444
    // Predicated region
    $region70: #{tpu_custom_call.1} parent=1 // pred_check
      _
    $region71: #{tpu_custom_call.1} parent=1 // pred_check_branch
      %450 = sbr.rel (%p444) target = $region73
    $region72: #{tpu_custom_call.1} parent=1 // pred_region
      %v451 = vsel %vm439, %v436, -inf
      %452 = vmax.xlane.f32.xlu0 %v451
      %v453 = vpop.xlane.xlu0 %452
      %vm454 = vcmp.eq.f32.partialorder %v436, %v453
      %v455 = vsel %vm454, %v156, 16
      %v456 = vsel %vm439, %v455, 2147483647
      %v457 = vand.u32 %v456, 65535
      %v458 = vshra.s32 %v456, 16
      %v459 = vcvt.s32.f32 %v457
      %v460 = vcvt.s32.f32 %v458
      %461 = vmin.xlane.f32.xlu0 %v460
      %v462 = vpop.xlane.xlu0 %461
      %vm463 = vcmp.eq.f32.partialorder %v460, %v462
      %v464 = vsel %vm463, %v459, inf
      %465 = vmin.xlane.f32.xlu0 %v464
      %v466 = vpop.xlane.xlu0 %465
      %v467 = vcvt.f32.s32 %v466
      %v468 = vcvt.f32.s32 %v462
      %v469 = vshll.u32 %v468, 16
      %v470 = vadd.s32 %v469, %v467
      %vm471 = vcmp.eq.s32.totalorder %v156, %v470
      %v472 = vsel %vm471, 1, 0
      %v473 = vcvt.s32.f32 %v472
      %v475 = vsel %vm439, %v473, 0
      %477 = vmatprep.subr.mxu0 0.0
      %478 = vmatpush1.msra.mxu0 %v131
      %479 = vmatprep.subr.mxu0 0.0
      %480 = vmatpush1.msra.mxu0 %v132
      %481 = vmatprep.subr.mxu0 0.0
      %482 = vmatpush1.msra.mxu0 0.0
      %483 = vmatprep.subr.mxu0 0.0
      %484 = vmatpush1.msra.mxu0 0.0
      %485 = vmatprep.subr.mxu0 0.0
      %486 = vmatpush1.msra.mxu0 0.0
      %487 = vmatprep.subr.mxu0 0.0
      %488 = vmatpush1.msra.mxu0 0.0
      %489 = vmatprep.subr.mxu0 0.0
      %490 = vmatpush1.msra.mxu0 0.0
      %491 = vmatprep.subr.mxu0 0.0
      %492 = vmatpush1.msra.mxu0 0.0
      %493 = vmatprep.subr.mxu0 0.0
      %494 = vmatpush1.msra.mxu0 0.0
      %495 = vmatprep.subr.mxu0 0.0
      %496 = vmatpush1.msra.mxu0 0.0
      %497 = vmatprep.subr.mxu0 0.0
      %498 = vmatpush1.msra.mxu0 0.0
      %499 = vmatprep.subr.mxu0 0.0
      %500 = vmatpush1.msra.mxu0 0.0
      %501 = vmatprep.subr.mxu0 0.0
      %502 = vmatpush1.msra.mxu0 0.0
      %503 = vmatprep.subr.mxu0 0.0
      %504 = vmatpush1.msra.mxu0 0.0
      %505 = vmatprep.subr.mxu0 0.0
      %506 = vmatpush1.msra.mxu0 0.0
      %507 = vmatprep.subr.mxu0 0.0
      %508 = vmatpush1.msra.mxu0 0.0
      %509 = vmatprep.subr.mxu0 0.0
      %510 = vmatpush1.msra.mxu0 0.0
      %511 = vmatprep.subr.mxu0 0.0
      %512 = vmatpush1.msra.mxu0 0.0
      %513 = vmatprep.subr.mxu0 0.0
      %514 = vmatpush1.msra.mxu0 0.0
      %515 = vmatprep.subr.mxu0 0.0
      %516 = vmatpush1.msra.mxu0 0.0
      %517 = vmatprep.subr.mxu0 0.0
      %518 = vmatpush1.msra.mxu0 0.0
      %519 = vmatprep.subr.mxu0 0.0
      %520 = vmatpush1.msra.mxu0 0.0
      %521 = vmatprep.subr.mxu0 0.0
      %522 = vmatpush1.msra.mxu0 0.0
      %523 = vmatprep.subr.mxu0 0.0
      %524 = vmatpush1.msra.mxu0 0.0
      %525 = vmatprep.subr.mxu0 0.0
      %526 = vmatpush1.msra.mxu0 0.0
      %527 = vmatprep.subr.mxu0 0.0
      %528 = vmatpush1.msra.mxu0 0.0
      %529 = vmatprep.subr.mxu0 0.0
      %530 = vmatpush1.msra.mxu0 0.0
      %531 = vmatprep.subr.mxu0 0.0
      %532 = vmatpush1.msra.mxu0 0.0
      %533 = vmatprep.subr.mxu0 0.0
      %534 = vmatpush1.msra.mxu0 0.0
      %535 = vmatprep.subr.mxu0 0.0
      %536 = vmatpush1.msra.mxu0 0.0
      %537 = vmatprep.subr.mxu0 0.0
      %538 = vmatpush1.msra.mxu0 0.0
      %539 = vmatprep.subr.mxu0 0.0
      %540 = vmatpush1.msra.mxu0 0.0
      %541 = vmatprep.mubr.f32.mxu0 0.0
      %542 = vmatmul.mubr.f32.gmra.mrb[0].mxu0 %v475
      %v543 = vpop.f32.mrb[0].mxu0
      %v544 = vadd.f32 0.0, %v543
      %v545 = vpop.f32.mrb[0].mxu0
      %546 = vdwg.mxu0
    $region73: #{tpu_custom_call.1} parent=1 // pred_fallthru
      %v547 = vphi %v442, %v544
    %v548 = vsel %vm158, %v259, 0
    %550 = vmatprep.subr.mxu0 0.0
    %551 = vmatpush1.msra.mxu0 %v133
    %552 = vmatprep.subr.mxu0 0.0
    %553 = vmatpush1.msra.mxu0 %v134
    %554 = vmatprep.subr.mxu0 0.0
    %555 = vmatpush1.msra.mxu0 %v135
    %556 = vmatprep.subr.mxu0 0.0
    %557 = vmatpush1.msra.mxu0 %v136
    %558 = vmatprep.subr.mxu0 0.0
    %559 = vmatpush1.msra.mxu0 0.0
    %560 = vmatprep.subr.mxu0 0.0
    %561 = vmatpush1.msra.mxu0 0.0
    %562 = vmatprep.subr.mxu0 0.0
    %563 = vmatpush1.msra.mxu0 0.0
    %564 = vmatprep.subr.mxu0 0.0
    %565 = vmatpush1.msra.mxu0 0.0
    %566 = vmatprep.subr.mxu0 0.0
    %567 = vmatpush1.msra.mxu0 0.0
    %568 = vmatprep.subr.mxu0 0.0
    %569 = vmatpush1.msra.mxu0 0.0
    %570 = vmatprep.subr.mxu0 0.0
    %571 = vmatpush1.msra.mxu0 0.0
    %572 = vmatprep.subr.mxu0 0.0
    %573 = vmatpush1.msra.mxu0 0.0
    %574 = vmatprep.subr.mxu0 0.0
    %575 = vmatpush1.msra.mxu0 0.0
    %576 = vmatprep.subr.mxu0 0.0
    %577 = vmatpush1.msra.mxu0 0.0
    %578 = vmatprep.subr.mxu0 0.0
    %579 = vmatpush1.msra.mxu0 0.0
    %580 = vmatprep.subr.mxu0 0.0
    %581 = vmatpush1.msra.mxu0 0.0
    %582 = vmatprep.subr.mxu0 0.0
    %583 = vmatpush1.msra.mxu0 0.0
    %584 = vmatprep.subr.mxu0 0.0
    %585 = vmatpush1.msra.mxu0 0.0
    %586 = vmatprep.subr.mxu0 0.0
    %587 = vmatpush1.msra.mxu0 0.0
    %588 = vmatprep.subr.mxu0 0.0
    %589 = vmatpush1.msra.mxu0 0.0
    %590 = vmatprep.subr.mxu0 0.0
    %591 = vmatpush1.msra.mxu0 0.0
    %592 = vmatprep.subr.mxu0 0.0
    %593 = vmatpush1.msra.mxu0 0.0
    %594 = vmatprep.subr.mxu0 0.0
    %595 = vmatpush1.msra.mxu0 0.0
    %596 = vmatprep.subr.mxu0 0.0
    %597 = vmatpush1.msra.mxu0 0.0
    %598 = vmatprep.subr.mxu0 0.0
    %599 = vmatpush1.msra.mxu0 0.0
    %600 = vmatprep.subr.mxu0 0.0
    %601 = vmatpush1.msra.mxu0 0.0
    %602 = vmatprep.subr.mxu0 0.0
    %603 = vmatpush1.msra.mxu0 0.0
    %604 = vmatprep.subr.mxu0 0.0
    %605 = vmatpush1.msra.mxu0 0.0
    %606 = vmatprep.subr.mxu0 0.0
    %607 = vmatpush1.msra.mxu0 0.0
    %608 = vmatprep.subr.mxu0 0.0
    %609 = vmatpush1.msra.mxu0 0.0
    %610 = vmatprep.subr.mxu0 0.0
    %611 = vmatpush1.msra.mxu0 0.0
    %612 = vmatprep.subr.mxu0 0.0
    %613 = vmatpush1.msra.mxu0 0.0
    %614 = vmatprep.mubr.f32.mxu0 0.0
    %615 = vmatmul.mubr.f32.gmra.mrb[0].mxu0 %v548
    %v616 = vpop.f32.mrb[0].mxu0
    %v617 = vadd.f32 0.0, %v616
    %v618 = vpop.f32.mrb[0].mxu0
    %619 = vdwg.mxu0
    %v620 = vadd.f32 %v547, %v617
    %v621 = vtanh.pop %v620
    %v622 = vadd.f32 %v621, 1.0
    %v623 = vmul.f32 %v622, 0.5
    %v624 = vmul.f32 %v623, %v250
    %626 = vrot.lane.b32.xlu0 %v621, 64
    %v627 = vpop.permute.xlu0 %626
    %v629 = vmul.f32 %v623, %v627
    %631 = vrot.lane.b32.xlu0 %v629, 32
    %v632 = vpop.permute.xlu0 %631
    %v634 = vadd.f32 %v624, %v632
    %v635 = vtanh.pop %v634
    %637 = vrot.lane.b32.xlu0 %v635, 64
    %v638 = vpop.permute.xlu0 %637
    %v640 = vmul.f32 %v623, %v638
    %642 = vrot.lane.b32.xlu0 %v640, 32
    %v643 = vpop.permute.xlu0 %642
    %645 = vrot.lane.b32.xlu0 %v363, 64
    %v646 = vpop.permute.xlu0 %645
    %v648 = vsel %vm158, %v643, %v646
    %v650 = vsel %vm266, %v648, 0
    %652 = vmatprep.subr.mxu0 0.0
    %653 = vmatpush1.msra.mxu0 %v117
    %654 = vmatprep.subr.mxu0 0.0
    %655 = vmatpush1.msra.mxu0 %v118
    %656 = vmatprep.subr.mxu0 0.0
    %657 = vmatpush1.msra.mxu0 %v119
    %658 = vmatprep.subr.mxu0 0.0
    %659 = vmatpush1.msra.mxu0 %v120
    %660 = vmatprep.subr.mxu0 0.0
    %661 = vmatpush1.msra.mxu0 %v121
    %662 = vmatprep.subr.mxu0 0.0
    %663 = vmatpush1.msra.mxu0 %v122
    %664 = vmatprep.subr.mxu0 0.0
    %665 = vmatpush1.msra.mxu0 %v123
    %666 = vmatprep.subr.mxu0 0.0
    %667 = vmatpush1.msra.mxu0 %v124
    %668 = vmatprep.subr.mxu0 0.0
    %669 = vmatpush1.msra.mxu0 0.0
    %670 = vmatprep.subr.mxu0 0.0
    %671 = vmatpush1.msra.mxu0 0.0
    %672 = vmatprep.subr.mxu0 0.0
    %673 = vmatpush1.msra.mxu0 0.0
    %674 = vmatprep.subr.mxu0 0.0
    %675 = vmatpush1.msra.mxu0 0.0
    %676 = vmatprep.subr.mxu0 0.0
    %677 = vmatpush1.msra.mxu0 0.0
    %678 = vmatprep.subr.mxu0 0.0
    %679 = vmatpush1.msra.mxu0 0.0
    %680 = vmatprep.subr.mxu0 0.0
    %681 = vmatpush1.msra.mxu0 0.0
    %682 = vmatprep.subr.mxu0 0.0
    %683 = vmatpush1.msra.mxu0 0.0
    %684 = vmatprep.subr.mxu0 0.0
    %685 = vmatpush1.msra.mxu0 0.0
    %686 = vmatprep.subr.mxu0 0.0
    %687 = vmatpush1.msra.mxu0 0.0
    %688 = vmatprep.subr.mxu0 0.0
    %689 = vmatpush1.msra.mxu0 0.0
    %690 = vmatprep.subr.mxu0 0.0
    %691 = vmatpush1.msra.mxu0 0.0
    %692 = vmatprep.subr.mxu0 0.0
    %693 = vmatpush1.msra.mxu0 0.0
    %694 = vmatprep.subr.mxu0 0.0
    %695 = vmatpush1.msra.mxu0 0.0
    %696 = vmatprep.subr.mxu0 0.0
    %697 = vmatpush1.msra.mxu0 0.0
    %698 = vmatprep.subr.mxu0 0.0
    %699 = vmatpush1.msra.mxu0 0.0
    %700 = vmatprep.subr.mxu0 0.0
    %701 = vmatpush1.msra.mxu0 0.0
    %702 = vmatprep.subr.mxu0 0.0
    %703 = vmatpush1.msra.mxu0 0.0
    %704 = vmatprep.subr.mxu0 0.0
    %705 = vmatpush1.msra.mxu0 0.0
    %706 = vmatprep.subr.mxu0 0.0
    %707 = vmatpush1.msra.mxu0 0.0
    %708 = vmatprep.subr.mxu0 0.0
    %709 = vmatpush1.msra.mxu0 0.0
    %710 = vmatprep.subr.mxu0 0.0
    %711 = vmatpush1.msra.mxu0 0.0
    %712 = vmatprep.subr.mxu0 0.0
    %713 = vmatpush1.msra.mxu0 0.0
    %714 = vmatprep.subr.mxu0 0.0
    %715 = vmatpush1.msra.mxu0 0.0
    %716 = vmatprep.mubr.f32.mxu0 0.0
    %717 = vmatmul.mubr.f32.gmra.mrb[0].mxu0 %v650
    %v718 = vpop.f32.mrb[0].mxu0
    %v719 = vadd.f32 %v141, %v718
    %v720 = vpop.f32.mrb[0].mxu0
    %721 = vdwg.mxu0
    %v722 = vtanh.pop %v719
    %v723 = vadd.f32 %v722, 1.0
    %v724 = vmul.f32 %v723, 0.5
    %v725 = vmul.f32 %v724, %v357
    %727 = vrot.lane.b32.xlu0 %v722, 64
    %v728 = vpop.permute.xlu0 %727
    %v730 = vmul.f32 %v724, %v728
    %732 = vrot.lane.b32.xlu0 %v730, 32
    %v733 = vpop.permute.xlu0 %732
    %v735 = vadd.f32 %v725, %v733
    %v736 = vtanh.pop %v735
    %738 = vrot.lane.b32.xlu0 %v736, 64
    %v739 = vpop.permute.xlu0 %738
    %v741 = vmul.f32 %v724, %v739
    %743 = vrot.lane.b32.xlu0 %v741, 32
    %v744 = vpop.permute.xlu0 %743
    %v745 = vsel %vm158, %v744, 0
    %747 = vmatprep.subr.mxu0 0.0
    %748 = vmatpush1.msra.mxu0 %v126
    %749 = vmatprep.subr.mxu0 0.0
    %750 = vmatpush1.msra.mxu0 %v127
    %751 = vmatprep.subr.mxu0 0.0
    %752 = vmatpush1.msra.mxu0 %v128
    %753 = vmatprep.subr.mxu0 0.0
    %754 = vmatpush1.msra.mxu0 %v129
    %755 = vmatprep.subr.mxu0 0.0
    %756 = vmatpush1.msra.mxu0 0.0
    %757 = vmatprep.subr.mxu0 0.0
    %758 = vmatpush1.msra.mxu0 0.0
    %759 = vmatprep.subr.mxu0 0.0
    %760 = vmatpush1.msra.mxu0 0.0
    %761 = vmatprep.subr.mxu0 0.0
    %762 = vmatpush1.msra.mxu0 0.0
    %763 = vmatprep.subr.mxu0 0.0
    %764 = vmatpush1.msra.mxu0 0.0
    %765 = vmatprep.subr.mxu0 0.0
    %766 = vmatpush1.msra.mxu0 0.0
    %767 = vmatprep.subr.mxu0 0.0
    %768 = vmatpush1.msra.mxu0 0.0
    %769 = vmatprep.subr.mxu0 0.0
    %770 = vmatpush1.msra.mxu0 0.0
    %771 = vmatprep.subr.mxu0 0.0
    %772 = vmatpush1.msra.mxu0 0.0
    %773 = vmatprep.subr.mxu0 0.0
    %774 = vmatpush1.msra.mxu0 0.0
    %775 = vmatprep.subr.mxu0 0.0
    %776 = vmatpush1.msra.mxu0 0.0
    %777 = vmatprep.subr.mxu0 0.0
    %778 = vmatpush1.msra.mxu0 0.0
    %779 = vmatprep.subr.mxu0 0.0
    %780 = vmatpush1.msra.mxu0 0.0
    %781 = vmatprep.subr.mxu0 0.0
    %782 = vmatpush1.msra.mxu0 0.0
    %783 = vmatprep.subr.mxu0 0.0
    %784 = vmatpush1.msra.mxu0 0.0
    %785 = vmatprep.subr.mxu0 0.0
    %786 = vmatpush1.msra.mxu0 0.0
    %787 = vmatprep.subr.mxu0 0.0
    %788 = vmatpush1.msra.mxu0 0.0
    %789 = vmatprep.subr.mxu0 0.0
    %790 = vmatpush1.msra.mxu0 0.0
    %791 = vmatprep.subr.mxu0 0.0
    %792 = vmatpush1.msra.mxu0 0.0
    %793 = vmatprep.subr.mxu0 0.0
    %794 = vmatpush1.msra.mxu0 0.0
    %795 = vmatprep.subr.mxu0 0.0
    %796 = vmatpush1.msra.mxu0 0.0
    %797 = vmatprep.subr.mxu0 0.0
    %798 = vmatpush1.msra.mxu0 0.0
    %799 = vmatprep.subr.mxu0 0.0
    %800 = vmatpush1.msra.mxu0 0.0
    %801 = vmatprep.subr.mxu0 0.0
    %802 = vmatpush1.msra.mxu0 0.0
    %803 = vmatprep.subr.mxu0 0.0
    %804 = vmatpush1.msra.mxu0 0.0
    %805 = vmatprep.subr.mxu0 0.0
    %806 = vmatpush1.msra.mxu0 0.0
    %807 = vmatprep.subr.mxu0 0.0
    %808 = vmatpush1.msra.mxu0 0.0
    %809 = vmatprep.subr.mxu0 0.0
    %810 = vmatpush1.msra.mxu0 0.0
    %811 = vmatprep.mubr.f32.mxu0 0.0
    %812 = vmatmul.mubr.f32.gmra.mrb[0].mxu0 %v745
    %v813 = vpop.f32.mrb[0].mxu0
    %v814 = vadd.f32 %v147, %v813
    %v815 = vpop.f32.mrb[0].mxu0
    %816 = vdwg.mxu0
    %818 = vrot.lane.b32.xlu0 %v814, 16
    %v819 = vpop.permute.xlu0 %818
    %vm821 = vcmask 261248
    %822 = vst.msk [vmem:[#allocation13] sm:$0xff] %vm821, %v819
    %s823 = scalar_lea.vmem [#allocation6], 16
    %v824 = vld [vmem:[%s823] sm:$0xff]
    %s825 = sld [smem:[#allocation2 + $0x2]]
    %p826 = scmp.ne.s32.totalorder %s825, 0
    // Predicated region
    $region74: #{tpu_custom_call.1} parent=1 // pred_check
      %p827 = pneg %p826
    $region75: #{tpu_custom_call.1} parent=1 // pred_check_branch
      %829 = sbr.rel (%p827) target = $region77
    $region76: #{tpu_custom_call.1} parent=1 // pred_region
      _
    $region77: #{tpu_custom_call.1} parent=1 // pred_fallthru
      _
    %p830 = pneg %p826
    // Predicated region
    $region78: #{tpu_custom_call.1} parent=1 // pred_check
      _
    $region79: #{tpu_custom_call.1} parent=1 // pred_check_branch
      %832 = sbr.rel (%p826) target = $region81
    $region80: #{tpu_custom_call.1} parent=1 // pred_region
      %v833 = vsel %vm439, %v814, -inf
      %834 = vmax.xlane.f32.xlu0 %v833
      %v835 = vpop.xlane.xlu0 %834
      %vm836 = vcmp.eq.f32.partialorder %v814, %v835
      %v837 = vsel %vm836, %v156, 16
      %v838 = vsel %vm439, %v837, 2147483647
      %v839 = vand.u32 %v838, 65535
      %v840 = vshra.s32 %v838, 16
      %v841 = vcvt.s32.f32 %v839
      %v842 = vcvt.s32.f32 %v840
      %843 = vmin.xlane.f32.xlu0 %v842
      %v844 = vpop.xlane.xlu0 %843
      %vm845 = vcmp.eq.f32.partialorder %v842, %v844
      %v846 = vsel %vm845, %v841, inf
      %847 = vmin.xlane.f32.xlu0 %v846
      %v848 = vpop.xlane.xlu0 %847
      %v849 = vcvt.f32.s32 %v848
      %v850 = vcvt.f32.s32 %v844
      %v851 = vshll.u32 %v850, 16
      %v852 = vadd.s32 %v851, %v849
      %vm853 = vcmp.eq.s32.totalorder %v156, %v852
      %v854 = vsel %vm853, 1, 0
      %v855 = vcvt.s32.f32 %v854
      %v857 = vsel %vm439, %v855, 0
      %859 = vmatprep.subr.mxu0 0.0
      %860 = vmatpush1.msra.mxu0 %v131
      %861 = vmatprep.subr.mxu0 0.0
      %862 = vmatpush1.msra.mxu0 %v132
      %863 = vmatprep.subr.mxu0 0.0
      %864 = vmatpush1.msra.mxu0 0.0
      %865 = vmatprep.subr.mxu0 0.0
      %866 = vmatpush1.msra.mxu0 0.0
      %867 = vmatprep.subr.mxu0 0.0
      %868 = vmatpush1.msra.mxu0 0.0
      %869 = vmatprep.subr.mxu0 0.0
      %870 = vmatpush1.msra.mxu0 0.0
      %871 = vmatprep.subr.mxu0 0.0
      %872 = vmatpush1.msra.mxu0 0.0
      %873 = vmatprep.subr.mxu0 0.0
      %874 = vmatpush1.msra.mxu0 0.0
      %875 = vmatprep.subr.mxu0 0.0
      %876 = vmatpush1.msra.mxu0 0.0
      %877 = vmatprep.subr.mxu0 0.0
      %878 = vmatpush1.msra.mxu0 0.0
      %879 = vmatprep.subr.mxu0 0.0
      %880 = vmatpush1.msra.mxu0 0.0
      %881 = vmatprep.subr.mxu0 0.0
      %882 = vmatpush1.msra.mxu0 0.0
      %883 = vmatprep.subr.mxu0 0.0
      %884 = vmatpush1.msra.mxu0 0.0
      %885 = vmatprep.subr.mxu0 0.0
      %886 = vmatpush1.msra.mxu0 0.0
      %887 = vmatprep.subr.mxu0 0.0
      %888 = vmatpush1.msra.mxu0 0.0
      %889 = vmatprep.subr.mxu0 0.0
      %890 = vmatpush1.msra.mxu0 0.0
      %891 = vmatprep.subr.mxu0 0.0
      %892 = vmatpush1.msra.mxu0 0.0
      %893 = vmatprep.subr.mxu0 0.0
      %894 = vmatpush1.msra.mxu0 0.0
      %895 = vmatprep.subr.mxu0 0.0
      %896 = vmatpush1.msra.mxu0 0.0
      %897 = vmatprep.subr.mxu0 0.0
      %898 = vmatpush1.msra.mxu0 0.0
      %899 = vmatprep.subr.mxu0 0.0
      %900 = vmatpush1.msra.mxu0 0.0
      %901 = vmatprep.subr.mxu0 0.0
      %902 = vmatpush1.msra.mxu0 0.0
      %903 = vmatprep.subr.mxu0 0.0
      %904 = vmatpush1.msra.mxu0 0.0
      %905 = vmatprep.subr.mxu0 0.0
      %906 = vmatpush1.msra.mxu0 0.0
      %907 = vmatprep.subr.mxu0 0.0
      %908 = vmatpush1.msra.mxu0 0.0
      %909 = vmatprep.subr.mxu0 0.0
      %910 = vmatpush1.msra.mxu0 0.0
      %911 = vmatprep.subr.mxu0 0.0
      %912 = vmatpush1.msra.mxu0 0.0
      %913 = vmatprep.subr.mxu0 0.0
      %914 = vmatpush1.msra.mxu0 0.0
      %915 = vmatprep.subr.mxu0 0.0
      %916 = vmatpush1.msra.mxu0 0.0
      %917 = vmatprep.subr.mxu0 0.0
      %918 = vmatpush1.msra.mxu0 0.0
      %919 = vmatprep.subr.mxu0 0.0
      %920 = vmatpush1.msra.mxu0 0.0
      %921 = vmatprep.subr.mxu0 0.0
      %922 = vmatpush1.msra.mxu0 0.0
      %923 = vmatprep.mubr.f32.mxu0 0.0
      %924 = vmatmul.mubr.f32.gmra.mrb[0].mxu0 %v857
      %v925 = vpop.f32.mrb[0].mxu0
      %v926 = vadd.f32 0.0, %v925
      %v927 = vpop.f32.mrb[0].mxu0
      %928 = vdwg.mxu0
    $region81: #{tpu_custom_call.1} parent=1 // pred_fallthru
      %v929 = vphi %v824, %v926
    %v930 = vsel %vm158, %v643, 0
    %932 = vmatprep.subr.mxu0 0.0
    %933 = vmatpush1.msra.mxu0 %v133
    %934 = vmatprep.subr.mxu0 0.0
    %935 = vmatpush1.msra.mxu0 %v134
    %936 = vmatprep.subr.mxu0 0.0
    %937 = vmatpush1.msra.mxu0 %v135
    %938 = vmatprep.subr.mxu0 0.0
    %939 = vmatpush1.msra.mxu0 %v136
    %940 = vmatprep.subr.mxu0 0.0
    %941 = vmatpush1.msra.mxu0 0.0
    %942 = vmatprep.subr.mxu0 0.0
    %943 = vmatpush1.msra.mxu0 0.0
    %944 = vmatprep.subr.mxu0 0.0
    %945 = vmatpush1.msra.mxu0 0.0
    %946 = vmatprep.subr.mxu0 0.0
    %947 = vmatpush1.msra.mxu0 0.0
    %948 = vmatprep.subr.mxu0 0.0
    %949 = vmatpush1.msra.mxu0 0.0
    %950 = vmatprep.subr.mxu0 0.0
    %951 = vmatpush1.msra.mxu0 0.0
    %952 = vmatprep.subr.mxu0 0.0
    %953 = vmatpush1.msra.mxu0 0.0
    %954 = vmatprep.subr.mxu0 0.0
    %955 = vmatpush1.msra.mxu0 0.0
    %956 = vmatprep.subr.mxu0 0.0
    %957 = vmatpush1.msra.mxu0 0.0
    %958 = vmatprep.subr.mxu0 0.0
    %959 = vmatpush1.msra.mxu0 0.0
    %960 = vmatprep.subr.mxu0 0.0
    %961 = vmatpush1.msra.mxu0 0.0
    %962 = vmatprep.subr.mxu0 0.0
    %963 = vmatpush1.msra.mxu0 0.0
    %964 = vmatprep.subr.mxu0 0.0
    %965 = vmatpush1.msra.mxu0 0.0
    %966 = vmatprep.subr.mxu0 0.0
    %967 = vmatpush1.msra.mxu0 0.0
    %968 = vmatprep.subr.mxu0 0.0
    %969 = vmatpush1.msra.mxu0 0.0
    %970 = vmatprep.subr.mxu0 0.0
    %971 = vmatpush1.msra.mxu0 0.0
    %972 = vmatprep.subr.mxu0 0.0
    %973 = vmatpush1.msra.mxu0 0.0
    %974 = vmatprep.subr.mxu0 0.0
    %975 = vmatpush1.msra.mxu0 0.0
    %976 = vmatprep.subr.mxu0 0.0
    %977 = vmatpush1.msra.mxu0 0.0
    %978 = vmatprep.subr.mxu0 0.0
    %979 = vmatpush1.msra.mxu0 0.0
    %980 = vmatprep.subr.mxu0 0.0
    %981 = vmatpush1.msra.mxu0 0.0
    %982 = vmatprep.subr.mxu0 0.0
    %983 = vmatpush1.msra.mxu0 0.0
    %984 = vmatprep.subr.mxu0 0.0
    %985 = vmatpush1.msra.mxu0 0.0
    %986 = vmatprep.subr.mxu0 0.0
    %987 = vmatpush1.msra.mxu0 0.0
    %988 = vmatprep.subr.mxu0 0.0
    %989 = vmatpush1.msra.mxu0 0.0
    %990 = vmatprep.subr.mxu0 0.0
    %991 = vmatpush1.msra.mxu0 0.0
    %992 = vmatprep.subr.mxu0 0.0
    %993 = vmatpush1.msra.mxu0 0.0
    %994 = vmatprep.subr.mxu0 0.0
    %995 = vmatpush1.msra.mxu0 0.0
    %996 = vmatprep.mubr.f32.mxu0 0.0
    %997 = vmatmul.mubr.f32.gmra.mrb[0].mxu0 %v930
    %v998 = vpop.f32.mrb[0].mxu0
    %v999 = vadd.f32 0.0, %v998
    %v1000 = vpop.f32.mrb[0].mxu0
    %1001 = vdwg.mxu0
    %v1002 = vadd.f32 %v929, %v999
    %v1003 = vtanh.pop %v1002
    %v1004 = vadd.f32 %v1003, 1.0
    %v1005 = vmul.f32 %v1004, 0.5
    %v1006 = vmul.f32 %v1005, %v634
    %1008 = vrot.lane.b32.xlu0 %v1003, 64
    %v1009 = vpop.permute.xlu0 %1008
    %v1011 = vmul.f32 %v1005, %v1009
    %1013 = vrot.lane.b32.xlu0 %v1011, 32
    %v1014 = vpop.permute.xlu0 %1013
    %v1016 = vadd.f32 %v1006, %v1014
    %v1017 = vtanh.pop %v1016
    %1019 = vrot.lane.b32.xlu0 %v1017, 64
    %v1020 = vpop.permute.xlu0 %1019
    %v1022 = vmul.f32 %v1005, %v1020
    %1024 = vrot.lane.b32.xlu0 %v1022, 32
    %v1025 = vpop.permute.xlu0 %1024
    %1027 = vrot.lane.b32.xlu0 %v741, 64
    %v1028 = vpop.permute.xlu0 %1027
    %v1030 = vsel %vm158, %v1025, %v1028
    %v1032 = vsel %vm266, %v1030, 0
    %1034 = vmatprep.subr.mxu0 0.0
    %1035 = vmatpush1.msra.mxu0 %v117
    %1036 = vmatprep.subr.mxu0 0.0
    %1037 = vmatpush1.msra.mxu0 %v118
    %1038 = vmatprep.subr.mxu0 0.0
    %1039 = vmatpush1.msra.mxu0 %v119
    %1040 = vmatprep.subr.mxu0 0.0
    %1041 = vmatpush1.msra.mxu0 %v120
    %1042 = vmatprep.subr.mxu0 0.0
    %1043 = vmatpush1.msra.mxu0 %v121
    %1044 = vmatprep.subr.mxu0 0.0
    %1045 = vmatpush1.msra.mxu0 %v122
    %1046 = vmatprep.subr.mxu0 0.0
    %1047 = vmatpush1.msra.mxu0 %v123
    %1048 = vmatprep.subr.mxu0 0.0
    %1049 = vmatpush1.msra.mxu0 %v124
    %1050 = vmatprep.subr.mxu0 0.0
    %1051 = vmatpush1.msra.mxu0 0.0
    %1052 = vmatprep.subr.mxu0 0.0
    %1053 = vmatpush1.msra.mxu0 0.0
    %1054 = vmatprep.subr.mxu0 0.0
    %1055 = vmatpush1.msra.mxu0 0.0
    %1056 = vmatprep.subr.mxu0 0.0
    %1057 = vmatpush1.msra.mxu0 0.0
    %1058 = vmatprep.subr.mxu0 0.0
    %1059 = vmatpush1.msra.mxu0 0.0
    %1060 = vmatprep.subr.mxu0 0.0
    %1061 = vmatpush1.msra.mxu0 0.0
    %1062 = vmatprep.subr.mxu0 0.0
    %1063 = vmatpush1.msra.mxu0 0.0
    %1064 = vmatprep.subr.mxu0 0.0
    %1065 = vmatpush1.msra.mxu0 0.0
    %1066 = vmatprep.subr.mxu0 0.0
    %1067 = vmatpush1.msra.mxu0 0.0
    %1068 = vmatprep.subr.mxu0 0.0
    %1069 = vmatpush1.msra.mxu0 0.0
    %1070 = vmatprep.subr.mxu0 0.0
    %1071 = vmatpush1.msra.mxu0 0.0
    %1072 = vmatprep.subr.mxu0 0.0
    %1073 = vmatpush1.msra.mxu0 0.0
    %1074 = vmatprep.subr.mxu0 0.0
    %1075 = vmatpush1.msra.mxu0 0.0
    %1076 = vmatprep.subr.mxu0 0.0
    %1077 = vmatpush1.msra.mxu0 0.0
    %1078 = vmatprep.subr.mxu0 0.0
    %1079 = vmatpush1.msra.mxu0 0.0
    %1080 = vmatprep.subr.mxu0 0.0
    %1081 = vmatpush1.msra.mxu0 0.0
    %1082 = vmatprep.subr.mxu0 0.0
    %1083 = vmatpush1.msra.mxu0 0.0
    %1084 = vmatprep.subr.mxu0 0.0
    %1085 = vmatpush1.msra.mxu0 0.0
    %1086 = vmatprep.subr.mxu0 0.0
    %1087 = vmatpush1.msra.mxu0 0.0
    %1088 = vmatprep.subr.mxu0 0.0
    %1089 = vmatpush1.msra.mxu0 0.0
    %1090 = vmatprep.subr.mxu0 0.0
    %1091 = vmatpush1.msra.mxu0 0.0
    %1092 = vmatprep.subr.mxu0 0.0
    %1093 = vmatpush1.msra.mxu0 0.0
    %1094 = vmatprep.subr.mxu0 0.0
    %1095 = vmatpush1.msra.mxu0 0.0
    %1096 = vmatprep.subr.mxu0 0.0
    %1097 = vmatpush1.msra.mxu0 0.0
    %1098 = vmatprep.mubr.f32.mxu0 0.0
    %1099 = vmatmul.mubr.f32.gmra.mrb[0].mxu0 %v1032
    %v1100 = vpop.f32.mrb[0].mxu0
    %v1101 = vadd.f32 %v141, %v1100
    %v1102 = vpop.f32.mrb[0].mxu0
    %1103 = vdwg.mxu0
    %v1104 = vtanh.pop %v1101
    %v1105 = vadd.f32 %v1104, 1.0
    %v1106 = vmul.f32 %v1105, 0.5
    %v1107 = vmul.f32 %v1106, %v735
    %1109 = vrot.lane.b32.xlu0 %v1104, 64
    %v1110 = vpop.permute.xlu0 %1109
    %v1112 = vmul.f32 %v1106, %v1110
    %1114 = vrot.lane.b32.xlu0 %v1112, 32
    %v1115 = vpop.permute.xlu0 %1114
    %v1117 = vadd.f32 %v1107, %v1115
    %v1118 = vtanh.pop %v1117
    %1120 = vrot.lane.b32.xlu0 %v1118, 64
    %v1121 = vpop.permute.xlu0 %1120
    %v1123 = vmul.f32 %v1106, %v1121
    %1125 = vrot.lane.b32.xlu0 %v1123, 32
    %v1126 = vpop.permute.xlu0 %1125
    %v1127 = vsel %vm158, %v1126, 0
    %1129 = vmatprep.subr.mxu0 0.0
    %1130 = vmatpush1.msra.mxu0 %v126
    %1131 = vmatprep.subr.mxu0 0.0
    %1132 = vmatpush1.msra.mxu0 %v127
    %1133 = vmatprep.subr.mxu0 0.0
    %1134 = vmatpush1.msra.mxu0 %v128
    %1135 = vmatprep.subr.mxu0 0.0
    %1136 = vmatpush1.msra.mxu0 %v129
    %1137 = vmatprep.subr.mxu0 0.0
    %1138 = vmatpush1.msra.mxu0 0.0
    %1139 = vmatprep.subr.mxu0 0.0
    %1140 = vmatpush1.msra.mxu0 0.0
    %1141 = vmatprep.subr.mxu0 0.0
    %1142 = vmatpush1.msra.mxu0 0.0
    %1143 = vmatprep.subr.mxu0 0.0
    %1144 = vmatpush1.msra.mxu0 0.0
    %1145 = vmatprep.subr.mxu0 0.0
    %1146 = vmatpush1.msra.mxu0 0.0
    %1147 = vmatprep.subr.mxu0 0.0
    %1148 = vmatpush1.msra.mxu0 0.0
    %1149 = vmatprep.subr.mxu0 0.0
    %1150 = vmatpush1.msra.mxu0 0.0
    %1151 = vmatprep.subr.mxu0 0.0
    %1152 = vmatpush1.msra.mxu0 0.0
    %1153 = vmatprep.subr.mxu0 0.0
    %1154 = vmatpush1.msra.mxu0 0.0
    %1155 = vmatprep.subr.mxu0 0.0
    %1156 = vmatpush1.msra.mxu0 0.0
    %1157 = vmatprep.subr.mxu0 0.0
    %1158 = vmatpush1.msra.mxu0 0.0
    %1159 = vmatprep.subr.mxu0 0.0
    %1160 = vmatpush1.msra.mxu0 0.0
    %1161 = vmatprep.subr.mxu0 0.0
    %1162 = vmatpush1.msra.mxu0 0.0
    %1163 = vmatprep.subr.mxu0 0.0
    %1164 = vmatpush1.msra.mxu0 0.0
    %1165 = vmatprep.subr.mxu0 0.0
    %1166 = vmatpush1.msra.mxu0 0.0
    %1167 = vmatprep.subr.mxu0 0.0
    %1168 = vmatpush1.msra.mxu0 0.0
    %1169 = vmatprep.subr.mxu0 0.0
    %1170 = vmatpush1.msra.mxu0 0.0
    %1171 = vmatprep.subr.mxu0 0.0
    %1172 = vmatpush1.msra.mxu0 0.0
    %1173 = vmatprep.subr.mxu0 0.0
    %1174 = vmatpush1.msra.mxu0 0.0
    %1175 = vmatprep.subr.mxu0 0.0
    %1176 = vmatpush1.msra.mxu0 0.0
    %1177 = vmatprep.subr.mxu0 0.0
    %1178 = vmatpush1.msra.mxu0 0.0
    %1179 = vmatprep.subr.mxu0 0.0
    %1180 = vmatpush1.msra.mxu0 0.0
    %1181 = vmatprep.subr.mxu0 0.0
    %1182 = vmatpush1.msra.mxu0 0.0
    %1183 = vmatprep.subr.mxu0 0.0
    %1184 = vmatpush1.msra.mxu0 0.0
    %1185 = vmatprep.subr.mxu0 0.0
    %1186 = vmatpush1.msra.mxu0 0.0
    %1187 = vmatprep.subr.mxu0 0.0
    %1188 = vmatpush1.msra.mxu0 0.0
    %1189 = vmatprep.subr.mxu0 0.0
    %1190 = vmatpush1.msra.mxu0 0.0
    %1191 = vmatprep.subr.mxu0 0.0
    %1192 = vmatpush1.msra.mxu0 0.0
    %1193 = vmatprep.mubr.f32.mxu0 0.0
    %1194 = vmatmul.mubr.f32.gmra.mrb[0].mxu0 %v1127
    %v1195 = vpop.f32.mrb[0].mxu0
    %v1196 = vadd.f32 %v147, %v1195
    %v1197 = vpop.f32.mrb[0].mxu0
    %1198 = vdwg.mxu0
    %1200 = vrot.lane.b32.xlu0 %v1196, 32
    %v1201 = vpop.permute.xlu0 %1200
    %vm1203 = vcmask 392448
    %1204 = vst.msk [vmem:[#allocation13] sm:$0xff] %vm1203, %v1201
    %s1205 = scalar_lea.vmem [#allocation6], 24
    %v1206 = vld [vmem:[%s1205] sm:$0xff]
    %s1207 = sld [smem:[#allocation2 + $0x3]]
    %p1208 = scmp.ne.s32.totalorder %s1207, 0
    // Predicated region
    $region82: #{tpu_custom_call.1} parent=1 // pred_check
      %p1209 = pneg %p1208
    $region83: #{tpu_custom_call.1} parent=1 // pred_check_branch
      %1211 = sbr.rel (%p1209) target = $region85
    $region84: #{tpu_custom_call.1} parent=1 // pred_region
      _
    $region85: #{tpu_custom_call.1} parent=1 // pred_fallthru
      _
    %p1212 = pneg %p1208
    // Predicated region
    $region86: #{tpu_custom_call.1} parent=1 // pred_check
      _
    $region87: #{tpu_custom_call.1} parent=1 // pred_check_branch
      %1214 = sbr.rel (%p1208) target = $region89
    $region88: #{tpu_custom_call.1} parent=1 // pred_region
      %v1215 = vsel %vm439, %v1196, -inf
      %1216 = vmax.xlane.f32.xlu0 %v1215
      %v1217 = vpop.xlane.xlu0 %1216
      %vm1218 = vcmp.eq.f32.partialorder %v1196, %v1217
      %v1219 = vsel %vm1218, %v156, 16
      %v1220 = vsel %vm439, %v1219, 2147483647
      %v1221 = vand.u32 %v1220, 65535
      %v1222 = vshra.s32 %v1220, 16
      %v1223 = vcvt.s32.f32 %v1221
      %v1224 = vcvt.s32.f32 %v1222
      %1225 = vmin.xlane.f32.xlu0 %v1224
      %v1226 = vpop.xlane.xlu0 %1225
      %vm1227 = vcmp.eq.f32.partialorder %v1224, %v1226
      %v1228 = vsel %vm1227, %v1223, inf
      %1229 = vmin.xlane.f32.xlu0 %v1228
      %v1230 = vpop.xlane.xlu0 %1229
      %v1231 = vcvt.f32.s32 %v1230
      %v1232 = vcvt.f32.s32 %v1226
      %v1233 = vshll.u32 %v1232, 16
      %v1234 = vadd.s32 %v1233, %v1231
      %vm1235 = vcmp.eq.s32.totalorder %v156, %v1234
      %v1236 = vsel %vm1235, 1, 0
      %v1237 = vcvt.s32.f32 %v1236
      %v1239 = vsel %vm439, %v1237, 0
      %1241 = vmatprep.subr.mxu0 0.0
      %1242 = vmatpush1.msra.mxu0 %v131
      %1243 = vmatprep.subr.mxu0 0.0
      %1244 = vmatpush1.msra.mxu0 %v132
      %1245 = vmatprep.subr.mxu0 0.0
      %1246 = vmatpush1.msra.mxu0 0.0
      %1247 = vmatprep.subr.mxu0 0.0
      %1248 = vmatpush1.msra.mxu0 0.0
      %1249 = vmatprep.subr.mxu0 0.0
      %1250 = vmatpush1.msra.mxu0 0.0
      %1251 = vmatprep.subr.mxu0 0.0
      %1252 = vmatpush1.msra.mxu0 0.0
      %1253 = vmatprep.subr.mxu0 0.0
      %1254 = vmatpush1.msra.mxu0 0.0
      %1255 = vmatprep.subr.mxu0 0.0
      %1256 = vmatpush1.msra.mxu0 0.0
      %1257 = vmatprep.subr.mxu0 0.0
      %1258 = vmatpush1.msra.mxu0 0.0
      %1259 = vmatprep.subr.mxu0 0.0
      %1260 = vmatpush1.msra.mxu0 0.0
      %1261 = vmatprep.subr.mxu0 0.0
      %1262 = vmatpush1.msra.mxu0 0.0
      %1263 = vmatprep.subr.mxu0 0.0
      %1264 = vmatpush1.msra.mxu0 0.0
      %1265 = vmatprep.subr.mxu0 0.0
      %1266 = vmatpush1.msra.mxu0 0.0
      %1267 = vmatprep.subr.mxu0 0.0
      %1268 = vmatpush1.msra.mxu0 0.0
      %1269 = vmatprep.subr.mxu0 0.0
      %1270 = vmatpush1.msra.mxu0 0.0
      %1271 = vmatprep.subr.mxu0 0.0
      %1272 = vmatpush1.msra.mxu0 0.0
      %1273 = vmatprep.subr.mxu0 0.0
      %1274 = vmatpush1.msra.mxu0 0.0
      %1275 = vmatprep.subr.mxu0 0.0
      %1276 = vmatpush1.msra.mxu0 0.0
      %1277 = vmatprep.subr.mxu0 0.0
      %1278 = vmatpush1.msra.mxu0 0.0
      %1279 = vmatprep.subr.mxu0 0.0
      %1280 = vmatpush1.msra.mxu0 0.0
      %1281 = vmatprep.subr.mxu0 0.0
      %1282 = vmatpush1.msra.mxu0 0.0
      %1283 = vmatprep.subr.mxu0 0.0
      %1284 = vmatpush1.msra.mxu0 0.0
      %1285 = vmatprep.subr.mxu0 0.0
      %1286 = vmatpush1.msra.mxu0 0.0
      %1287 = vmatprep.subr.mxu0 0.0
      %1288 = vmatpush1.msra.mxu0 0.0
      %1289 = vmatprep.subr.mxu0 0.0
      %1290 = vmatpush1.msra.mxu0 0.0
      %1291 = vmatprep.subr.mxu0 0.0
      %1292 = vmatpush1.msra.mxu0 0.0
      %1293 = vmatprep.subr.mxu0 0.0
      %1294 = vmatpush1.msra.mxu0 0.0
      %1295 = vmatprep.subr.mxu0 0.0
      %1296 = vmatpush1.msra.mxu0 0.0
      %1297 = vmatprep.subr.mxu0 0.0
      %1298 = vmatpush1.msra.mxu0 0.0
      %1299 = vmatprep.subr.mxu0 0.0
      %1300 = vmatpush1.msra.mxu0 0.0
      %1301 = vmatprep.subr.mxu0 0.0
      %1302 = vmatpush1.msra.mxu0 0.0
      %1303 = vmatprep.subr.mxu0 0.0
      %1304 = vmatpush1.msra.mxu0 0.0
      %1305 = vmatprep.mubr.f32.mxu0 0.0
      %1306 = vmatmul.mubr.f32.gmra.mrb[0].mxu0 %v1239
      %v1307 = vpop.f32.mrb[0].mxu0
      %v1308 = vadd.f32 0.0, %v1307
      %v1309 = vpop.f32.mrb[0].mxu0
      %1310 = vdwg.mxu0
    $region89: #{tpu_custom_call.1} parent=1 // pred_fallthru
      %v1311 = vphi %v1206, %v1308
    %v1312 = vsel %vm158, %v1025, 0
    %1314 = vmatprep.subr.mxu0 0.0
    %1315 = vmatpush1.msra.mxu0 %v133
    %1316 = vmatprep.subr.mxu0 0.0
    %1317 = vmatpush1.msra.mxu0 %v134
    %1318 = vmatprep.subr.mxu0 0.0
    %1319 = vmatpush1.msra.mxu0 %v135
    %1320 = vmatprep.subr.mxu0 0.0
    %1321 = vmatpush1.msra.mxu0 %v136
    %1322 = vmatprep.subr.mxu0 0.0
    %1323 = vmatpush1.msra.mxu0 0.0
    %1324 = vmatprep.subr.mxu0 0.0
    %1325 = vmatpush1.msra.mxu0 0.0
    %1326 = vmatprep.subr.mxu0 0.0
    %1327 = vmatpush1.msra.mxu0 0.0
    %1328 = vmatprep.subr.mxu0 0.0
    %1329 = vmatpush1.msra.mxu0 0.0
    %1330 = vmatprep.subr.mxu0 0.0
    %1331 = vmatpush1.msra.mxu0 0.0
    %1332 = vmatprep.subr.mxu0 0.0
    %1333 = vmatpush1.msra.mxu0 0.0
    %1334 = vmatprep.subr.mxu0 0.0
    %1335 = vmatpush1.msra.mxu0 0.0
    %1336 = vmatprep.subr.mxu0 0.0
    %1337 = vmatpush1.msra.mxu0 0.0
    %1338 = vmatprep.subr.mxu0 0.0
    %1339 = vmatpush1.msra.mxu0 0.0
    %1340 = vmatprep.subr.mxu0 0.0
    %1341 = vmatpush1.msra.mxu0 0.0
    %1342 = vmatprep.subr.mxu0 0.0
    %1343 = vmatpush1.msra.mxu0 0.0
    %1344 = vmatprep.subr.mxu0 0.0
    %1345 = vmatpush1.msra.mxu0 0.0
    %1346 = vmatprep.subr.mxu0 0.0
    %1347 = vmatpush1.msra.mxu0 0.0
    %1348 = vmatprep.subr.mxu0 0.0
    %1349 = vmatpush1.msra.mxu0 0.0
    %1350 = vmatprep.subr.mxu0 0.0
    %1351 = vmatpush1.msra.mxu0 0.0
    %1352 = vmatprep.subr.mxu0 0.0
    %1353 = vmatpush1.msra.mxu0 0.0
    %1354 = vmatprep.subr.mxu0 0.0
    %1355 = vmatpush1.msra.mxu0 0.0
    %1356 = vmatprep.subr.mxu0 0.0
    %1357 = vmatpush1.msra.mxu0 0.0
    %1358 = vmatprep.subr.mxu0 0.0
    %1359 = vmatpush1.msra.mxu0 0.0
    %1360 = vmatprep.subr.mxu0 0.0
    %1361 = vmatpush1.msra.mxu0 0.0
    %1362 = vmatprep.subr.mxu0 0.0
    %1363 = vmatpush1.msra.mxu0 0.0
    %1364 = vmatprep.subr.mxu0 0.0
    %1365 = vmatpush1.msra.mxu0 0.0
    %1366 = vmatprep.subr.mxu0 0.0
    %1367 = vmatpush1.msra.mxu0 0.0
    %1368 = vmatprep.subr.mxu0 0.0
    %1369 = vmatpush1.msra.mxu0 0.0
    %1370 = vmatprep.subr.mxu0 0.0
    %1371 = vmatpush1.msra.mxu0 0.0
    %1372 = vmatprep.subr.mxu0 0.0
    %1373 = vmatpush1.msra.mxu0 0.0
    %1374 = vmatprep.subr.mxu0 0.0
    %1375 = vmatpush1.msra.mxu0 0.0
    %1376 = vmatprep.subr.mxu0 0.0
    %1377 = vmatpush1.msra.mxu0 0.0
    %1378 = vmatprep.mubr.f32.mxu0 0.0
    %1379 = vmatmul.mubr.f32.gmra.mrb[0].mxu0 %v1312
    %v1380 = vpop.f32.mrb[0].mxu0
    %v1381 = vadd.f32 0.0, %v1380
    %v1382 = vpop.f32.mrb[0].mxu0
    %1383 = vdwg.mxu0
    %v1384 = vadd.f32 %v1311, %v1381
    %v1385 = vtanh.pop %v1384
    %v1386 = vadd.f32 %v1385, 1.0
    %v1387 = vmul.f32 %v1386, 0.5
    %v1388 = vmul.f32 %v1387, %v1016
    %1390 = vrot.lane.b32.xlu0 %v1385, 64
    %v1391 = vpop.permute.xlu0 %1390
    %v1393 = vmul.f32 %v1387, %v1391
    %1395 = vrot.lane.b32.xlu0 %v1393, 32
    %v1396 = vpop.permute.xlu0 %1395
    %v1398 = vadd.f32 %v1388, %v1396
    %v1399 = vtanh.pop %v1398
    %1401 = vrot.lane.b32.xlu0 %v1399, 64
    %v1402 = vpop.permute.xlu0 %1401
    %v1404 = vmul.f32 %v1387, %v1402
    %1406 = vrot.lane.b32.xlu0 %v1404, 32
    %v1407 = vpop.permute.xlu0 %1406
    %1409 = vrot.lane.b32.xlu0 %v1123, 64
    %v1410 = vpop.permute.xlu0 %1409
    %v1412 = vsel %vm158, %v1407, %v1410
    %v1414 = vsel %vm266, %v1412, 0
    %1416 = vmatprep.subr.mxu0 0.0
    %1417 = vmatpush1.msra.mxu0 %v117
    %1418 = vmatprep.subr.mxu0 0.0
    %1419 = vmatpush1.msra.mxu0 %v118
    %1420 = vmatprep.subr.mxu0 0.0
    %1421 = vmatpush1.msra.mxu0 %v119
    %1422 = vmatprep.subr.mxu0 0.0
    %1423 = vmatpush1.msra.mxu0 %v120
    %1424 = vmatprep.subr.mxu0 0.0
    %1425 = vmatpush1.msra.mxu0 %v121
    %1426 = vmatprep.subr.mxu0 0.0
    %1427 = vmatpush1.msra.mxu0 %v122
    %1428 = vmatprep.subr.mxu0 0.0
    %1429 = vmatpush1.msra.mxu0 %v123
    %1430 = vmatprep.subr.mxu0 0.0
    %1431 = vmatpush1.msra.mxu0 %v124
    %1432 = vmatprep.subr.mxu0 0.0
    %1433 = vmatpush1.msra.mxu0 0.0
    %1434 = vmatprep.subr.mxu0 0.0
    %1435 = vmatpush1.msra.mxu0 0.0
    %1436 = vmatprep.subr.mxu0 0.0
    %1437 = vmatpush1.msra.mxu0 0.0
    %1438 = vmatprep.subr.mxu0 0.0
    %1439 = vmatpush1.msra.mxu0 0.0
    %1440 = vmatprep.subr.mxu0 0.0
    %1441 = vmatpush1.msra.mxu0 0.0
    %1442 = vmatprep.subr.mxu0 0.0
    %1443 = vmatpush1.msra.mxu0 0.0
    %1444 = vmatprep.subr.mxu0 0.0
    %1445 = vmatpush1.msra.mxu0 0.0
    %1446 = vmatprep.subr.mxu0 0.0
    %1447 = vmatpush1.msra.mxu0 0.0
    %1448 = vmatprep.subr.mxu0 0.0
    %1449 = vmatpush1.msra.mxu0 0.0
    %1450 = vmatprep.subr.mxu0 0.0
    %1451 = vmatpush1.msra.mxu0 0.0
    %1452 = vmatprep.subr.mxu0 0.0
    %1453 = vmatpush1.msra.mxu0 0.0
    %1454 = vmatprep.subr.mxu0 0.0
    %1455 = vmatpush1.msra.mxu0 0.0
    %1456 = vmatprep.subr.mxu0 0.0
    %1457 = vmatpush1.msra.mxu0 0.0
    %1458 = vmatprep.subr.mxu0 0.0
    %1459 = vmatpush1.msra.mxu0 0.0
    %1460 = vmatprep.subr.mxu0 0.0
    %1461 = vmatpush1.msra.mxu0 0.0
    %1462 = vmatprep.subr.mxu0 0.0
    %1463 = vmatpush1.msra.mxu0 0.0
    %1464 = vmatprep.subr.mxu0 0.0
    %1465 = vmatpush1.msra.mxu0 0.0
    %1466 = vmatprep.subr.mxu0 0.0
    %1467 = vmatpush1.msra.mxu0 0.0
    %1468 = vmatprep.subr.mxu0 0.0
    %1469 = vmatpush1.msra.mxu0 0.0
    %1470 = vmatprep.subr.mxu0 0.0
    %1471 = vmatpush1.msra.mxu0 0.0
    %1472 = vmatprep.subr.mxu0 0.0
    %1473 = vmatpush1.msra.mxu0 0.0
    %1474 = vmatprep.subr.mxu0 0.0
    %1475 = vmatpush1.msra.mxu0 0.0
    %1476 = vmatprep.subr.mxu0 0.0
    %1477 = vmatpush1.msra.mxu0 0.0
    %1478 = vmatprep.subr.mxu0 0.0
    %1479 = vmatpush1.msra.mxu0 0.0
    %1480 = vmatprep.mubr.f32.mxu0 0.0
    %1481 = vmatmul.mubr.f32.gmra.mrb[0].mxu0 %v1414
    %v1482 = vpop.f32.mrb[0].mxu0
    %v1483 = vadd.f32 %v141, %v1482
    %v1484 = vpop.f32.mrb[0].mxu0
    %1485 = vdwg.mxu0
    %v1486 = vtanh.pop %v1483
    %v1487 = vadd.f32 %v1486, 1.0
    %v1488 = vmul.f32 %v1487, 0.5
    %v1489 = vmul.f32 %v1488, %v1117
    %1491 = vrot.lane.b32.xlu0 %v1486, 64
    %v1492 = vpop.permute.xlu0 %1491
    %v1494 = vmul.f32 %v1488, %v1492
    %1496 = vrot.lane.b32.xlu0 %v1494, 32
    %v1497 = vpop.permute.xlu0 %1496
    %v1499 = vadd.f32 %v1489, %v1497
    %v1500 = vtanh.pop %v1499
    %1502 = vrot.lane.b32.xlu0 %v1500, 64
    %v1503 = vpop.permute.xlu0 %1502
    %v1505 = vmul.f32 %v1488, %v1503
    %1507 = vrot.lane.b32.xlu0 %v1505, 32
    %v1508 = vpop.permute.xlu0 %1507
    %v1509 = vsel %vm158, %v1508, 0
    %1511 = vmatprep.subr.mxu0 0.0
    %1512 = vmatpush1.msra.mxu0 %v126
    %1513 = vmatprep.subr.mxu0 0.0
    %1514 = vmatpush1.msra.mxu0 %v127
    %1515 = vmatprep.subr.mxu0 0.0
    %1516 = vmatpush1.msra.mxu0 %v128
    %1517 = vmatprep.subr.mxu0 0.0
    %1518 = vmatpush1.msra.mxu0 %v129
    %1519 = vmatprep.subr.mxu0 0.0
    %1520 = vmatpush1.msra.mxu0 0.0
    %1521 = vmatprep.subr.mxu0 0.0
    %1522 = vmatpush1.msra.mxu0 0.0
    %1523 = vmatprep.subr.mxu0 0.0
    %1524 = vmatpush1.msra.mxu0 0.0
    %1525 = vmatprep.subr.mxu0 0.0
    %1526 = vmatpush1.msra.mxu0 0.0
    %1527 = vmatprep.subr.mxu0 0.0
    %1528 = vmatpush1.msra.mxu0 0.0
    %1529 = vmatprep.subr.mxu0 0.0
    %1530 = vmatpush1.msra.mxu0 0.0
    %1531 = vmatprep.subr.mxu0 0.0
    %1532 = vmatpush1.msra.mxu0 0.0
    %1533 = vmatprep.subr.mxu0 0.0
    %1534 = vmatpush1.msra.mxu0 0.0
    %1535 = vmatprep.subr.mxu0 0.0
    %1536 = vmatpush1.msra.mxu0 0.0
    %1537 = vmatprep.subr.mxu0 0.0
    %1538 = vmatpush1.msra.mxu0 0.0
    %1539 = vmatprep.subr.mxu0 0.0
    %1540 = vmatpush1.msra.mxu0 0.0
    %1541 = vmatprep.subr.mxu0 0.0
    %1542 = vmatpush1.msra.mxu0 0.0
    %1543 = vmatprep.subr.mxu0 0.0
    %1544 = vmatpush1.msra.mxu0 0.0
    %1545 = vmatprep.subr.mxu0 0.0
    %1546 = vmatpush1.msra.mxu0 0.0
    %1547 = vmatprep.subr.mxu0 0.0
    %1548 = vmatpush1.msra.mxu0 0.0
    %1549 = vmatprep.subr.mxu0 0.0
    %1550 = vmatpush1.msra.mxu0 0.0
    %1551 = vmatprep.subr.mxu0 0.0
    %1552 = vmatpush1.msra.mxu0 0.0
    %1553 = vmatprep.subr.mxu0 0.0
    %1554 = vmatpush1.msra.mxu0 0.0
    %1555 = vmatprep.subr.mxu0 0.0
    %1556 = vmatpush1.msra.mxu0 0.0
    %1557 = vmatprep.subr.mxu0 0.0
    %1558 = vmatpush1.msra.mxu0 0.0
    %1559 = vmatprep.subr.mxu0 0.0
    %1560 = vmatpush1.msra.mxu0 0.0
    %1561 = vmatprep.subr.mxu0 0.0
    %1562 = vmatpush1.msra.mxu0 0.0
    %1563 = vmatprep.subr.mxu0 0.0
    %1564 = vmatpush1.msra.mxu0 0.0
    %1565 = vmatprep.subr.mxu0 0.0
    %1566 = vmatpush1.msra.mxu0 0.0
    %1567 = vmatprep.subr.mxu0 0.0
    %1568 = vmatpush1.msra.mxu0 0.0
    %1569 = vmatprep.subr.mxu0 0.0
    %1570 = vmatpush1.msra.mxu0 0.0
    %1571 = vmatprep.subr.mxu0 0.0
    %1572 = vmatpush1.msra.mxu0 0.0
    %1573 = vmatprep.subr.mxu0 0.0
    %1574 = vmatpush1.msra.mxu0 0.0
    %1575 = vmatprep.mubr.f32.mxu0 0.0
    %1576 = vmatmul.mubr.f32.gmra.mrb[0].mxu0 %v1509
    %v1577 = vpop.f32.mrb[0].mxu0
    %v1578 = vadd.f32 %v147, %v1577
    %v1579 = vpop.f32.mrb[0].mxu0
    %1580 = vdwg.mxu0
    %1582 = vrot.lane.b32.xlu0 %v1578, 48
    %v1583 = vpop.permute.xlu0 %1582
    %vm1585 = vcmask 523648
    %1586 = vst.msk [vmem:[#allocation13] sm:$0xff] %vm1585, %v1583
    %s1587 = scalar_lea.vmem [#allocation6], 32
    %v1588 = vld [vmem:[%s1587] sm:$0xff]
    %s1589 = sld [smem:[#allocation2 + $0x4]]
    %p1590 = scmp.ne.s32.totalorder %s1589, 0
    // Predicated region
    $region90: #{tpu_custom_call.1} parent=1 // pred_check
      %p1591 = pneg %p1590
    $region91: #{tpu_custom_call.1} parent=1 // pred_check_branch
      %1593 = sbr.rel (%p1591) target = $region93
    $region92: #{tpu_custom_call.1} parent=1 // pred_region
      _
    $region93: #{tpu_custom_call.1} parent=1 // pred_fallthru
      _
    %p1594 = pneg %p1590
    // Predicated region
    $region94: #{tpu_custom_call.1} parent=1 // pred_check
      _
    $region95: #{tpu_custom_call.1} parent=1 // pred_check_branch
      %1596 = sbr.rel (%p1590) target = $region97
    $region96: #{tpu_custom_call.1} parent=1 // pred_region
      %v1597 = vsel %vm439, %v1578, -inf
      %1598 = vmax.xlane.f32.xlu0 %v1597
      %v1599 = vpop.xlane.xlu0 %1598
      %vm1600 = vcmp.eq.f32.partialorder %v1578, %v1599
      %v1601 = vsel %vm1600, %v156, 16
      %v1602 = vsel %vm439, %v1601, 2147483647
      %v1603 = vand.u32 %v1602, 65535
      %v1604 = vshra.s32 %v1602, 16
      %v1605 = vcvt.s32.f32 %v1603
      %v1606 = vcvt.s32.f32 %v1604
      %1607 = vmin.xlane.f32.xlu0 %v1606
      %v1608 = vpop.xlane.xlu0 %1607
      %vm1609 = vcmp.eq.f32.partialorder %v1606, %v1608
      %v1610 = vsel %vm1609, %v1605, inf
      %1611 = vmin.xlane.f32.xlu0 %v1610
      %v1612 = vpop.xlane.xlu0 %1611
      %v1613 = vcvt.f32.s32 %v1612
      %v1614 = vcvt.f32.s32 %v1608
      %v1615 = vshll.u32 %v1614, 16
      %v1616 = vadd.s32 %v1615, %v1613
      %vm1617 = vcmp.eq.s32.totalorder %v156, %v1616
      %v1618 = vsel %vm1617, 1, 0
      %v1619 = vcvt.s32.f32 %v1618
      %v1621 = vsel %vm439, %v1619, 0
      %1623 = vmatprep.subr.mxu0 0.0
      %1624 = vmatpush1.msra.mxu0 %v131
      %1625 = vmatprep.subr.mxu0 0.0
      %1626 = vmatpush1.msra.mxu0 %v132
      %1627 = vmatprep.subr.mxu0 0.0
      %1628 = vmatpush1.msra.mxu0 0.0
      %1629 = vmatprep.subr.mxu0 0.0
      %1630 = vmatpush1.msra.mxu0 0.0
      %1631 = vmatprep.subr.mxu0 0.0
      %1632 = vmatpush1.msra.mxu0 0.0
      %1633 = vmatprep.subr.mxu0 0.0
      %1634 = vmatpush1.msra.mxu0 0.0
      %1635 = vmatprep.subr.mxu0 0.0
      %1636 = vmatpush1.msra.mxu0 0.0
      %1637 = vmatprep.subr.mxu0 0.0
      %1638 = vmatpush1.msra.mxu0 0.0
      %1639 = vmatprep.subr.mxu0 0.0
      %1640 = vmatpush1.msra.mxu0 0.0
      %1641 = vmatprep.subr.mxu0 0.0
      %1642 = vmatpush1.msra.mxu0 0.0
      %1643 = vmatprep.subr.mxu0 0.0
      %1644 = vmatpush1.msra.mxu0 0.0
      %1645 = vmatprep.subr.mxu0 0.0
      %1646 = vmatpush1.msra.mxu0 0.0
      %1647 = vmatprep.subr.mxu0 0.0
      %1648 = vmatpush1.msra.mxu0 0.0
      %1649 = vmatprep.subr.mxu0 0.0
      %1650 = vmatpush1.msra.mxu0 0.0
      %1651 = vmatprep.subr.mxu0 0.0
      %1652 = vmatpush1.msra.mxu0 0.0
      %1653 = vmatprep.subr.mxu0 0.0
      %1654 = vmatpush1.msra.mxu0 0.0
      %1655 = vmatprep.subr.mxu0 0.0
      %1656 = vmatpush1.msra.mxu0 0.0
      %1657 = vmatprep.subr.mxu0 0.0
      %1658 = vmatpush1.msra.mxu0 0.0
      %1659 = vmatprep.subr.mxu0 0.0
      %1660 = vmatpush1.msra.mxu0 0.0
      %1661 = vmatprep.subr.mxu0 0.0
      %1662 = vmatpush1.msra.mxu0 0.0
      %1663 = vmatprep.subr.mxu0 0.0
      %1664 = vmatpush1.msra.mxu0 0.0
      %1665 = vmatprep.subr.mxu0 0.0
      %1666 = vmatpush1.msra.mxu0 0.0
      %1667 = vmatprep.subr.mxu0 0.0
      %1668 = vmatpush1.msra.mxu0 0.0
      %1669 = vmatprep.subr.mxu0 0.0
      %1670 = vmatpush1.msra.mxu0 0.0
      %1671 = vmatprep.subr.mxu0 0.0
      %1672 = vmatpush1.msra.mxu0 0.0
      %1673 = vmatprep.subr.mxu0 0.0
      %1674 = vmatpush1.msra.mxu0 0.0
      %1675 = vmatprep.subr.mxu0 0.0
      %1676 = vmatpush1.msra.mxu0 0.0
      %1677 = vmatprep.subr.mxu0 0.0
      %1678 = vmatpush1.msra.mxu0 0.0
      %1679 = vmatprep.subr.mxu0 0.0
      %1680 = vmatpush1.msra.mxu0 0.0
      %1681 = vmatprep.subr.mxu0 0.0
      %1682 = vmatpush1.msra.mxu0 0.0
      %1683 = vmatprep.subr.mxu0 0.0
      %1684 = vmatpush1.msra.mxu0 0.0
      %1685 = vmatprep.subr.mxu0 0.0
      %1686 = vmatpush1.msra.mxu0 0.0
      %1687 = vmatprep.mubr.f32.mxu0 0.0
      %1688 = vmatmul.mubr.f32.gmra.mrb[0].mxu0 %v1621
      %v1689 = vpop.f32.mrb[0].mxu0
      %v1690 = vadd.f32 0.0, %v1689
      %v1691 = vpop.f32.mrb[0].mxu0
      %1692 = vdwg.mxu0
    $region97: #{tpu_custom_call.1} parent=1 // pred_fallthru
      %v1693 = vphi %v1588, %v1690
    %v1694 = vsel %vm158, %v1407, 0
    %1696 = vmatprep.subr.mxu0 0.0
    %1697 = vmatpush1.msra.mxu0 %v133
    %1698 = vmatprep.subr.mxu0 0.0
    %1699 = vmatpush1.msra.mxu0 %v134
    %1700 = vmatprep.subr.mxu0 0.0
    %1701 = vmatpush1.msra.mxu0 %v135
    %1702 = vmatprep.subr.mxu0 0.0
    %1703 = vmatpush1.msra.mxu0 %v136
    %1704 = vmatprep.subr.mxu0 0.0
    %1705 = vmatpush1.msra.mxu0 0.0
    %1706 = vmatprep.subr.mxu0 0.0
    %1707 = vmatpush1.msra.mxu0 0.0
    %1708 = vmatprep.subr.mxu0 0.0
    %1709 = vmatpush1.msra.mxu0 0.0
    %1710 = vmatprep.subr.mxu0 0.0
    %1711 = vmatpush1.msra.mxu0 0.0
    %1712 = vmatprep.subr.mxu0 0.0
    %1713 = vmatpush1.msra.mxu0 0.0
    %1714 = vmatprep.subr.mxu0 0.0
    %1715 = vmatpush1.msra.mxu0 0.0
    %1716 = vmatprep.subr.mxu0 0.0
    %1717 = vmatpush1.msra.mxu0 0.0
    %1718 = vmatprep.subr.mxu0 0.0
    %1719 = vmatpush1.msra.mxu0 0.0
    %1720 = vmatprep.subr.mxu0 0.0
    %1721 = vmatpush1.msra.mxu0 0.0
    %1722 = vmatprep.subr.mxu0 0.0
    %1723 = vmatpush1.msra.mxu0 0.0
    %1724 = vmatprep.subr.mxu0 0.0
    %1725 = vmatpush1.msra.mxu0 0.0
    %1726 = vmatprep.subr.mxu0 0.0
    %1727 = vmatpush1.msra.mxu0 0.0
    %1728 = vmatprep.subr.mxu0 0.0
    %1729 = vmatpush1.msra.mxu0 0.0
    %1730 = vmatprep.subr.mxu0 0.0
    %1731 = vmatpush1.msra.mxu0 0.0
    %1732 = vmatprep.subr.mxu0 0.0
    %1733 = vmatpush1.msra.mxu0 0.0
    %1734 = vmatprep.subr.mxu0 0.0
    %1735 = vmatpush1.msra.mxu0 0.0
    %1736 = vmatprep.subr.mxu0 0.0
    %1737 = vmatpush1.msra.mxu0 0.0
    %1738 = vmatprep.subr.mxu0 0.0
    %1739 = vmatpush1.msra.mxu0 0.0
    %1740 = vmatprep.subr.mxu0 0.0
    %1741 = vmatpush1.msra.mxu0 0.0
    %1742 = vmatprep.subr.mxu0 0.0
    %1743 = vmatpush1.msra.mxu0 0.0
    %1744 = vmatprep.subr.mxu0 0.0
    %1745 = vmatpush1.msra.mxu0 0.0
    %1746 = vmatprep.subr.mxu0 0.0
    %1747 = vmatpush1.msra.mxu0 0.0
    %1748 = vmatprep.subr.mxu0 0.0
    %1749 = vmatpush1.msra.mxu0 0.0
    %1750 = vmatprep.subr.mxu0 0.0
    %1751 = vmatpush1.msra.mxu0 0.0
    %1752 = vmatprep.subr.mxu0 0.0
    %1753 = vmatpush1.msra.mxu0 0.0
    %1754 = vmatprep.subr.mxu0 0.0
    %1755 = vmatpush1.msra.mxu0 0.0
    %1756 = vmatprep.subr.mxu0 0.0
    %1757 = vmatpush1.msra.mxu0 0.0
    %1758 = vmatprep.subr.mxu0 0.0
    %1759 = vmatpush1.msra.mxu0 0.0
    %1760 = vmatprep.mubr.f32.mxu0 0.0
    %1761 = vmatmul.mubr.f32.gmra.mrb[0].mxu0 %v1694
    %v1762 = vpop.f32.mrb[0].mxu0
    %v1763 = vadd.f32 0.0, %v1762
    %v1764 = vpop.f32.mrb[0].mxu0
    %1765 = vdwg.mxu0
    %v1766 = vadd.f32 %v1693, %v1763
    %v1767 = vtanh.pop %v1766
    %v1768 = vadd.f32 %v1767, 1.0
    %v1769 = vmul.f32 %v1768, 0.5
    %v1770 = vmul.f32 %v1769, %v1398
    %1772 = vrot.lane.b32.xlu0 %v1767, 64
    %v1773 = vpop.permute.xlu0 %1772
    %v1775 = vmul.f32 %v1769, %v1773
    %1777 = vrot.lane.b32.xlu0 %v1775, 32
    %v1778 = vpop.permute.xlu0 %1777
    %v1780 = vadd.f32 %v1770, %v1778
    %v1781 = vtanh.pop %v1780
    %1783 = vrot.lane.b32.xlu0 %v1781, 64
    %v1784 = vpop.permute.xlu0 %1783
    %v1786 = vmul.f32 %v1769, %v1784
    %1788 = vrot.lane.b32.xlu0 %v1786, 32
    %v1789 = vpop.permute.xlu0 %1788
    %1791 = vrot.lane.b32.xlu0 %v1505, 64
    %v1792 = vpop.permute.xlu0 %1791
    %v1794 = vsel %vm158, %v1789, %v1792
    %v1796 = vsel %vm266, %v1794, 0
    %1798 = vmatprep.subr.mxu0 0.0
    %1799 = vmatpush1.msra.mxu0 %v117
    %1800 = vmatprep.subr.mxu0 0.0
    %1801 = vmatpush1.msra.mxu0 %v118
    %1802 = vmatprep.subr.mxu0 0.0
    %1803 = vmatpush1.msra.mxu0 %v119
    %1804 = vmatprep.subr.mxu0 0.0
    %1805 = vmatpush1.msra.mxu0 %v120
    %1806 = vmatprep.subr.mxu0 0.0
    %1807 = vmatpush1.msra.mxu0 %v121
    %1808 = vmatprep.subr.mxu0 0.0
    %1809 = vmatpush1.msra.mxu0 %v122
    %1810 = vmatprep.subr.mxu0 0.0
    %1811 = vmatpush1.msra.mxu0 %v123
    %1812 = vmatprep.subr.mxu0 0.0
    %1813 = vmatpush1.msra.mxu0 %v124
    %1814 = vmatprep.subr.mxu0 0.0
    %1815 = vmatpush1.msra.mxu0 0.0
    %1816 = vmatprep.subr.mxu0 0.0
    %1817 = vmatpush1.msra.mxu0 0.0
    %1818 = vmatprep.subr.mxu0 0.0
    %1819 = vmatpush1.msra.mxu0 0.0
    %1820 = vmatprep.subr.mxu0 0.0
    %1821 = vmatpush1.msra.mxu0 0.0
    %1822 = vmatprep.subr.mxu0 0.0
    %1823 = vmatpush1.msra.mxu0 0.0
    %1824 = vmatprep.subr.mxu0 0.0
    %1825 = vmatpush1.msra.mxu0 0.0
    %1826 = vmatprep.subr.mxu0 0.0
    %1827 = vmatpush1.msra.mxu0 0.0
    %1828 = vmatprep.subr.mxu0 0.0
    %1829 = vmatpush1.msra.mxu0 0.0
    %1830 = vmatprep.subr.mxu0 0.0
    %1831 = vmatpush1.msra.mxu0 0.0
    %1832 = vmatprep.subr.mxu0 0.0
    %1833 = vmatpush1.msra.mxu0 0.0
    %1834 = vmatprep.subr.mxu0 0.0
    %1835 = vmatpush1.msra.mxu0 0.0
    %1836 = vmatprep.subr.mxu0 0.0
    %1837 = vmatpush1.msra.mxu0 0.0
    %1838 = vmatprep.subr.mxu0 0.0
    %1839 = vmatpush1.msra.mxu0 0.0
    %1840 = vmatprep.subr.mxu0 0.0
    %1841 = vmatpush1.msra.mxu0 0.0
    %1842 = vmatprep.subr.mxu0 0.0
    %1843 = vmatpush1.msra.mxu0 0.0
    %1844 = vmatprep.subr.mxu0 0.0
    %1845 = vmatpush1.msra.mxu0 0.0
    %1846 = vmatprep.subr.mxu0 0.0
    %1847 = vmatpush1.msra.mxu0 0.0
    %1848 = vmatprep.subr.mxu0 0.0
    %1849 = vmatpush1.msra.mxu0 0.0
    %1850 = vmatprep.subr.mxu0 0.0
    %1851 = vmatpush1.msra.mxu0 0.0
    %1852 = vmatprep.subr.mxu0 0.0
    %1853 = vmatpush1.msra.mxu0 0.0
    %1854 = vmatprep.subr.mxu0 0.0
    %1855 = vmatpush1.msra.mxu0 0.0
    %1856 = vmatprep.subr.mxu0 0.0
    %1857 = vmatpush1.msra.mxu0 0.0
    %1858 = vmatprep.subr.mxu0 0.0
    %1859 = vmatpush1.msra.mxu0 0.0
    %1860 = vmatprep.subr.mxu0 0.0
    %1861 = vmatpush1.msra.mxu0 0.0
    %1862 = vmatprep.mubr.f32.mxu0 0.0
    %1863 = vmatmul.mubr.f32.gmra.mrb[0].mxu0 %v1796
    %v1864 = vpop.f32.mrb[0].mxu0
    %v1865 = vadd.f32 %v141, %v1864
    %v1866 = vpop.f32.mrb[0].mxu0
    %1867 = vdwg.mxu0
    %v1868 = vtanh.pop %v1865
    %v1869 = vadd.f32 %v1868, 1.0
    %v1870 = vmul.f32 %v1869, 0.5
    %v1871 = vmul.f32 %v1870, %v1499
    %1873 = vrot.lane.b32.xlu0 %v1868, 64
    %v1874 = vpop.permute.xlu0 %1873
    %v1876 = vmul.f32 %v1870, %v1874
    %1878 = vrot.lane.b32.xlu0 %v1876, 32
    %v1879 = vpop.permute.xlu0 %1878
    %v1881 = vadd.f32 %v1871, %v1879
    %v1882 = vtanh.pop %v1881
    %1884 = vrot.lane.b32.xlu0 %v1882, 64
    %v1885 = vpop.permute.xlu0 %1884
    %v1887 = vmul.f32 %v1870, %v1885
    %1889 = vrot.lane.b32.xlu0 %v1887, 32
    %v1890 = vpop.permute.xlu0 %1889
    %v1891 = vsel %vm158, %v1890, 0
    %1893 = vmatprep.subr.mxu0 0.0
    %1894 = vmatpush1.msra.mxu0 %v126
    %1895 = vmatprep.subr.mxu0 0.0
    %1896 = vmatpush1.msra.mxu0 %v127
    %1897 = vmatprep.subr.mxu0 0.0
    %1898 = vmatpush1.msra.mxu0 %v128
    %1899 = vmatprep.subr.mxu0 0.0
    %1900 = vmatpush1.msra.mxu0 %v129
    %1901 = vmatprep.subr.mxu0 0.0
    %1902 = vmatpush1.msra.mxu0 0.0
    %1903 = vmatprep.subr.mxu0 0.0
    %1904 = vmatpush1.msra.mxu0 0.0
    %1905 = vmatprep.subr.mxu0 0.0
    %1906 = vmatpush1.msra.mxu0 0.0
    %1907 = vmatprep.subr.mxu0 0.0
    %1908 = vmatpush1.msra.mxu0 0.0
    %1909 = vmatprep.subr.mxu0 0.0
    %1910 = vmatpush1.msra.mxu0 0.0
    %1911 = vmatprep.subr.mxu0 0.0
    %1912 = vmatpush1.msra.mxu0 0.0
    %1913 = vmatprep.subr.mxu0 0.0
    %1914 = vmatpush1.msra.mxu0 0.0
    %1915 = vmatprep.subr.mxu0 0.0
    %1916 = vmatpush1.msra.mxu0 0.0
    %1917 = vmatprep.subr.mxu0 0.0
    %1918 = vmatpush1.msra.mxu0 0.0
    %1919 = vmatprep.subr.mxu0 0.0
    %1920 = vmatpush1.msra.mxu0 0.0
    %1921 = vmatprep.subr.mxu0 0.0
    %1922 = vmatpush1.msra.mxu0 0.0
    %1923 = vmatprep.subr.mxu0 0.0
    %1924 = vmatpush1.msra.mxu0 0.0
    %1925 = vmatprep.subr.mxu0 0.0
    %1926 = vmatpush1.msra.mxu0 0.0
    %1927 = vmatprep.subr.mxu0 0.0
    %1928 = vmatpush1.msra.mxu0 0.0
    %1929 = vmatprep.subr.mxu0 0.0
    %1930 = vmatpush1.msra.mxu0 0.0
    %1931 = vmatprep.subr.mxu0 0.0
    %1932 = vmatpush1.msra.mxu0 0.0
    %1933 = vmatprep.subr.mxu0 0.0
    %1934 = vmatpush1.msra.mxu0 0.0
    %1935 = vmatprep.subr.mxu0 0.0
    %1936 = vmatpush1.msra.mxu0 0.0
    %1937 = vmatprep.subr.mxu0 0.0
    %1938 = vmatpush1.msra.mxu0 0.0
    %1939 = vmatprep.subr.mxu0 0.0
    %1940 = vmatpush1.msra.mxu0 0.0
    %1941 = vmatprep.subr.mxu0 0.0
    %1942 = vmatpush1.msra.mxu0 0.0
    %1943 = vmatprep.subr.mxu0 0.0
    %1944 = vmatpush1.msra.mxu0 0.0
    %1945 = vmatprep.subr.mxu0 0.0
    %1946 = vmatpush1.msra.mxu0 0.0
    %1947 = vmatprep.subr.mxu0 0.0
    %1948 = vmatpush1.msra.mxu0 0.0
    %1949 = vmatprep.subr.mxu0 0.0
    %1950 = vmatpush1.msra.mxu0 0.0
    %1951 = vmatprep.subr.mxu0 0.0
    %1952 = vmatpush1.msra.mxu0 0.0
    %1953 = vmatprep.subr.mxu0 0.0
    %1954 = vmatpush1.msra.mxu0 0.0
    %1955 = vmatprep.subr.mxu0 0.0
    %1956 = vmatpush1.msra.mxu0 0.0
    %1957 = vmatprep.mubr.f32.mxu0 0.0
    %1958 = vmatmul.mubr.f32.gmra.mrb[0].mxu0 %v1891
    %v1959 = vpop.f32.mrb[0].mxu0
    %v1960 = vadd.f32 %v147, %v1959
    %v1961 = vpop.f32.mrb[0].mxu0
    %1962 = vdwg.mxu0
    %1964 = vrot.lane.b32.xlu0 %v1960, 64
    %v1965 = vpop.permute.xlu0 %1964
    %vm1967 = vcmask 654848
    %1968 = vst.msk [vmem:[#allocation13] sm:$0xff] %vm1967, %v1965
    %s1969 = scalar_lea.vmem [#allocation6], 40
    %v1970 = vld [vmem:[%s1969] sm:$0xff]
    %s1971 = sld [smem:[#allocation2 + $0x5]]
    %p1972 = scmp.ne.s32.totalorder %s1971, 0
    // Predicated region
    $region98: #{tpu_custom_call.1} parent=1 // pred_check
      %p1973 = pneg %p1972
    $region99: #{tpu_custom_call.1} parent=1 // pred_check_branch
      %1975 = sbr.rel (%p1973) target = $region101
    $region100: #{tpu_custom_call.1} parent=1 // pred_region
      _
    $region101: #{tpu_custom_call.1} parent=1 // pred_fallthru
      _
    %p1976 = pneg %p1972
    // Predicated region
    $region102: #{tpu_custom_call.1} parent=1 // pred_check
      _
    $region103: #{tpu_custom_call.1} parent=1 // pred_check_branch
      %1978 = sbr.rel (%p1972) target = $region105
    $region104: #{tpu_custom_call.1} parent=1 // pred_region
      %v1979 = vsel %vm439, %v1960, -inf
      %1980 = vmax.xlane.f32.xlu0 %v1979
      %v1981 = vpop.xlane.xlu0 %1980
      %vm1982 = vcmp.eq.f32.partialorder %v1960, %v1981
      %v1983 = vsel %vm1982, %v156, 16
      %v1984 = vsel %vm439, %v1983, 2147483647
      %v1985 = vand.u32 %v1984, 65535
      %v1986 = vshra.s32 %v1984, 16
      %v1987 = vcvt.s32.f32 %v1985
      %v1988 = vcvt.s32.f32 %v1986
      %1989 = vmin.xlane.f32.xlu0 %v1988
      %v1990 = vpop.xlane.xlu0 %1989
      %vm1991 = vcmp.eq.f32.partialorder %v1988, %v1990
      %v1992 = vsel %vm1991, %v1987, inf
      %1993 = vmin.xlane.f32.xlu0 %v1992
      %v1994 = vpop.xlane.xlu0 %1993
      %v1995 = vcvt.f32.s32 %v1994
      %v1996 = vcvt.f32.s32 %v1990
      %v1997 = vshll.u32 %v1996, 16
      %v1998 = vadd.s32 %v1997, %v1995
      %vm1999 = vcmp.eq.s32.totalorder %v156, %v1998
      %v2000 = vsel %vm1999, 1, 0
      %v2001 = vcvt.s32.f32 %v2000
      %v2003 = vsel %vm439, %v2001, 0
      %2005 = vmatprep.subr.mxu0 0.0
      %2006 = vmatpush1.msra.mxu0 %v131
      %2007 = vmatprep.subr.mxu0 0.0
      %2008 = vmatpush1.msra.mxu0 %v132
      %2009 = vmatprep.subr.mxu0 0.0
      %2010 = vmatpush1.msra.mxu0 0.0
      %2011 = vmatprep.subr.mxu0 0.0
      %2012 = vmatpush1.msra.mxu0 0.0
      %2013 = vmatprep.subr.mxu0 0.0
      %2014 = vmatpush1.msra.mxu0 0.0
      %2015 = vmatprep.subr.mxu0 0.0
      %2016 = vmatpush1.msra.mxu0 0.0
      %2017 = vmatprep.subr.mxu0 0.0
      %2018 = vmatpush1.msra.mxu0 0.0
      %2019 = vmatprep.subr.mxu0 0.0
      %2020 = vmatpush1.msra.mxu0 0.0
      %2021 = vmatprep.subr.mxu0 0.0
      %2022 = vmatpush1.msra.mxu0 0.0
      %2023 = vmatprep.subr.mxu0 0.0
      %2024 = vmatpush1.msra.mxu0 0.0
      %2025 = vmatprep.subr.mxu0 0.0
      %2026 = vmatpush1.msra.mxu0 0.0
      %2027 = vmatprep.subr.mxu0 0.0
      %2028 = vmatpush1.msra.mxu0 0.0
      %2029 = vmatprep.subr.mxu0 0.0
      %2030 = vmatpush1.msra.mxu0 0.0
      %2031 = vmatprep.subr.mxu0 0.0
      %2032 = vmatpush1.msra.mxu0 0.0
      %2033 = vmatprep.subr.mxu0 0.0
      %2034 = vmatpush1.msra.mxu0 0.0
      %2035 = vmatprep.subr.mxu0 0.0
      %2036 = vmatpush1.msra.mxu0 0.0
      %2037 = vmatprep.subr.mxu0 0.0
      %2038 = vmatpush1.msra.mxu0 0.0
      %2039 = vmatprep.subr.mxu0 0.0
      %2040 = vmatpush1.msra.mxu0 0.0
      %2041 = vmatprep.subr.mxu0 0.0
      %2042 = vmatpush1.msra.mxu0 0.0
      %2043 = vmatprep.subr.mxu0 0.0
      %2044 = vmatpush1.msra.mxu0 0.0
      %2045 = vmatprep.subr.mxu0 0.0
      %2046 = vmatpush1.msra.mxu0 0.0
      %2047 = vmatprep.subr.mxu0 0.0
      %2048 = vmatpush1.msra.mxu0 0.0
      %2049 = vmatprep.subr.mxu0 0.0
      %2050 = vmatpush1.msra.mxu0 0.0
      %2051 = vmatprep.subr.mxu0 0.0
      %2052 = vmatpush1.msra.mxu0 0.0
      %2053 = vmatprep.subr.mxu0 0.0
      %2054 = vmatpush1.msra.mxu0 0.0
      %2055 = vmatprep.subr.mxu0 0.0
      %2056 = vmatpush1.msra.mxu0 0.0
      %2057 = vmatprep.subr.mxu0 0.0
      %2058 = vmatpush1.msra.mxu0 0.0
      %2059 = vmatprep.subr.mxu0 0.0
      %2060 = vmatpush1.msra.mxu0 0.0
      %2061 = vmatprep.subr.mxu0 0.0
      %2062 = vmatpush1.msra.mxu0 0.0
      %2063 = vmatprep.subr.mxu0 0.0
      %2064 = vmatpush1.msra.mxu0 0.0
      %2065 = vmatprep.subr.mxu0 0.0
      %2066 = vmatpush1.msra.mxu0 0.0
      %2067 = vmatprep.subr.mxu0 0.0
      %2068 = vmatpush1.msra.mxu0 0.0
      %2069 = vmatprep.mubr.f32.mxu0 0.0
      %2070 = vmatmul.mubr.f32.gmra.mrb[0].mxu0 %v2003
      %v2071 = vpop.f32.mrb[0].mxu0
      %v2072 = vadd.f32 0.0, %v2071
      %v2073 = vpop.f32.mrb[0].mxu0
      %2074 = vdwg.mxu0
    $region105: #{tpu_custom_call.1} parent=1 // pred_fallthru
      %v2075 = vphi %v1970, %v2072
    %v2076 = vsel %vm158, %v1789, 0
    %2078 = vmatprep.subr.mxu0 0.0
    %2079 = vmatpush1.msra.mxu0 %v133
    %2080 = vmatprep.subr.mxu0 0.0
    %2081 = vmatpush1.msra.mxu0 %v134
    %2082 = vmatprep.subr.mxu0 0.0
    %2083 = vmatpush1.msra.mxu0 %v135
    %2084 = vmatprep.subr.mxu0 0.0
    %2085 = vmatpush1.msra.mxu0 %v136
    %2086 = vmatprep.subr.mxu0 0.0
    %2087 = vmatpush1.msra.mxu0 0.0
    %2088 = vmatprep.subr.mxu0 0.0
    %2089 = vmatpush1.msra.mxu0 0.0
    %2090 = vmatprep.subr.mxu0 0.0
    %2091 = vmatpush1.msra.mxu0 0.0
    %2092 = vmatprep.subr.mxu0 0.0
    %2093 = vmatpush1.msra.mxu0 0.0
    %2094 = vmatprep.subr.mxu0 0.0
    %2095 = vmatpush1.msra.mxu0 0.0
    %2096 = vmatprep.subr.mxu0 0.0
    %2097 = vmatpush1.msra.mxu0 0.0
    %2098 = vmatprep.subr.mxu0 0.0
    %2099 = vmatpush1.msra.mxu0 0.0
    %2100 = vmatprep.subr.mxu0 0.0
    %2101 = vmatpush1.msra.mxu0 0.0
    %2102 = vmatprep.subr.mxu0 0.0
    %2103 = vmatpush1.msra.mxu0 0.0
    %2104 = vmatprep.subr.mxu0 0.0
    %2105 = vmatpush1.msra.mxu0 0.0
    %2106 = vmatprep.subr.mxu0 0.0
    %2107 = vmatpush1.msra.mxu0 0.0
    %2108 = vmatprep.subr.mxu0 0.0
    %2109 = vmatpush1.msra.mxu0 0.0
    %2110 = vmatprep.subr.mxu0 0.0
    %2111 = vmatpush1.msra.mxu0 0.0
    %2112 = vmatprep.subr.mxu0 0.0
    %2113 = vmatpush1.msra.mxu0 0.0
    %2114 = vmatprep.subr.mxu0 0.0
    %2115 = vmatpush1.msra.mxu0 0.0
    %2116 = vmatprep.subr.mxu0 0.0
    %2117 = vmatpush1.msra.mxu0 0.0
    %2118 = vmatprep.subr.mxu0 0.0
    %2119 = vmatpush1.msra.mxu0 0.0
    %2120 = vmatprep.subr.mxu0 0.0
    %2121 = vmatpush1.msra.mxu0 0.0
    %2122 = vmatprep.subr.mxu0 0.0
    %2123 = vmatpush1.msra.mxu0 0.0
    %2124 = vmatprep.subr.mxu0 0.0
    %2125 = vmatpush1.msra.mxu0 0.0
    %2126 = vmatprep.subr.mxu0 0.0
    %2127 = vmatpush1.msra.mxu0 0.0
    %2128 = vmatprep.subr.mxu0 0.0
    %2129 = vmatpush1.msra.mxu0 0.0
    %2130 = vmatprep.subr.mxu0 0.0
    %2131 = vmatpush1.msra.mxu0 0.0
    %2132 = vmatprep.subr.mxu0 0.0
    %2133 = vmatpush1.msra.mxu0 0.0
    %2134 = vmatprep.subr.mxu0 0.0
    %2135 = vmatpush1.msra.mxu0 0.0
    %2136 = vmatprep.subr.mxu0 0.0
    %2137 = vmatpush1.msra.mxu0 0.0
    %2138 = vmatprep.subr.mxu0 0.0
    %2139 = vmatpush1.msra.mxu0 0.0
    %2140 = vmatprep.subr.mxu0 0.0
    %2141 = vmatpush1.msra.mxu0 0.0
    %2142 = vmatprep.mubr.f32.mxu0 0.0
    %2143 = vmatmul.mubr.f32.gmra.mrb[0].mxu0 %v2076
    %v2144 = vpop.f32.mrb[0].mxu0
    %v2145 = vadd.f32 0.0, %v2144
    %v2146 = vpop.f32.mrb[0].mxu0
    %2147 = vdwg.mxu0
    %v2148 = vadd.f32 %v2075, %v2145
    %v2149 = vtanh.pop %v2148
    %v2150 = vadd.f32 %v2149, 1.0
    %v2151 = vmul.f32 %v2150, 0.5
    %v2152 = vmul.f32 %v2151, %v1780
    %2154 = vrot.lane.b32.xlu0 %v2149, 64
    %v2155 = vpop.permute.xlu0 %2154
    %v2157 = vmul.f32 %v2151, %v2155
    %2159 = vrot.lane.b32.xlu0 %v2157, 32
    %v2160 = vpop.permute.xlu0 %2159
    %v2162 = vadd.f32 %v2152, %v2160
    %v2163 = vtanh.pop %v2162
    %2165 = vrot.lane.b32.xlu0 %v2163, 64
    %v2166 = vpop.permute.xlu0 %2165
    %v2168 = vmul.f32 %v2151, %v2166
    %2170 = vrot.lane.b32.xlu0 %v2168, 32
    %v2171 = vpop.permute.xlu0 %2170
    %2173 = vrot.lane.b32.xlu0 %v1887, 64
    %v2174 = vpop.permute.xlu0 %2173
    %v2176 = vsel %vm158, %v2171, %v2174
    %v2178 = vsel %vm266, %v2176, 0
    %2180 = vmatprep.subr.mxu0 0.0
    %2181 = vmatpush1.msra.mxu0 %v117
    %2182 = vmatprep.subr.mxu0 0.0
    %2183 = vmatpush1.msra.mxu0 %v118
    %2184 = vmatprep.subr.mxu0 0.0
    %2185 = vmatpush1.msra.mxu0 %v119
    %2186 = vmatprep.subr.mxu0 0.0
    %2187 = vmatpush1.msra.mxu0 %v120
    %2188 = vmatprep.subr.mxu0 0.0
    %2189 = vmatpush1.msra.mxu0 %v121
    %2190 = vmatprep.subr.mxu0 0.0
    %2191 = vmatpush1.msra.mxu0 %v122
    %2192 = vmatprep.subr.mxu0 0.0
    %2193 = vmatpush1.msra.mxu0 %v123
    %2194 = vmatprep.subr.mxu0 0.0
    %2195 = vmatpush1.msra.mxu0 %v124
    %2196 = vmatprep.subr.mxu0 0.0
    %2197 = vmatpush1.msra.mxu0 0.0
    %2198 = vmatprep.subr.mxu0 0.0
    %2199 = vmatpush1.msra.mxu0 0.0
    %2200 = vmatprep.subr.mxu0 0.0
    %2201 = vmatpush1.msra.mxu0 0.0
    %2202 = vmatprep.subr.mxu0 0.0
    %2203 = vmatpush1.msra.mxu0 0.0
    %2204 = vmatprep.subr.mxu0 0.0
    %2205 = vmatpush1.msra.mxu0 0.0
    %2206 = vmatprep.subr.mxu0 0.0
    %2207 = vmatpush1.msra.mxu0 0.0
    %2208 = vmatprep.subr.mxu0 0.0
    %2209 = vmatpush1.msra.mxu0 0.0
    %2210 = vmatprep.subr.mxu0 0.0
    %2211 = vmatpush1.msra.mxu0 0.0
    %2212 = vmatprep.subr.mxu0 0.0
    %2213 = vmatpush1.msra.mxu0 0.0
    %2214 = vmatprep.subr.mxu0 0.0
    %2215 = vmatpush1.msra.mxu0 0.0
    %2216 = vmatprep.subr.mxu0 0.0
    %2217 = vmatpush1.msra.mxu0 0.0
    %2218 = vmatprep.subr.mxu0 0.0
    %2219 = vmatpush1.msra.mxu0 0.0
    %2220 = vmatprep.subr.mxu0 0.0
    %2221 = vmatpush1.msra.mxu0 0.0
    %2222 = vmatprep.subr.mxu0 0.0
    %2223 = vmatpush1.msra.mxu0 0.0
    %2224 = vmatprep.subr.mxu0 0.0
    %2225 = vmatpush1.msra.mxu0 0.0
    %2226 = vmatprep.subr.mxu0 0.0
    %2227 = vmatpush1.msra.mxu0 0.0
    %2228 = vmatprep.subr.mxu0 0.0
    %2229 = vmatpush1.msra.mxu0 0.0
    %2230 = vmatprep.subr.mxu0 0.0
    %2231 = vmatpush1.msra.mxu0 0.0
    %2232 = vmatprep.subr.mxu0 0.0
    %2233 = vmatpush1.msra.mxu0 0.0
    %2234 = vmatprep.subr.mxu0 0.0
    %2235 = vmatpush1.msra.mxu0 0.0
    %2236 = vmatprep.subr.mxu0 0.0
    %2237 = vmatpush1.msra.mxu0 0.0
    %2238 = vmatprep.subr.mxu0 0.0
    %2239 = vmatpush1.msra.mxu0 0.0
    %2240 = vmatprep.subr.mxu0 0.0
    %2241 = vmatpush1.msra.mxu0 0.0
    %2242 = vmatprep.subr.mxu0 0.0
    %2243 = vmatpush1.msra.mxu0 0.0
    %2244 = vmatprep.mubr.f32.mxu0 0.0
    %2245 = vmatmul.mubr.f32.gmra.mrb[0].mxu0 %v2178
    %v2246 = vpop.f32.mrb[0].mxu0
    %v2247 = vadd.f32 %v141, %v2246
    %v2248 = vpop.f32.mrb[0].mxu0
    %2249 = vdwg.mxu0
    %v2250 = vtanh.pop %v2247
    %v2251 = vadd.f32 %v2250, 1.0
    %v2252 = vmul.f32 %v2251, 0.5
    %v2253 = vmul.f32 %v2252, %v1881
    %2255 = vrot.lane.b32.xlu0 %v2250, 64
    %v2256 = vpop.permute.xlu0 %2255
    %v2258 = vmul.f32 %v2252, %v2256
    %2260 = vrot.lane.b32.xlu0 %v2258, 32
    %v2261 = vpop.permute.xlu0 %2260
    %v2263 = vadd.f32 %v2253, %v2261
    %v2264 = vtanh.pop %v2263
    %2266 = vrot.lane.b32.xlu0 %v2264, 64
    %v2267 = vpop.permute.xlu0 %2266
    %v2269 = vmul.f32 %v2252, %v2267
    %2271 = vrot.lane.b32.xlu0 %v2269, 32
    %v2272 = vpop.permute.xlu0 %2271
    %v2273 = vsel %vm158, %v2272, 0
    %2275 = vmatprep.subr.mxu0 0.0
    %2276 = vmatpush1.msra.mxu0 %v126
    %2277 = vmatprep.subr.mxu0 0.0
    %2278 = vmatpush1.msra.mxu0 %v127
    %2279 = vmatprep.subr.mxu0 0.0
    %2280 = vmatpush1.msra.mxu0 %v128
    %2281 = vmatprep.subr.mxu0 0.0
    %2282 = vmatpush1.msra.mxu0 %v129
    %2283 = vmatprep.subr.mxu0 0.0
    %2284 = vmatpush1.msra.mxu0 0.0
    %2285 = vmatprep.subr.mxu0 0.0
    %2286 = vmatpush1.msra.mxu0 0.0
    %2287 = vmatprep.subr.mxu0 0.0
    %2288 = vmatpush1.msra.mxu0 0.0
    %2289 = vmatprep.subr.mxu0 0.0
    %2290 = vmatpush1.msra.mxu0 0.0
    %2291 = vmatprep.subr.mxu0 0.0
    %2292 = vmatpush1.msra.mxu0 0.0
    %2293 = vmatprep.subr.mxu0 0.0
    %2294 = vmatpush1.msra.mxu0 0.0
    %2295 = vmatprep.subr.mxu0 0.0
    %2296 = vmatpush1.msra.mxu0 0.0
    %2297 = vmatprep.subr.mxu0 0.0
    %2298 = vmatpush1.msra.mxu0 0.0
    %2299 = vmatprep.subr.mxu0 0.0
    %2300 = vmatpush1.msra.mxu0 0.0
    %2301 = vmatprep.subr.mxu0 0.0
    %2302 = vmatpush1.msra.mxu0 0.0
    %2303 = vmatprep.subr.mxu0 0.0
    %2304 = vmatpush1.msra.mxu0 0.0
    %2305 = vmatprep.subr.mxu0 0.0
    %2306 = vmatpush1.msra.mxu0 0.0
    %2307 = vmatprep.subr.mxu0 0.0
    %2308 = vmatpush1.msra.mxu0 0.0
    %2309 = vmatprep.subr.mxu0 0.0
    %2310 = vmatpush1.msra.mxu0 0.0
    %2311 = vmatprep.subr.mxu0 0.0
    %2312 = vmatpush1.msra.mxu0 0.0
    %2313 = vmatprep.subr.mxu0 0.0
    %2314 = vmatpush1.msra.mxu0 0.0
    %2315 = vmatprep.subr.mxu0 0.0
    %2316 = vmatpush1.msra.mxu0 0.0
    %2317 = vmatprep.subr.mxu0 0.0
    %2318 = vmatpush1.msra.mxu0 0.0
    %2319 = vmatprep.subr.mxu0 0.0
    %2320 = vmatpush1.msra.mxu0 0.0
    %2321 = vmatprep.subr.mxu0 0.0
    %2322 = vmatpush1.msra.mxu0 0.0
    %2323 = vmatprep.subr.mxu0 0.0
    %2324 = vmatpush1.msra.mxu0 0.0
    %2325 = vmatprep.subr.mxu0 0.0
    %2326 = vmatpush1.msra.mxu0 0.0
    %2327 = vmatprep.subr.mxu0 0.0
    %2328 = vmatpush1.msra.mxu0 0.0
    %2329 = vmatprep.subr.mxu0 0.0
    %2330 = vmatpush1.msra.mxu0 0.0
    %2331 = vmatprep.subr.mxu0 0.0
    %2332 = vmatpush1.msra.mxu0 0.0
    %2333 = vmatprep.subr.mxu0 0.0
    %2334 = vmatpush1.msra.mxu0 0.0
    %2335 = vmatprep.subr.mxu0 0.0
    %2336 = vmatpush1.msra.mxu0 0.0
    %2337 = vmatprep.subr.mxu0 0.0
    %2338 = vmatpush1.msra.mxu0 0.0
    %2339 = vmatprep.mubr.f32.mxu0 0.0
    %2340 = vmatmul.mubr.f32.gmra.mrb[0].mxu0 %v2273
    %v2341 = vpop.f32.mrb[0].mxu0
    %v2342 = vadd.f32 %v147, %v2341
    %v2343 = vpop.f32.mrb[0].mxu0
    %2344 = vdwg.mxu0
    %2346 = vrot.lane.b32.xlu0 %v2342, 80
    %v2347 = vpop.permute.xlu0 %2346
    %vm2349 = vcmask 786048
    %2350 = vst.msk [vmem:[#allocation13] sm:$0xff] %vm2349, %v2347
    %s2351 = scalar_lea.vmem [#allocation6], 48
    %v2352 = vld [vmem:[%s2351] sm:$0xff]
    %s2353 = sld [smem:[#allocation2 + $0x6]]
    %p2354 = scmp.ne.s32.totalorder %s2353, 0
    // Predicated region
    $region106: #{tpu_custom_call.1} parent=1 // pred_check
      %p2355 = pneg %p2354
    $region107: #{tpu_custom_call.1} parent=1 // pred_check_branch
      %2357 = sbr.rel (%p2355) target = $region109
    $region108: #{tpu_custom_call.1} parent=1 // pred_region
      _
    $region109: #{tpu_custom_call.1} parent=1 // pred_fallthru
      _
    %p2358 = pneg %p2354
    // Predicated region
    $region110: #{tpu_custom_call.1} parent=1 // pred_check
      _
    $region111: #{tpu_custom_call.1} parent=1 // pred_check_branch
      %2360 = sbr.rel (%p2354) target = $region113
    $region112: #{tpu_custom_call.1} parent=1 // pred_region
      %v2361 = vsel %vm439, %v2342, -inf
      %2362 = vmax.xlane.f32.xlu0 %v2361
      %v2363 = vpop.xlane.xlu0 %2362
      %vm2364 = vcmp.eq.f32.partialorder %v2342, %v2363
      %v2365 = vsel %vm2364, %v156, 16
      %v2366 = vsel %vm439, %v2365, 2147483647
      %v2367 = vand.u32 %v2366, 65535
      %v2368 = vshra.s32 %v2366, 16
      %v2369 = vcvt.s32.f32 %v2367
      %v2370 = vcvt.s32.f32 %v2368
      %2371 = vmin.xlane.f32.xlu0 %v2370
      %v2372 = vpop.xlane.xlu0 %2371
      %vm2373 = vcmp.eq.f32.partialorder %v2370, %v2372
      %v2374 = vsel %vm2373, %v2369, inf
      %2375 = vmin.xlane.f32.xlu0 %v2374
      %v2376 = vpop.xlane.xlu0 %2375
      %v2377 = vcvt.f32.s32 %v2376
      %v2378 = vcvt.f32.s32 %v2372
      %v2379 = vshll.u32 %v2378, 16
      %v2380 = vadd.s32 %v2379, %v2377
      %vm2381 = vcmp.eq.s32.totalorder %v156, %v2380
      %v2382 = vsel %vm2381, 1, 0
      %v2383 = vcvt.s32.f32 %v2382
      %v2385 = vsel %vm439, %v2383, 0
      %2387 = vmatprep.subr.mxu0 0.0
      %2388 = vmatpush1.msra.mxu0 %v131
      %2389 = vmatprep.subr.mxu0 0.0
      %2390 = vmatpush1.msra.mxu0 %v132
      %2391 = vmatprep.subr.mxu0 0.0
      %2392 = vmatpush1.msra.mxu0 0.0
      %2393 = vmatprep.subr.mxu0 0.0
      %2394 = vmatpush1.msra.mxu0 0.0
      %2395 = vmatprep.subr.mxu0 0.0
      %2396 = vmatpush1.msra.mxu0 0.0
      %2397 = vmatprep.subr.mxu0 0.0
      %2398 = vmatpush1.msra.mxu0 0.0
      %2399 = vmatprep.subr.mxu0 0.0
      %2400 = vmatpush1.msra.mxu0 0.0
      %2401 = vmatprep.subr.mxu0 0.0
      %2402 = vmatpush1.msra.mxu0 0.0
      %2403 = vmatprep.subr.mxu0 0.0
      %2404 = vmatpush1.msra.mxu0 0.0
      %2405 = vmatprep.subr.mxu0 0.0
      %2406 = vmatpush1.msra.mxu0 0.0
      %2407 = vmatprep.subr.mxu0 0.0
      %2408 = vmatpush1.msra.mxu0 0.0
      %2409 = vmatprep.subr.mxu0 0.0
      %2410 = vmatpush1.msra.mxu0 0.0
      %2411 = vmatprep.subr.mxu0 0.0
      %2412 = vmatpush1.msra.mxu0 0.0
      %2413 = vmatprep.subr.mxu0 0.0
      %2414 = vmatpush1.msra.mxu0 0.0
      %2415 = vmatprep.subr.mxu0 0.0
      %2416 = vmatpush1.msra.mxu0 0.0
      %2417 = vmatprep.subr.mxu0 0.0
      %2418 = vmatpush1.msra.mxu0 0.0
      %2419 = vmatprep.subr.mxu0 0.0
      %2420 = vmatpush1.msra.mxu0 0.0
      %2421 = vmatprep.subr.mxu0 0.0
      %2422 = vmatpush1.msra.mxu0 0.0
      %2423 = vmatprep.subr.mxu0 0.0
      %2424 = vmatpush1.msra.mxu0 0.0
      %2425 = vmatprep.subr.mxu0 0.0
      %2426 = vmatpush1.msra.mxu0 0.0
      %2427 = vmatprep.subr.mxu0 0.0
      %2428 = vmatpush1.msra.mxu0 0.0
      %2429 = vmatprep.subr.mxu0 0.0
      %2430 = vmatpush1.msra.mxu0 0.0
      %2431 = vmatprep.subr.mxu0 0.0
      %2432 = vmatpush1.msra.mxu0 0.0
      %2433 = vmatprep.subr.mxu0 0.0
      %2434 = vmatpush1.msra.mxu0 0.0
      %2435 = vmatprep.subr.mxu0 0.0
      %2436 = vmatpush1.msra.mxu0 0.0
      %2437 = vmatprep.subr.mxu0 0.0
      %2438 = vmatpush1.msra.mxu0 0.0
      %2439 = vmatprep.subr.mxu0 0.0
      %2440 = vmatpush1.msra.mxu0 0.0
      %2441 = vmatprep.subr.mxu0 0.0
      %2442 = vmatpush1.msra.mxu0 0.0
      %2443 = vmatprep.subr.mxu0 0.0
      %2444 = vmatpush1.msra.mxu0 0.0
      %2445 = vmatprep.subr.mxu0 0.0
      %2446 = vmatpush1.msra.mxu0 0.0
      %2447 = vmatprep.subr.mxu0 0.0
      %2448 = vmatpush1.msra.mxu0 0.0
      %2449 = vmatprep.subr.mxu0 0.0
      %2450 = vmatpush1.msra.mxu0 0.0
      %2451 = vmatprep.mubr.f32.mxu0 0.0
      %2452 = vmatmul.mubr.f32.gmra.mrb[0].mxu0 %v2385
      %v2453 = vpop.f32.mrb[0].mxu0
      %v2454 = vadd.f32 0.0, %v2453
      %v2455 = vpop.f32.mrb[0].mxu0
      %2456 = vdwg.mxu0
    $region113: #{tpu_custom_call.1} parent=1 // pred_fallthru
      %v2457 = vphi %v2352, %v2454
    %v2458 = vsel %vm158, %v2171, 0
    %2460 = vmatprep.subr.mxu0 0.0
    %2461 = vmatpush1.msra.mxu0 %v133
    %2462 = vmatprep.subr.mxu0 0.0
    %2463 = vmatpush1.msra.mxu0 %v134
    %2464 = vmatprep.subr.mxu0 0.0
    %2465 = vmatpush1.msra.mxu0 %v135
    %2466 = vmatprep.subr.mxu0 0.0
    %2467 = vmatpush1.msra.mxu0 %v136
    %2468 = vmatprep.subr.mxu0 0.0
    %2469 = vmatpush1.msra.mxu0 0.0
    %2470 = vmatprep.subr.mxu0 0.0
    %2471 = vmatpush1.msra.mxu0 0.0
    %2472 = vmatprep.subr.mxu0 0.0
    %2473 = vmatpush1.msra.mxu0 0.0
    %2474 = vmatprep.subr.mxu0 0.0
    %2475 = vmatpush1.msra.mxu0 0.0
    %2476 = vmatprep.subr.mxu0 0.0
    %2477 = vmatpush1.msra.mxu0 0.0
    %2478 = vmatprep.subr.mxu0 0.0
    %2479 = vmatpush1.msra.mxu0 0.0
    %2480 = vmatprep.subr.mxu0 0.0
    %2481 = vmatpush1.msra.mxu0 0.0
    %2482 = vmatprep.subr.mxu0 0.0
    %2483 = vmatpush1.msra.mxu0 0.0
    %2484 = vmatprep.subr.mxu0 0.0
    %2485 = vmatpush1.msra.mxu0 0.0
    %2486 = vmatprep.subr.mxu0 0.0
    %2487 = vmatpush1.msra.mxu0 0.0
    %2488 = vmatprep.subr.mxu0 0.0
    %2489 = vmatpush1.msra.mxu0 0.0
    %2490 = vmatprep.subr.mxu0 0.0
    %2491 = vmatpush1.msra.mxu0 0.0
    %2492 = vmatprep.subr.mxu0 0.0
    %2493 = vmatpush1.msra.mxu0 0.0
    %2494 = vmatprep.subr.mxu0 0.0
    %2495 = vmatpush1.msra.mxu0 0.0
    %2496 = vmatprep.subr.mxu0 0.0
    %2497 = vmatpush1.msra.mxu0 0.0
    %2498 = vmatprep.subr.mxu0 0.0
    %2499 = vmatpush1.msra.mxu0 0.0
    %2500 = vmatprep.subr.mxu0 0.0
    %2501 = vmatpush1.msra.mxu0 0.0
    %2502 = vmatprep.subr.mxu0 0.0
    %2503 = vmatpush1.msra.mxu0 0.0
    %2504 = vmatprep.subr.mxu0 0.0
    %2505 = vmatpush1.msra.mxu0 0.0
    %2506 = vmatprep.subr.mxu0 0.0
    %2507 = vmatpush1.msra.mxu0 0.0
    %2508 = vmatprep.subr.mxu0 0.0
    %2509 = vmatpush1.msra.mxu0 0.0
    %2510 = vmatprep.subr.mxu0 0.0
    %2511 = vmatpush1.msra.mxu0 0.0
    %2512 = vmatprep.subr.mxu0 0.0
    %2513 = vmatpush1.msra.mxu0 0.0
    %2514 = vmatprep.subr.mxu0 0.0
    %2515 = vmatpush1.msra.mxu0 0.0
    %2516 = vmatprep.subr.mxu0 0.0
    %2517 = vmatpush1.msra.mxu0 0.0
    %2518 = vmatprep.subr.mxu0 0.0
    %2519 = vmatpush1.msra.mxu0 0.0
    %2520 = vmatprep.subr.mxu0 0.0
    %2521 = vmatpush1.msra.mxu0 0.0
    %2522 = vmatprep.subr.mxu0 0.0
    %2523 = vmatpush1.msra.mxu0 0.0
    %2524 = vmatprep.mubr.f32.mxu0 0.0
    %2525 = vmatmul.mubr.f32.gmra.mrb[0].mxu0 %v2458
    %v2526 = vpop.f32.mrb[0].mxu0
    %v2527 = vadd.f32 0.0, %v2526
    %v2528 = vpop.f32.mrb[0].mxu0
    %2529 = vdwg.mxu0
    %v2530 = vadd.f32 %v2457, %v2527
    %v2531 = vtanh.pop %v2530
    %v2532 = vadd.f32 %v2531, 1.0
    %v2533 = vmul.f32 %v2532, 0.5
    %v2534 = vmul.f32 %v2533, %v2162
    %2536 = vrot.lane.b32.xlu0 %v2531, 64
    %v2537 = vpop.permute.xlu0 %2536
    %v2539 = vmul.f32 %v2533, %v2537
    %2541 = vrot.lane.b32.xlu0 %v2539, 32
    %v2542 = vpop.permute.xlu0 %2541
    %v2544 = vadd.f32 %v2534, %v2542
    %v2545 = vtanh.pop %v2544
    %2547 = vrot.lane.b32.xlu0 %v2545, 64
    %v2548 = vpop.permute.xlu0 %2547
    %v2550 = vmul.f32 %v2533, %v2548
    %2552 = vrot.lane.b32.xlu0 %v2550, 32
    %v2553 = vpop.permute.xlu0 %2552
    %2555 = vrot.lane.b32.xlu0 %v2269, 64
    %v2556 = vpop.permute.xlu0 %2555
    %v2558 = vsel %vm158, %v2553, %v2556
    %v2560 = vsel %vm266, %v2558, 0
    %2562 = vmatprep.subr.mxu0 0.0
    %2563 = vmatpush1.msra.mxu0 %v117
    %2564 = vmatprep.subr.mxu0 0.0
    %2565 = vmatpush1.msra.mxu0 %v118
    %2566 = vmatprep.subr.mxu0 0.0
    %2567 = vmatpush1.msra.mxu0 %v119
    %2568 = vmatprep.subr.mxu0 0.0
    %2569 = vmatpush1.msra.mxu0 %v120
    %2570 = vmatprep.subr.mxu0 0.0
    %2571 = vmatpush1.msra.mxu0 %v121
    %2572 = vmatprep.subr.mxu0 0.0
    %2573 = vmatpush1.msra.mxu0 %v122
    %2574 = vmatprep.subr.mxu0 0.0
    %2575 = vmatpush1.msra.mxu0 %v123
    %2576 = vmatprep.subr.mxu0 0.0
    %2577 = vmatpush1.msra.mxu0 %v124
    %2578 = vmatprep.subr.mxu0 0.0
    %2579 = vmatpush1.msra.mxu0 0.0
    %2580 = vmatprep.subr.mxu0 0.0
    %2581 = vmatpush1.msra.mxu0 0.0
    %2582 = vmatprep.subr.mxu0 0.0
    %2583 = vmatpush1.msra.mxu0 0.0
    %2584 = vmatprep.subr.mxu0 0.0
    %2585 = vmatpush1.msra.mxu0 0.0
    %2586 = vmatprep.subr.mxu0 0.0
    %2587 = vmatpush1.msra.mxu0 0.0
    %2588 = vmatprep.subr.mxu0 0.0
    %2589 = vmatpush1.msra.mxu0 0.0
    %2590 = vmatprep.subr.mxu0 0.0
    %2591 = vmatpush1.msra.mxu0 0.0
    %2592 = vmatprep.subr.mxu0 0.0
    %2593 = vmatpush1.msra.mxu0 0.0
    %2594 = vmatprep.subr.mxu0 0.0
    %2595 = vmatpush1.msra.mxu0 0.0
    %2596 = vmatprep.subr.mxu0 0.0
    %2597 = vmatpush1.msra.mxu0 0.0
    %2598 = vmatprep.subr.mxu0 0.0
    %2599 = vmatpush1.msra.mxu0 0.0
    %2600 = vmatprep.subr.mxu0 0.0
    %2601 = vmatpush1.msra.mxu0 0.0
    %2602 = vmatprep.subr.mxu0 0.0
    %2603 = vmatpush1.msra.mxu0 0.0
    %2604 = vmatprep.subr.mxu0 0.0
    %2605 = vmatpush1.msra.mxu0 0.0
    %2606 = vmatprep.subr.mxu0 0.0
    %2607 = vmatpush1.msra.mxu0 0.0
    %2608 = vmatprep.subr.mxu0 0.0
    %2609 = vmatpush1.msra.mxu0 0.0
    %2610 = vmatprep.subr.mxu0 0.0
    %2611 = vmatpush1.msra.mxu0 0.0
    %2612 = vmatprep.subr.mxu0 0.0
    %2613 = vmatpush1.msra.mxu0 0.0
    %2614 = vmatprep.subr.mxu0 0.0
    %2615 = vmatpush1.msra.mxu0 0.0
    %2616 = vmatprep.subr.mxu0 0.0
    %2617 = vmatpush1.msra.mxu0 0.0
    %2618 = vmatprep.subr.mxu0 0.0
    %2619 = vmatpush1.msra.mxu0 0.0
    %2620 = vmatprep.subr.mxu0 0.0
    %2621 = vmatpush1.msra.mxu0 0.0
    %2622 = vmatprep.subr.mxu0 0.0
    %2623 = vmatpush1.msra.mxu0 0.0
    %2624 = vmatprep.subr.mxu0 0.0
    %2625 = vmatpush1.msra.mxu0 0.0
    %2626 = vmatprep.mubr.f32.mxu0 0.0
    %2627 = vmatmul.mubr.f32.gmra.mrb[0].mxu0 %v2560
    %v2628 = vpop.f32.mrb[0].mxu0
    %v2629 = vadd.f32 %v141, %v2628
    %v2630 = vpop.f32.mrb[0].mxu0
    %2631 = vdwg.mxu0
    %v2632 = vtanh.pop %v2629
    %v2633 = vadd.f32 %v2632, 1.0
    %v2634 = vmul.f32 %v2633, 0.5
    %v2635 = vmul.f32 %v2634, %v2263
    %2637 = vrot.lane.b32.xlu0 %v2632, 64
    %v2638 = vpop.permute.xlu0 %2637
    %v2640 = vmul.f32 %v2634, %v2638
    %2642 = vrot.lane.b32.xlu0 %v2640, 32
    %v2643 = vpop.permute.xlu0 %2642
    %v2645 = vadd.f32 %v2635, %v2643
    %v2646 = vtanh.pop %v2645
    %2648 = vrot.lane.b32.xlu0 %v2646, 64
    %v2649 = vpop.permute.xlu0 %2648
    %v2651 = vmul.f32 %v2634, %v2649
    %2653 = vrot.lane.b32.xlu0 %v2651, 32
    %v2654 = vpop.permute.xlu0 %2653
    %v2655 = vsel %vm158, %v2654, 0
    %2657 = vmatprep.subr.mxu0 0.0
    %2658 = vmatpush1.msra.mxu0 %v126
    %2659 = vmatprep.subr.mxu0 0.0
    %2660 = vmatpush1.msra.mxu0 %v127
    %2661 = vmatprep.subr.mxu0 0.0
    %2662 = vmatpush1.msra.mxu0 %v128
    %2663 = vmatprep.subr.mxu0 0.0
    %2664 = vmatpush1.msra.mxu0 %v129
    %2665 = vmatprep.subr.mxu0 0.0
    %2666 = vmatpush1.msra.mxu0 0.0
    %2667 = vmatprep.subr.mxu0 0.0
    %2668 = vmatpush1.msra.mxu0 0.0
    %2669 = vmatprep.subr.mxu0 0.0
    %2670 = vmatpush1.msra.mxu0 0.0
    %2671 = vmatprep.subr.mxu0 0.0
    %2672 = vmatpush1.msra.mxu0 0.0
    %2673 = vmatprep.subr.mxu0 0.0
    %2674 = vmatpush1.msra.mxu0 0.0
    %2675 = vmatprep.subr.mxu0 0.0
    %2676 = vmatpush1.msra.mxu0 0.0
    %2677 = vmatprep.subr.mxu0 0.0
    %2678 = vmatpush1.msra.mxu0 0.0
    %2679 = vmatprep.subr.mxu0 0.0
    %2680 = vmatpush1.msra.mxu0 0.0
    %2681 = vmatprep.subr.mxu0 0.0
    %2682 = vmatpush1.msra.mxu0 0.0
    %2683 = vmatprep.subr.mxu0 0.0
    %2684 = vmatpush1.msra.mxu0 0.0
    %2685 = vmatprep.subr.mxu0 0.0
    %2686 = vmatpush1.msra.mxu0 0.0
    %2687 = vmatprep.subr.mxu0 0.0
    %2688 = vmatpush1.msra.mxu0 0.0
    %2689 = vmatprep.subr.mxu0 0.0
    %2690 = vmatpush1.msra.mxu0 0.0
    %2691 = vmatprep.subr.mxu0 0.0
    %2692 = vmatpush1.msra.mxu0 0.0
    %2693 = vmatprep.subr.mxu0 0.0
    %2694 = vmatpush1.msra.mxu0 0.0
    %2695 = vmatprep.subr.mxu0 0.0
    %2696 = vmatpush1.msra.mxu0 0.0
    %2697 = vmatprep.subr.mxu0 0.0
    %2698 = vmatpush1.msra.mxu0 0.0
    %2699 = vmatprep.subr.mxu0 0.0
    %2700 = vmatpush1.msra.mxu0 0.0
    %2701 = vmatprep.subr.mxu0 0.0
    %2702 = vmatpush1.msra.mxu0 0.0
    %2703 = vmatprep.subr.mxu0 0.0
    %2704 = vmatpush1.msra.mxu0 0.0
    %2705 = vmatprep.subr.mxu0 0.0
    %2706 = vmatpush1.msra.mxu0 0.0
    %2707 = vmatprep.subr.mxu0 0.0
    %2708 = vmatpush1.msra.mxu0 0.0
    %2709 = vmatprep.subr.mxu0 0.0
    %2710 = vmatpush1.msra.mxu0 0.0
    %2711 = vmatprep.subr.mxu0 0.0
    %2712 = vmatpush1.msra.mxu0 0.0
    %2713 = vmatprep.subr.mxu0 0.0
    %2714 = vmatpush1.msra.mxu0 0.0
    %2715 = vmatprep.subr.mxu0 0.0
    %2716 = vmatpush1.msra.mxu0 0.0
    %2717 = vmatprep.subr.mxu0 0.0
    %2718 = vmatpush1.msra.mxu0 0.0
    %2719 = vmatprep.subr.mxu0 0.0
    %2720 = vmatpush1.msra.mxu0 0.0
    %2721 = vmatprep.mubr.f32.mxu0 0.0
    %2722 = vmatmul.mubr.f32.gmra.mrb[0].mxu0 %v2655
    %v2723 = vpop.f32.mrb[0].mxu0
    %v2724 = vadd.f32 %v147, %v2723
    %v2725 = vpop.f32.mrb[0].mxu0
    %2726 = vdwg.mxu0
    %2728 = vrot.lane.b32.xlu0 %v2724, 96
    %v2729 = vpop.permute.xlu0 %2728
    %vm2731 = vcmask 917248
    %2732 = vst.msk [vmem:[#allocation13] sm:$0xff] %vm2731, %v2729
    %s2733 = scalar_lea.vmem [#allocation6], 56
    %v2734 = vld [vmem:[%s2733] sm:$0xff]
    %s2735 = sld [smem:[#allocation2 + $0x7]]
    %p2736 = scmp.ne.s32.totalorder %s2735, 0
    // Predicated region
    $region114: #{tpu_custom_call.1} parent=1 // pred_check
      %p2737 = pneg %p2736
    $region115: #{tpu_custom_call.1} parent=1 // pred_check_branch
      %2739 = sbr.rel (%p2737) target = $region117
    $region116: #{tpu_custom_call.1} parent=1 // pred_region
      _
    $region117: #{tpu_custom_call.1} parent=1 // pred_fallthru
      _
    %p2740 = pneg %p2736
    // Predicated region
    $region118: #{tpu_custom_call.1} parent=1 // pred_check
      _
    $region119: #{tpu_custom_call.1} parent=1 // pred_check_branch
      %2742 = sbr.rel (%p2736) target = $region121
    $region120: #{tpu_custom_call.1} parent=1 // pred_region
      %v2743 = vsel %vm439, %v2724, -inf
      %2744 = vmax.xlane.f32.xlu0 %v2743
      %v2745 = vpop.xlane.xlu0 %2744
      %vm2746 = vcmp.eq.f32.partialorder %v2724, %v2745
      %v2747 = vsel %vm2746, %v156, 16
      %v2748 = vsel %vm439, %v2747, 2147483647
      %v2749 = vand.u32 %v2748, 65535
      %v2750 = vshra.s32 %v2748, 16
      %v2751 = vcvt.s32.f32 %v2749
      %v2752 = vcvt.s32.f32 %v2750
      %2753 = vmin.xlane.f32.xlu0 %v2752
      %v2754 = vpop.xlane.xlu0 %2753
      %vm2755 = vcmp.eq.f32.partialorder %v2752, %v2754
      %v2756 = vsel %vm2755, %v2751, inf
      %2757 = vmin.xlane.f32.xlu0 %v2756
      %v2758 = vpop.xlane.xlu0 %2757
      %v2759 = vcvt.f32.s32 %v2758
      %v2760 = vcvt.f32.s32 %v2754
      %v2761 = vshll.u32 %v2760, 16
      %v2762 = vadd.s32 %v2761, %v2759
      %vm2763 = vcmp.eq.s32.totalorder %v156, %v2762
      %v2764 = vsel %vm2763, 1, 0
      %v2765 = vcvt.s32.f32 %v2764
      %v2767 = vsel %vm439, %v2765, 0
      %2769 = vmatprep.subr.mxu0 0.0
      %2770 = vmatpush1.msra.mxu0 %v131
      %2771 = vmatprep.subr.mxu0 0.0
      %2772 = vmatpush1.msra.mxu0 %v132
      %2773 = vmatprep.subr.mxu0 0.0
      %2774 = vmatpush1.msra.mxu0 0.0
      %2775 = vmatprep.subr.mxu0 0.0
      %2776 = vmatpush1.msra.mxu0 0.0
      %2777 = vmatprep.subr.mxu0 0.0
      %2778 = vmatpush1.msra.mxu0 0.0
      %2779 = vmatprep.subr.mxu0 0.0
      %2780 = vmatpush1.msra.mxu0 0.0
      %2781 = vmatprep.subr.mxu0 0.0
      %2782 = vmatpush1.msra.mxu0 0.0
      %2783 = vmatprep.subr.mxu0 0.0
      %2784 = vmatpush1.msra.mxu0 0.0
      %2785 = vmatprep.subr.mxu0 0.0
      %2786 = vmatpush1.msra.mxu0 0.0
      %2787 = vmatprep.subr.mxu0 0.0
      %2788 = vmatpush1.msra.mxu0 0.0
      %2789 = vmatprep.subr.mxu0 0.0
      %2790 = vmatpush1.msra.mxu0 0.0
      %2791 = vmatprep.subr.mxu0 0.0
      %2792 = vmatpush1.msra.mxu0 0.0
      %2793 = vmatprep.subr.mxu0 0.0
      %2794 = vmatpush1.msra.mxu0 0.0
      %2795 = vmatprep.subr.mxu0 0.0
      %2796 = vmatpush1.msra.mxu0 0.0
      %2797 = vmatprep.subr.mxu0 0.0
      %2798 = vmatpush1.msra.mxu0 0.0
      %2799 = vmatprep.subr.mxu0 0.0
      %2800 = vmatpush1.msra.mxu0 0.0
      %2801 = vmatprep.subr.mxu0 0.0
      %2802 = vmatpush1.msra.mxu0 0.0
      %2803 = vmatprep.subr.mxu0 0.0
      %2804 = vmatpush1.msra.mxu0 0.0
      %2805 = vmatprep.subr.mxu0 0.0
      %2806 = vmatpush1.msra.mxu0 0.0
      %2807 = vmatprep.subr.mxu0 0.0
      %2808 = vmatpush1.msra.mxu0 0.0
      %2809 = vmatprep.subr.mxu0 0.0
      %2810 = vmatpush1.msra.mxu0 0.0
      %2811 = vmatprep.subr.mxu0 0.0
      %2812 = vmatpush1.msra.mxu0 0.0
      %2813 = vmatprep.subr.mxu0 0.0
      %2814 = vmatpush1.msra.mxu0 0.0
      %2815 = vmatprep.subr.mxu0 0.0
      %2816 = vmatpush1.msra.mxu0 0.0
      %2817 = vmatprep.subr.mxu0 0.0
      %2818 = vmatpush1.msra.mxu0 0.0
      %2819 = vmatprep.subr.mxu0 0.0
      %2820 = vmatpush1.msra.mxu0 0.0
      %2821 = vmatprep.subr.mxu0 0.0
      %2822 = vmatpush1.msra.mxu0 0.0
      %2823 = vmatprep.subr.mxu0 0.0
      %2824 = vmatpush1.msra.mxu0 0.0
      %2825 = vmatprep.subr.mxu0 0.0
      %2826 = vmatpush1.msra.mxu0 0.0
      %2827 = vmatprep.subr.mxu0 0.0
      %2828 = vmatpush1.msra.mxu0 0.0
      %2829 = vmatprep.subr.mxu0 0.0
      %2830 = vmatpush1.msra.mxu0 0.0
      %2831 = vmatprep.subr.mxu0 0.0
      %2832 = vmatpush1.msra.mxu0 0.0
      %2833 = vmatprep.mubr.f32.mxu0 0.0
      %2834 = vmatmul.mubr.f32.gmra.mrb[0].mxu0 %v2767
      %v2835 = vpop.f32.mrb[0].mxu0
      %v2836 = vadd.f32 0.0, %v2835
      %v2837 = vpop.f32.mrb[0].mxu0
      %2838 = vdwg.mxu0
    $region121: #{tpu_custom_call.1} parent=1 // pred_fallthru
      %v2839 = vphi %v2734, %v2836
    %v2840 = vsel %vm158, %v2553, 0
    %2842 = vmatprep.subr.mxu0 0.0
    %2843 = vmatpush1.msra.mxu0 %v133
    %2844 = vmatprep.subr.mxu0 0.0
    %2845 = vmatpush1.msra.mxu0 %v134
    %2846 = vmatprep.subr.mxu0 0.0
    %2847 = vmatpush1.msra.mxu0 %v135
    %2848 = vmatprep.subr.mxu0 0.0
    %2849 = vmatpush1.msra.mxu0 %v136
    %2850 = vmatprep.subr.mxu0 0.0
    %2851 = vmatpush1.msra.mxu0 0.0
    %2852 = vmatprep.subr.mxu0 0.0
    %2853 = vmatpush1.msra.mxu0 0.0
    %2854 = vmatprep.subr.mxu0 0.0
    %2855 = vmatpush1.msra.mxu0 0.0
    %2856 = vmatprep.subr.mxu0 0.0
    %2857 = vmatpush1.msra.mxu0 0.0
    %2858 = vmatprep.subr.mxu0 0.0
    %2859 = vmatpush1.msra.mxu0 0.0
    %2860 = vmatprep.subr.mxu0 0.0
    %2861 = vmatpush1.msra.mxu0 0.0
    %2862 = vmatprep.subr.mxu0 0.0
    %2863 = vmatpush1.msra.mxu0 0.0
    %2864 = vmatprep.subr.mxu0 0.0
    %2865 = vmatpush1.msra.mxu0 0.0
    %2866 = vmatprep.subr.mxu0 0.0
    %2867 = vmatpush1.msra.mxu0 0.0
    %2868 = vmatprep.subr.mxu0 0.0
    %2869 = vmatpush1.msra.mxu0 0.0
    %2870 = vmatprep.subr.mxu0 0.0
    %2871 = vmatpush1.msra.mxu0 0.0
    %2872 = vmatprep.subr.mxu0 0.0
    %2873 = vmatpush1.msra.mxu0 0.0
    %2874 = vmatprep.subr.mxu0 0.0
    %2875 = vmatpush1.msra.mxu0 0.0
    %2876 = vmatprep.subr.mxu0 0.0
    %2877 = vmatpush1.msra.mxu0 0.0
    %2878 = vmatprep.subr.mxu0 0.0
    %2879 = vmatpush1.msra.mxu0 0.0
    %2880 = vmatprep.subr.mxu0 0.0
    %2881 = vmatpush1.msra.mxu0 0.0
    %2882 = vmatprep.subr.mxu0 0.0
    %2883 = vmatpush1.msra.mxu0 0.0
    %2884 = vmatprep.subr.mxu0 0.0
    %2885 = vmatpush1.msra.mxu0 0.0
    %2886 = vmatprep.subr.mxu0 0.0
    %2887 = vmatpush1.msra.mxu0 0.0
    %2888 = vmatprep.subr.mxu0 0.0
    %2889 = vmatpush1.msra.mxu0 0.0
    %2890 = vmatprep.subr.mxu0 0.0
    %2891 = vmatpush1.msra.mxu0 0.0
    %2892 = vmatprep.subr.mxu0 0.0
    %2893 = vmatpush1.msra.mxu0 0.0
    %2894 = vmatprep.subr.mxu0 0.0
    %2895 = vmatpush1.msra.mxu0 0.0
    %2896 = vmatprep.subr.mxu0 0.0
    %2897 = vmatpush1.msra.mxu0 0.0
    %2898 = vmatprep.subr.mxu0 0.0
    %2899 = vmatpush1.msra.mxu0 0.0
    %2900 = vmatprep.subr.mxu0 0.0
    %2901 = vmatpush1.msra.mxu0 0.0
    %2902 = vmatprep.subr.mxu0 0.0
    %2903 = vmatpush1.msra.mxu0 0.0
    %2904 = vmatprep.subr.mxu0 0.0
    %2905 = vmatpush1.msra.mxu0 0.0
    %2906 = vmatprep.mubr.f32.mxu0 0.0
    %2907 = vmatmul.mubr.f32.gmra.mrb[0].mxu0 %v2840
    %v2908 = vpop.f32.mrb[0].mxu0
    %v2909 = vadd.f32 0.0, %v2908
    %v2910 = vpop.f32.mrb[0].mxu0
    %2911 = vdwg.mxu0
    %v2912 = vadd.f32 %v2839, %v2909
    %v2913 = vtanh.pop %v2912
    %v2914 = vadd.f32 %v2913, 1.0
    %v2915 = vmul.f32 %v2914, 0.5
    %v2916 = vmul.f32 %v2915, %v2544
    %2918 = vrot.lane.b32.xlu0 %v2913, 64
    %v2919 = vpop.permute.xlu0 %2918
    %v2921 = vmul.f32 %v2915, %v2919
    %2923 = vrot.lane.b32.xlu0 %v2921, 32
    %v2924 = vpop.permute.xlu0 %2923
    %v2926 = vadd.f32 %v2916, %v2924
    %v2927 = vtanh.pop %v2926
    %2929 = vrot.lane.b32.xlu0 %v2927, 64
    %v2930 = vpop.permute.xlu0 %2929
    %v2932 = vmul.f32 %v2915, %v2930
    %2934 = vrot.lane.b32.xlu0 %v2932, 32
    %v2935 = vpop.permute.xlu0 %2934
    %2937 = vrot.lane.b32.xlu0 %v2651, 64
    %v2938 = vpop.permute.xlu0 %2937
    %v2940 = vsel %vm158, %v2935, %v2938
    %v2942 = vsel %vm266, %v2940, 0
    %2944 = vmatprep.subr.mxu0 0.0
    %2945 = vmatpush1.msra.mxu0 %v117
    %2946 = vmatprep.subr.mxu0 0.0
    %2947 = vmatpush1.msra.mxu0 %v118
    %2948 = vmatprep.subr.mxu0 0.0
    %2949 = vmatpush1.msra.mxu0 %v119
    %2950 = vmatprep.subr.mxu0 0.0
    %2951 = vmatpush1.msra.mxu0 %v120
    %2952 = vmatprep.subr.mxu0 0.0
    %2953 = vmatpush1.msra.mxu0 %v121
    %2954 = vmatprep.subr.mxu0 0.0
    %2955 = vmatpush1.msra.mxu0 %v122
    %2956 = vmatprep.subr.mxu0 0.0
    %2957 = vmatpush1.msra.mxu0 %v123
    %2958 = vmatprep.subr.mxu0 0.0
    %2959 = vmatpush1.msra.mxu0 %v124
    %2960 = vmatprep.subr.mxu0 0.0
    %2961 = vmatpush1.msra.mxu0 0.0
    %2962 = vmatprep.subr.mxu0 0.0
    %2963 = vmatpush1.msra.mxu0 0.0
    %2964 = vmatprep.subr.mxu0 0.0
    %2965 = vmatpush1.msra.mxu0 0.0
    %2966 = vmatprep.subr.mxu0 0.0
    %2967 = vmatpush1.msra.mxu0 0.0
    %2968 = vmatprep.subr.mxu0 0.0
    %2969 = vmatpush1.msra.mxu0 0.0
    %2970 = vmatprep.subr.mxu0 0.0
    %2971 = vmatpush1.msra.mxu0 0.0
    %2972 = vmatprep.subr.mxu0 0.0
    %2973 = vmatpush1.msra.mxu0 0.0
    %2974 = vmatprep.subr.mxu0 0.0
    %2975 = vmatpush1.msra.mxu0 0.0
    %2976 = vmatprep.subr.mxu0 0.0
    %2977 = vmatpush1.msra.mxu0 0.0
    %2978 = vmatprep.subr.mxu0 0.0
    %2979 = vmatpush1.msra.mxu0 0.0
    %2980 = vmatprep.subr.mxu0 0.0
    %2981 = vmatpush1.msra.mxu0 0.0
    %2982 = vmatprep.subr.mxu0 0.0
    %2983 = vmatpush1.msra.mxu0 0.0
    %2984 = vmatprep.subr.mxu0 0.0
    %2985 = vmatpush1.msra.mxu0 0.0
    %2986 = vmatprep.subr.mxu0 0.0
    %2987 = vmatpush1.msra.mxu0 0.0
    %2988 = vmatprep.subr.mxu0 0.0
    %2989 = vmatpush1.msra.mxu0 0.0
    %2990 = vmatprep.subr.mxu0 0.0
    %2991 = vmatpush1.msra.mxu0 0.0
    %2992 = vmatprep.subr.mxu0 0.0
    %2993 = vmatpush1.msra.mxu0 0.0
    %2994 = vmatprep.subr.mxu0 0.0
    %2995 = vmatpush1.msra.mxu0 0.0
    %2996 = vmatprep.subr.mxu0 0.0
    %2997 = vmatpush1.msra.mxu0 0.0
    %2998 = vmatprep.subr.mxu0 0.0
    %2999 = vmatpush1.msra.mxu0 0.0
    %3000 = vmatprep.subr.mxu0 0.0
    %3001 = vmatpush1.msra.mxu0 0.0
    %3002 = vmatprep.subr.mxu0 0.0
    %3003 = vmatpush1.msra.mxu0 0.0
    %3004 = vmatprep.subr.mxu0 0.0
    %3005 = vmatpush1.msra.mxu0 0.0
    %3006 = vmatprep.subr.mxu0 0.0
    %3007 = vmatpush1.msra.mxu0 0.0
    %3008 = vmatprep.mubr.f32.mxu0 0.0
    %3009 = vmatmul.mubr.f32.gmra.mrb[0].mxu0 %v2942
    %v3010 = vpop.f32.mrb[0].mxu0
    %v3011 = vadd.f32 %v141, %v3010
    %v3012 = vpop.f32.mrb[0].mxu0
    %3013 = vdwg.mxu0
    %v3014 = vtanh.pop %v3011
    %v3015 = vadd.f32 %v3014, 1.0
    %v3016 = vmul.f32 %v3015, 0.5
    %v3017 = vmul.f32 %v3016, %v2645
    %3019 = vrot.lane.b32.xlu0 %v3014, 64
    %v3020 = vpop.permute.xlu0 %3019
    %v3022 = vmul.f32 %v3016, %v3020
    %3024 = vrot.lane.b32.xlu0 %v3022, 32
    %v3025 = vpop.permute.xlu0 %3024
    %v3027 = vadd.f32 %v3017, %v3025
    %v3028 = vtanh.pop %v3027
    %3030 = vrot.lane.b32.xlu0 %v3028, 64
    %v3031 = vpop.permute.xlu0 %3030
    %v3033 = vmul.f32 %v3016, %v3031
    %3035 = vrot.lane.b32.xlu0 %v3033, 32
    %v3036 = vpop.permute.xlu0 %3035
    %v3037 = vsel %vm158, %v3036, 0
    %3039 = vmatprep.subr.mxu0 0.0
    %3040 = vmatpush1.msra.mxu0 %v126
    %3041 = vmatprep.subr.mxu0 0.0
    %3042 = vmatpush1.msra.mxu0 %v127
    %3043 = vmatprep.subr.mxu0 0.0
    %3044 = vmatpush1.msra.mxu0 %v128
    %3045 = vmatprep.subr.mxu0 0.0
    %3046 = vmatpush1.msra.mxu0 %v129
    %3047 = vmatprep.subr.mxu0 0.0
    %3048 = vmatpush1.msra.mxu0 0.0
    %3049 = vmatprep.subr.mxu0 0.0
    %3050 = vmatpush1.msra.mxu0 0.0
    %3051 = vmatprep.subr.mxu0 0.0
    %3052 = vmatpush1.msra.mxu0 0.0
    %3053 = vmatprep.subr.mxu0 0.0
    %3054 = vmatpush1.msra.mxu0 0.0
    %3055 = vmatprep.subr.mxu0 0.0
    %3056 = vmatpush1.msra.mxu0 0.0
    %3057 = vmatprep.subr.mxu0 0.0
    %3058 = vmatpush1.msra.mxu0 0.0
    %3059 = vmatprep.subr.mxu0 0.0
    %3060 = vmatpush1.msra.mxu0 0.0
    %3061 = vmatprep.subr.mxu0 0.0
    %3062 = vmatpush1.msra.mxu0 0.0
    %3063 = vmatprep.subr.mxu0 0.0
    %3064 = vmatpush1.msra.mxu0 0.0
    %3065 = vmatprep.subr.mxu0 0.0
    %3066 = vmatpush1.msra.mxu0 0.0
    %3067 = vmatprep.subr.mxu0 0.0
    %3068 = vmatpush1.msra.mxu0 0.0
    %3069 = vmatprep.subr.mxu0 0.0
    %3070 = vmatpush1.msra.mxu0 0.0
    %3071 = vmatprep.subr.mxu0 0.0
    %3072 = vmatpush1.msra.mxu0 0.0
    %3073 = vmatprep.subr.mxu0 0.0
    %3074 = vmatpush1.msra.mxu0 0.0
    %3075 = vmatprep.subr.mxu0 0.0
    %3076 = vmatpush1.msra.mxu0 0.0
    %3077 = vmatprep.subr.mxu0 0.0
    %3078 = vmatpush1.msra.mxu0 0.0
    %3079 = vmatprep.subr.mxu0 0.0
    %3080 = vmatpush1.msra.mxu0 0.0
    %3081 = vmatprep.subr.mxu0 0.0
    %3082 = vmatpush1.msra.mxu0 0.0
    %3083 = vmatprep.subr.mxu0 0.0
    %3084 = vmatpush1.msra.mxu0 0.0
    %3085 = vmatprep.subr.mxu0 0.0
    %3086 = vmatpush1.msra.mxu0 0.0
    %3087 = vmatprep.subr.mxu0 0.0
    %3088 = vmatpush1.msra.mxu0 0.0
    %3089 = vmatprep.subr.mxu0 0.0
    %3090 = vmatpush1.msra.mxu0 0.0
    %3091 = vmatprep.subr.mxu0 0.0
    %3092 = vmatpush1.msra.mxu0 0.0
    %3093 = vmatprep.subr.mxu0 0.0
    %3094 = vmatpush1.msra.mxu0 0.0
    %3095 = vmatprep.subr.mxu0 0.0
    %3096 = vmatpush1.msra.mxu0 0.0
    %3097 = vmatprep.subr.mxu0 0.0
    %3098 = vmatpush1.msra.mxu0 0.0
    %3099 = vmatprep.subr.mxu0 0.0
    %3100 = vmatpush1.msra.mxu0 0.0
    %3101 = vmatprep.subr.mxu0 0.0
    %3102 = vmatpush1.msra.mxu0 0.0
    %3103 = vmatprep.mubr.f32.mxu0 0.0
    %3104 = vmatmul.mubr.f32.gmra.mrb[0].mxu0 %v3037
    %v3105 = vpop.f32.mrb[0].mxu0
    %v3106 = vadd.f32 %v147, %v3105
    %v3107 = vpop.f32.mrb[0].mxu0
    %3108 = vdwg.mxu0
    %3110 = vrot.lane.b32.xlu0 %v3106, 112
    %v3111 = vpop.permute.xlu0 %3110
    %vm3113 = vcmask 1048448
    %3114 = vst.msk [vmem:[#allocation13] sm:$0xff] %vm3113, %v3111
    // Predicated region
    $region122: #{tpu_custom_call.1} parent=1 // pred_check
      _
    $region123: #{tpu_custom_call.1} parent=1 // pred_check_branch
      %3116 = sbr.rel (0) target = $region125
    $region124: #{tpu_custom_call.1} parent=1 // pred_region
      %s3118 = ssub.s32 128, 128
      %3119 = vsyncadd [#allocation4], %s3118
      %s3121 = sshll.u32 [#allocation13], 4
      %s3122 = int_to_ptr.vmem [resolvable:$true] %s3121
      %3124 = dma.vmem_to_hbm [thread:$0]  %s3122, 128, %s10, [#allocation4]
    $region125: #{tpu_custom_call.1} parent=1 // pred_fallthru
      _
    // Predicated region
    $region126: #{tpu_custom_call.1} parent=1 // pred_check
      _
    $region127: #{tpu_custom_call.1} parent=1 // pred_check_branch
      %3126 = sbr.rel (0) target = $region129
    $region128: #{tpu_custom_call.1} parent=1 // pred_region
      %3127 = dma.done [#allocation4], 128
    $region129: #{tpu_custom_call.1} parent=1 // pred_fallthru
      _
    %3128 = vsyncpa [#allocation3], 1
    %3129 = vsyncpa [#allocation8], 1
    %3130 = vsyncpa [#allocation11], 1
    %3131 = vsyncpa [#allocation4], 1
    %3132 = vsyncpa [#allocation5], 1

</llo_original>
